<compile_context>
chip_gen: v5e
topology: v5e:2x2
jax: 0.10.0
libtpu: 0.0.40
codegen_flags: <defaults>
</compile_context>

<pallas_src>
import functools

import jax
import jax.numpy as jnp
import numpy as np
from jax.experimental import pallas as pl
from jax.experimental.pallas import tpu as pltpu


# ----------------------------------------------------------------------------
# Pallas kernels.
#
# "Row form" of a conv3x3 (pad=1): padded NHWC input flattened to
#   X[r, wp*Cin + c] = x_padded[n, hp, wp, c],  r = n*(H+2) + hp
# (plus 2 spare zero rows at the bottom).  Then
#   Y[r] = ReLU( sum_dh  X[r+dh] @ Wband[dh]  + shift )
# where Wband[dh] has shape ((W+2)*Cin, Wout*Cout) and encodes the 3 width
# taps (and the width stride).  Rows whose window straddles two images are
# computed but discarded by the cheap host-side un-flatten.
# ----------------------------------------------------------------------------
def _conv3_rows_kernel(x_ref, w_ref, b_ref, o_ref):
    """3x3 conv as 3 banded matmuls (in-kernel im2col) + folded-BN shift + ReLU."""
    r = o_ref.shape[0]
    acc = jnp.dot(x_ref[pl.ds(0, r), :].astype(jnp.bfloat16), w_ref[0],
                  preferred_element_type=jnp.float32)
    acc += jnp.dot(x_ref[pl.ds(1, r), :].astype(jnp.bfloat16), w_ref[1],
                   preferred_element_type=jnp.float32)
    acc += jnp.dot(x_ref[pl.ds(2, r), :].astype(jnp.bfloat16), w_ref[2],
                   preferred_element_type=jnp.float32)
    o_ref[...] = jnp.maximum(acc + b_ref[...], 0.0)


def _conv3_rows_chain_kernel(x_ref, w_ref, b_ref, w2_ref, b2_ref,
                             rep_ref, o_ref):
    """conv3x3-BN-ReLU, then a chained (rep @ W2 + b2) head matmul on the same
    VMEM-resident activation (fused classifier / memory read-outs)."""
    r = rep_ref.shape[0]
    acc = jnp.dot(x_ref[pl.ds(0, r), :].astype(jnp.bfloat16), w_ref[0],
                  preferred_element_type=jnp.float32)
    acc += jnp.dot(x_ref[pl.ds(1, r), :].astype(jnp.bfloat16), w_ref[1],
                   preferred_element_type=jnp.float32)
    acc += jnp.dot(x_ref[pl.ds(2, r), :].astype(jnp.bfloat16), w_ref[2],
                   preferred_element_type=jnp.float32)
    rep = jnp.maximum(acc + b_ref[...], 0.0)
    rep_ref[...] = rep
    o_ref[...] = jnp.dot(rep.astype(jnp.bfloat16), w2_ref[...],
                         preferred_element_type=jnp.float32) + b2_ref[...]


def _full_spec(shape):
    return pl.BlockSpec(shape, lambda *args: (0,) * len(shape))


_PARAMS_1GRID = pltpu.CompilerParams(dimension_semantics=("arbitrary",))


def conv3_rows(x2, wband, shift):
    r = x2.shape[0] - 2
    n_out = wband.shape[-1]
    return pl.pallas_call(
        _conv3_rows_kernel,
        out_shape=jax.ShapeDtypeStruct((r, n_out), jnp.float32),
        grid=(1,),
        in_specs=[_full_spec(x2.shape), _full_spec(wband.shape),
                  _full_spec(shift.shape)],
        out_specs=_full_spec((r, n_out)),
        compiler_params=_PARAMS_1GRID,
    )(x2, wband, shift)


def conv3_rows_chain(x2, wband, shift, w2, b2):
    r = x2.shape[0] - 2
    n_rep = wband.shape[-1]
    n_out = w2.shape[-1]
    return pl.pallas_call(
        _conv3_rows_chain_kernel,
        out_shape=(jax.ShapeDtypeStruct((r, n_rep), jnp.float32),
                   jax.ShapeDtypeStruct((r, n_out), jnp.float32)),
        grid=(1,),
        in_specs=[_full_spec(x2.shape), _full_spec(wband.shape),
                  _full_spec(shift.shape), _full_spec(w2.shape),
                  _full_spec(b2.shape)],
        out_specs=(_full_spec((r, n_rep)), _full_spec((r, n_out))),
        compiler_params=_PARAMS_1GRID,
    )(x2, wband, shift, w2, b2)


# ----------------------------------------------------------------------------
# Thin JAX glue: flatten to / from row form (pure data movement, tiny ops).
# ----------------------------------------------------------------------------
def _to_rows(x_nhwc):
    n, h, w, c = x_nhwc.shape
    xp = jnp.pad(x_nhwc, ((0, 0), (1, 1), (1, 1), (0, 0)))
    x2 = xp.reshape(n * (h + 2), (w + 2) * c)
    return jnp.pad(x2, ((0, 2), (0, 0)))        # 2 spare rows: r+2 stays in-bounds


def _rows_to_nhwc(y, n, h_in, w_out, c_out, stride):
    y = y.reshape(n, h_in + 2, w_out, c_out)
    return y[:, 0:h_in:stride]                  # drop padded/garbage rows


def conv3x3_bn_relu(x_nhwc, p, *, stride):
    n, h, w, _ = x_nhwc.shape
    w_out = (w - 1) // stride + 1
    cout = p["b"].shape[1] // w_out
    y = conv3_rows(_to_rows(x_nhwc), p["w"], p["b"])
    return _rows_to_nhwc(y, n, h, w_out, cout, stride)


def conv3x3_bn_relu_chain(x_nhwc, p, w2, b2):
    n, h, w, _ = x_nhwc.shape
    cout = p["b"].shape[1] // w
    n2 = b2.shape[1] // w
    rep_rows, out_rows = conv3_rows_chain(_to_rows(x_nhwc), p["w"], p["b"], w2, b2)
    return (_rows_to_nhwc(rep_rows, n, h, w, cout, 1),
            _rows_to_nhwc(out_rows, n, h, w, n2, 1))


# ----------------------------------------------------------------------------
# One-time host-side parameter folding (BN scale into weights, conv weights
# into banded row-matmul form, 1x1 heads into the row layout).
# ----------------------------------------------------------------------------
def _fold_bn(p, eps=1e-5):
    gamma = np.asarray(p["gamma"], np.float32)
    beta = np.asarray(p["beta"], np.float32)
    mean = np.asarray(p["mean"], np.float32)
    var = np.asarray(p["var"], np.float32)
    b = np.asarray(p["b"], np.float32)
    scale = gamma / np.sqrt(var + eps)
    shift = (b - mean) * scale + beta
    return scale, shift


def _banded_conv3_weights(w, scale, w_in, stride):
    # w: (Cout, Cin, 3, 3) torch-layout conv weight; BN scale folded in.
    cout, cin = w.shape[:2]
    wf = np.asarray(w, np.float32) * scale[:, None, None, None]
    w_out = (w_in - 1) // stride + 1
    band = np.zeros((3, (w_in + 2) * cin, w_out * cout), np.float32)
    for dh in range(3):
        for dw in range(3):
            blk = wf[:, :, dh, dw].T                       # (Cin, Cout)
            for wo in range(w_out):
                wi = wo * stride + dw
                band[dh, wi * cin:(wi + 1) * cin,
                     wo * cout:(wo + 1) * cout] = blk
    return band, w_out


_CONV_CFG = {          # name: (input spatial width, stride)
    "enc1": (16, 1),
    "enc2": (16, 2),
    "dec": (8, 1),
    "aux1": (16, 1),
}


def prepare_params(raw):
    prep = {}
    for name, (w_in, stride) in _CONV_CFG.items():
        p = raw[name]
        scale, shift = _fold_bn(p)
        band, w_out = _banded_conv3_weights(np.asarray(p["w"]), scale, w_in, stride)
        prep[name] = {
            "w": jnp.asarray(band, jnp.bfloat16),
            "b": jnp.asarray(np.tile(shift, w_out)[None, :], jnp.float32),
        }
    # classifier 1x1: keep (D, C); fused with the (runtime) memories in forward.
    cls_w = np.asarray(raw["cls"]["w"], np.float32)[:, :, 0, 0]       # (C, D)
    prep["cls_w"] = jnp.asarray(cls_w.T, jnp.float32)                 # (D, C)
    prep["cls_b"] = jnp.asarray(np.asarray(raw["cls"]["b"], np.float32))
    # aux 1x1 head, expanded to the aux conv's row layout (W=16 blocks).
    aux_w = np.asarray(raw["aux2"]["w"], np.float32)[:, :, 0, 0].T    # (16, C)
    aux_b = np.asarray(raw["aux2"]["b"], np.float32)
    prep["aux2_w"] = jnp.asarray(np.kron(np.eye(16, dtype=np.float32), aux_w),
                                 jnp.bfloat16)                        # (256, 16*C)
    prep["aux2_b"] = jnp.asarray(np.tile(aux_b, 16)[None, :], jnp.float32)
    return prep


# ----------------------------------------------------------------------------
# ModelBuilder forward (aux_loss=True, fpn=False, phase_train=False branch):
#   feat1, feat2 = encoder(x)
#   outs = decoder(feat2, deterministic_memory, latent_memory, forward_times)
#   outs['aux'] = auxor(feat1)        # Dropout2d(0.1) is identity at eval
# ----------------------------------------------------------------------------
def model_builder_forward(params, x_nchw, deterministic_memory, latent_memory,
                          forward_times=5):
    n = x_nchw.shape[0]
    num_classes = deterministic_memory.shape[0]
    t = forward_times
    x = jnp.transpose(x_nchw, (0, 2, 3, 1)).astype(jnp.float32)     # NCHW->NHWC

    # -------- encoder (two conv-BN-ReLU stages) --------
    feat1 = conv3x3_bn_relu(x, params["enc1"], stride=1)            # (N,16,16, 8)
    feat2 = conv3x3_bn_relu(feat1, params["enc2"], stride=2)        # (N, 8, 8,16)

    # -------- decoder: rep conv + fused (cls | det-memory | latent) head -----
    # TODO(synk): exact decoder class is importlib/config dependent in U2PL;
    # this is a representative memory-based decoder (raw dot-product read-out,
    # no L2 normalization) with the same interface.
    d = params["cls_w"].shape[0]
    w_all = jnp.concatenate(
        [params["cls_w"],                                           # (D, C)
         jnp.transpose(deterministic_memory, (1, 0)),               # (D, C)
         jnp.transpose(latent_memory, (2, 0, 1)).reshape(d, t * num_classes)],
        axis=1)                                                     # (D,(2+T)*C)
    w2 = jnp.kron(jnp.eye(8, dtype=jnp.float32), w_all).astype(jnp.bfloat16)
    b_all = jnp.concatenate(
        [params["cls_b"], jnp.zeros(((1 + t) * num_classes,), jnp.float32)])
    b2 = jnp.tile(b_all, (8,))[None, :]

    rep, logits = conv3x3_bn_relu_chain(feat2, params["dec"], w2, b2)
    # rep: (N,8,8,D); logits: (N,8,8,(2+T)*C)
    pred = logits[..., :num_classes]
    mem_logits = logits[..., num_classes:2 * num_classes]
    latent = logits[..., 2 * num_classes:].reshape(n, 8, 8, t, num_classes)

    outs = {
        "pred": jnp.transpose(pred, (0, 3, 1, 2)),
        "mem_logits": jnp.transpose(mem_logits, (0, 3, 1, 2)),
        "latent_preds": jnp.transpose(latent, (3, 0, 4, 1, 2)),     # (T,N,C,H,W)
        "rep": jnp.transpose(rep, (0, 3, 1, 2)),
    }

    # -------- Aux_Module on feat1: conv3x3-BN-ReLU-(Dropout2d)-conv1x1 -------
    _, aux = conv3x3_bn_relu_chain(feat1, params["aux1"],
                                   params["aux2_w"], params["aux2_b"])
    outs["aux"] = jnp.transpose(aux, (0, 3, 1, 2))                  # (N,C,16,16)
    return outs


# ----------------------------------------------------------------------------
# Deterministic synthetic parameter construction.
# ----------------------------------------------------------------------------
def make_conv_bn_params(key, cin, cout):
    k1, k2 = jax.random.split(key)
    return {
        "w": 0.1 * jax.random.normal(k1, (cout, cin, 3, 3), jnp.float32),
        "b": 0.01 * jax.random.normal(k2, (cout,), jnp.float32),
        "gamma": jnp.ones((cout,), jnp.float32),
        "beta": jnp.zeros((cout,), jnp.float32),
        "mean": jnp.zeros((cout,), jnp.float32),
        "var": jnp.ones((cout,), jnp.float32),
    }


def make_conv1x1_params(key, cin, cout):
    k1, k2 = jax.random.split(key)
    return {
        "w": 0.1 * jax.random.normal(k1, (cout, cin, 1, 1), jnp.float32),
        "b": 0.01 * jax.random.normal(k2, (cout,), jnp.float32),
    }


if __name__ == "__main__":
    num_classes = 5
    rep_dim = 32
    forward_times = 5

    key = jax.random.PRNGKey(0)
    keys = jax.random.split(key, 10)

    raw_params = {
        "enc1": make_conv_bn_params(keys[0], 4, 8),      # encoder stage 1
        "enc2": make_conv_bn_params(keys[1], 8, 16),     # encoder stage 2 (s=2)
        "dec": make_conv_bn_params(keys[2], 16, rep_dim),
        "cls": make_conv1x1_params(keys[3], rep_dim, num_classes),
        "aux1": make_conv_bn_params(keys[4], 8, 16),     # Aux_Module conv3x3
        "aux2": make_conv1x1_params(keys[5], 16, num_classes),
    }
    params = prepare_params(raw_params)                  # one-time host folding

    x = jax.random.normal(keys[6], (2, 4, 16, 16), jnp.float32)          # NCHW
    deterministic_memory = jax.random.normal(keys[7], (num_classes, rep_dim),
                                             jnp.float32)
    latent_memory = jax.random.normal(keys[8],
                                      (forward_times, num_classes, rep_dim),
                                      jnp.float32)

    fwd = jax.jit(functools.partial(model_builder_forward,
                                    forward_times=forward_times))
    outs = fwd(params, x, deterministic_memory, latent_memory)
    jax.block_until_ready(outs)

    assert outs["pred"].shape == (2, num_classes, 8, 8)
    assert outs["mem_logits"].shape == (2, num_classes, 8, 8)
    assert outs["latent_preds"].shape == (forward_times, 2, num_classes, 8, 8)
    assert outs["rep"].shape == (2, rep_dim, 8, 8)
    assert outs["aux"].shape == (2, num_classes, 16, 16)
    print("KERNEL_OK")
</pallas_src>

<mosaic_0001>
module attributes {stable_mosaic.version = 11 : i64} {
  func.func @_conv3_rows_kernel(%arg0: i32, %arg1: memref<38x72xf32, #tpu.memory_space<vmem>>, %arg2: memref<3x72x128xbf16, #tpu.memory_space<vmem>>, %arg3: memref<1x128xf32, #tpu.memory_space<vmem>>, %arg4: memref<36x128xf32, #tpu.memory_space<vmem>>) attributes {dimension_semantics = [#tpu.dimension_semantics<arbitrary>], iteration_bounds = array<i64: 1>, scalar_prefetch = 0 : i64, scratch_operands = 0 : i64, tpu.core_type = #tpu.core_type<tc>, window_params = [{pipeline_mode = #tpu.pipeline_mode<synchronous>, transform_indices = @transform_0, window_bounds = array<i64: 38, 72>}, {pipeline_mode = #tpu.pipeline_mode<synchronous>, transform_indices = @transform_1, window_bounds = array<i64: 3, 72, 128>}, {pipeline_mode = #tpu.pipeline_mode<synchronous>, transform_indices = @transform_2, window_bounds = array<i64: 1, 128>}, {pipeline_mode = #tpu.pipeline_mode<synchronous>, transform_indices = @transform_3, window_bounds = array<i64: 36, 128>}]} {
    %c0 = arith.constant 0 : index
    %c0_0 = arith.constant 0 : index
    %0 = vector.load %arg1[%c0, %c0_0] : memref<38x72xf32, #tpu.memory_space<vmem>>, vector<36x72xf32>
    %1 = arith.truncf %0 : vector<36x72xf32> to vector<36x72xbf16>
    %c0_1 = arith.constant 0 : index
    %c0_2 = arith.constant 0 : index
    %c0_3 = arith.constant 0 : index
    %2 = vector.load %arg2[%c0_1, %c0_2, %c0_3] : memref<3x72x128xbf16, #tpu.memory_space<vmem>>, vector<1x72x128xbf16>
    %3 = vector.shape_cast %2 : vector<1x72x128xbf16> to vector<72x128xbf16>
    %cst = arith.constant dense<0.000000e+00> : vector<36x128xf32>
    %4 = tpu.matmul %1, %3, %cst {dimension_numbers = #tpu.dot_dimension_numbers<[1], [0], [0], [1], [0, 0, 1, 1], [], []>} : vector<36x72xbf16>, vector<72x128xbf16>, vector<36x128xf32> -> vector<36x128xf32>
    %c1 = arith.constant 1 : index
    %c0_4 = arith.constant 0 : index
    %5 = vector.load %arg1[%c1, %c0_4] : memref<38x72xf32, #tpu.memory_space<vmem>>, vector<36x72xf32>
    %6 = arith.truncf %5 : vector<36x72xf32> to vector<36x72xbf16>
    %c1_5 = arith.constant 1 : index
    %c0_6 = arith.constant 0 : index
    %c0_7 = arith.constant 0 : index
    %7 = vector.load %arg2[%c1_5, %c0_6, %c0_7] : memref<3x72x128xbf16, #tpu.memory_space<vmem>>, vector<1x72x128xbf16>
    %8 = vector.shape_cast %7 : vector<1x72x128xbf16> to vector<72x128xbf16>
    %cst_8 = arith.constant dense<0.000000e+00> : vector<36x128xf32>
    %9 = tpu.matmul %6, %8, %cst_8 {dimension_numbers = #tpu.dot_dimension_numbers<[1], [0], [0], [1], [0, 0, 1, 1], [], []>} : vector<36x72xbf16>, vector<72x128xbf16>, vector<36x128xf32> -> vector<36x128xf32>
    %10 = arith.addf %4, %9 : vector<36x128xf32>
    %c2 = arith.constant 2 : index
    %c0_9 = arith.constant 0 : index
    %11 = vector.load %arg1[%c2, %c0_9] : memref<38x72xf32, #tpu.memory_space<vmem>>, vector<36x72xf32>
    %12 = arith.truncf %11 : vector<36x72xf32> to vector<36x72xbf16>
    %c2_10 = arith.constant 2 : index
    %c0_11 = arith.constant 0 : index
    %c0_12 = arith.constant 0 : index
    %13 = vector.load %arg2[%c2_10, %c0_11, %c0_12] : memref<3x72x128xbf16, #tpu.memory_space<vmem>>, vector<1x72x128xbf16>
    %14 = vector.shape_cast %13 : vector<1x72x128xbf16> to vector<72x128xbf16>
    %cst_13 = arith.constant dense<0.000000e+00> : vector<36x128xf32>
    %15 = tpu.matmul %12, %14, %cst_13 {dimension_numbers = #tpu.dot_dimension_numbers<[1], [0], [0], [1], [0, 0, 1, 1], [], []>} : vector<36x72xbf16>, vector<72x128xbf16>, vector<36x128xf32> -> vector<36x128xf32>
    %16 = arith.addf %10, %15 : vector<36x128xf32>
    %c0_14 = arith.constant 0 : index
    %c0_15 = arith.constant 0 : index
    %17 = vector.load %arg3[%c0_14, %c0_15] : memref<1x128xf32, #tpu.memory_space<vmem>>, vector<1x128xf32>
    %18 = vector.broadcast %17 : vector<1x128xf32> to vector<36x128xf32>
    %19 = arith.addf %16, %18 : vector<36x128xf32>
    %cst_16 = arith.constant 0.000000e+00 : f32
    %20 = vector.broadcast %cst_16 : f32 to vector<36x128xf32>
    %21 = arith.maximumf %19, %20 : vector<36x128xf32>
    %c0_17 = arith.constant 0 : index
    %c0_18 = arith.constant 0 : index
    %22 = vector.load %arg4[%c0_17, %c0_18] : memref<36x128xf32, #tpu.memory_space<vmem>>, vector<36x128xf32>
    tpu.vector_store %arg4[%c0_17, %c0_18], %21 {strides = array<i32>} : memref<36x128xf32, #tpu.memory_space<vmem>>, vector<36x128xf32>,
    return
  }
  func.func @transform_0(%arg0: i32) -> (i32, i32) {
    %c0_i32 = arith.constant 0 : i32
    %c0_i32_0 = arith.constant 0 : i32
    %c0_i32_1 = arith.constant 0 : i32
    return %c0_i32, %c0_i32_0 : i32, i32
  }
  func.func @transform_1(%arg0: i32) -> (i32, i32, i32) {
    %c0_i32 = arith.constant 0 : i32
    %c0_i32_0 = arith.constant 0 : i32
    %c0_i32_1 = arith.constant 0 : i32
    %c0_i32_2 = arith.constant 0 : i32
    return %c0_i32, %c0_i32_0, %c0_i32_1 : i32, i32, i32
  }
  func.func @transform_2(%arg0: i32) -> (i32, i32) {
    %c0_i32 = arith.constant 0 : i32
    %c0_i32_0 = arith.constant 0 : i32
    %c0_i32_1 = arith.constant 0 : i32
    return %c0_i32, %c0_i32_0 : i32, i32
  }
  func.func @transform_3(%arg0: i32) -> (i32, i32) {
    %c0_i32 = arith.constant 0 : i32
    %c0_i32_0 = arith.constant 0 : i32
    %c0_i32_1 = arith.constant 0 : i32
    return %c0_i32, %c0_i32_0 : i32, i32
  }
}

module attributes {stable_mosaic.version = 11 : i64} {
  func.func @_conv3_rows_kernel(%arg0: i32, %arg1: memref<38x144xf32, #tpu.memory_space<vmem>>, %arg2: memref<3x144x128xbf16, #tpu.memory_space<vmem>>, %arg3: memref<1x128xf32, #tpu.memory_space<vmem>>, %arg4: memref<36x128xf32, #tpu.memory_space<vmem>>) attributes {dimension_semantics = [#tpu.dimension_semantics<arbitrary>], iteration_bounds = array<i64: 1>, scalar_prefetch = 0 : i64, scratch_operands = 0 : i64, tpu.core_type = #tpu.core_type<tc>, window_params = [{pipeline_mode = #tpu.pipeline_mode<synchronous>, transform_indices = @transform_0, window_bounds = array<i64: 38, 144>}, {pipeline_mode = #tpu.pipeline_mode<synchronous>, transform_indices = @transform_1, window_bounds = array<i64: 3, 144, 128>}, {pipeline_mode = #tpu.pipeline_mode<synchronous>, transform_indices = @transform_2, window_bounds = array<i64: 1, 128>}, {pipeline_mode = #tpu.pipeline_mode<synchronous>, transform_indices = @transform_3, window_bounds = array<i64: 36, 128>}]} {
    %c0 = arith.constant 0 : index
    %c0_0 = arith.constant 0 : index
    %0 = vector.load %arg1[%c0, %c0_0] : memref<38x144xf32, #tpu.memory_space<vmem>>, vector<36x144xf32>
    %1 = arith.truncf %0 : vector<36x144xf32> to vector<36x144xbf16>
    %c0_1 = arith.constant 0 : index
    %c0_2 = arith.constant 0 : index
    %c0_3 = arith.constant 0 : index
    %2 = vector.load %arg2[%c0_1, %c0_2, %c0_3] : memref<3x144x128xbf16, #tpu.memory_space<vmem>>, vector<1x144x128xbf16>
    %3 = vector.shape_cast %2 : vector<1x144x128xbf16> to vector<144x128xbf16>
    %cst = arith.constant dense<0.000000e+00> : vector<36x128xf32>
    %4 = tpu.matmul %1, %3, %cst {dimension_numbers = #tpu.dot_dimension_numbers<[1], [0], [0], [1], [0, 0, 1, 1], [], []>} : vector<36x144xbf16>, vector<144x128xbf16>, vector<36x128xf32> -> vector<36x128xf32>
    %c1 = arith.constant 1 : index
    %c0_4 = arith.constant 0 : index
    %5 = vector.load %arg1[%c1, %c0_4] : memref<38x144xf32, #tpu.memory_space<vmem>>, vector<36x144xf32>
    %6 = arith.truncf %5 : vector<36x144xf32> to vector<36x144xbf16>
    %c1_5 = arith.constant 1 : index
    %c0_6 = arith.constant 0 : index
    %c0_7 = arith.constant 0 : index
    %7 = vector.load %arg2[%c1_5, %c0_6, %c0_7] : memref<3x144x128xbf16, #tpu.memory_space<vmem>>, vector<1x144x128xbf16>
    %8 = vector.shape_cast %7 : vector<1x144x128xbf16> to vector<144x128xbf16>
    %cst_8 = arith.constant dense<0.000000e+00> : vector<36x128xf32>
    %9 = tpu.matmul %6, %8, %cst_8 {dimension_numbers = #tpu.dot_dimension_numbers<[1], [0], [0], [1], [0, 0, 1, 1], [], []>} : vector<36x144xbf16>, vector<144x128xbf16>, vector<36x128xf32> -> vector<36x128xf32>
    %10 = arith.addf %4, %9 : vector<36x128xf32>
    %c2 = arith.constant 2 : index
    %c0_9 = arith.constant 0 : index
    %11 = vector.load %arg1[%c2, %c0_9] : memref<38x144xf32, #tpu.memory_space<vmem>>, vector<36x144xf32>
    %12 = arith.truncf %11 : vector<36x144xf32> to vector<36x144xbf16>
    %c2_10 = arith.constant 2 : index
    %c0_11 = arith.constant 0 : index
    %c0_12 = arith.constant 0 : index
    %13 = vector.load %arg2[%c2_10, %c0_11, %c0_12] : memref<3x144x128xbf16, #tpu.memory_space<vmem>>, vector<1x144x128xbf16>
    %14 = vector.shape_cast %13 : vector<1x144x128xbf16> to vector<144x128xbf16>
    %cst_13 = arith.constant dense<0.000000e+00> : vector<36x128xf32>
    %15 = tpu.matmul %12, %14, %cst_13 {dimension_numbers = #tpu.dot_dimension_numbers<[1], [0], [0], [1], [0, 0, 1, 1], [], []>} : vector<36x144xbf16>, vector<144x128xbf16>, vector<36x128xf32> -> vector<36x128xf32>
    %16 = arith.addf %10, %15 : vector<36x128xf32>
    %c0_14 = arith.constant 0 : index
    %c0_15 = arith.constant 0 : index
    %17 = vector.load %arg3[%c0_14, %c0_15] : memref<1x128xf32, #tpu.memory_space<vmem>>, vector<1x128xf32>
    %18 = vector.broadcast %17 : vector<1x128xf32> to vector<36x128xf32>
    %19 = arith.addf %16, %18 : vector<36x128xf32>
    %cst_16 = arith.constant 0.000000e+00 : f32
    %20 = vector.broadcast %cst_16 : f32 to vector<36x128xf32>
    %21 = arith.maximumf %19, %20 : vector<36x128xf32>
    %c0_17 = arith.constant 0 : index
    %c0_18 = arith.constant 0 : index
    %22 = vector.load %arg4[%c0_17, %c0_18] : memref<36x128xf32, #tpu.memory_space<vmem>>, vector<36x128xf32>
    tpu.vector_store %arg4[%c0_17, %c0_18], %21 {strides = array<i32>} : memref<36x128xf32, #tpu.memory_space<vmem>>, vector<36x128xf32>,
    return
  }
  func.func @transform_0(%arg0: i32) -> (i32, i32) {
    %c0_i32 = arith.constant 0 : i32
    %c0_i32_0 = arith.constant 0 : i32
    %c0_i32_1 = arith.constant 0 : i32
    return %c0_i32, %c0_i32_0 : i32, i32
  }
  func.func @transform_1(%arg0: i32) -> (i32, i32, i32) {
    %c0_i32 = arith.constant 0 : i32
    %c0_i32_0 = arith.constant 0 : i32
    %c0_i32_1 = arith.constant 0 : i32
    %c0_i32_2 = arith.constant 0 : i32
    return %c0_i32, %c0_i32_0, %c0_i32_1 : i32, i32, i32
  }
  func.func @transform_2(%arg0: i32) -> (i32, i32) {
    %c0_i32 = arith.constant 0 : i32
    %c0_i32_0 = arith.constant 0 : i32
    %c0_i32_1 = arith.constant 0 : i32
    return %c0_i32, %c0_i32_0 : i32, i32
  }
  func.func @transform_3(%arg0: i32) -> (i32, i32) {
    %c0_i32 = arith.constant 0 : i32
    %c0_i32_0 = arith.constant 0 : i32
    %c0_i32_1 = arith.constant 0 : i32
    return %c0_i32, %c0_i32_0 : i32, i32
  }
}

module attributes {stable_mosaic.version = 11 : i64} {
  func.func @_conv3_rows_chain_kernel(%arg0: i32, %arg1: memref<22x160xf32, #tpu.memory_space<vmem>>, %arg2: memref<3x160x256xbf16, #tpu.memory_space<vmem>>, %arg3: memref<1x256xf32, #tpu.memory_space<vmem>>, %arg4: memref<256x280xbf16, #tpu.memory_space<vmem>>, %arg5: memref<1x280xf32, #tpu.memory_space<vmem>>, %arg6: memref<20x256xf32, #tpu.memory_space<vmem>>, %arg7: memref<20x280xf32, #tpu.memory_space<vmem>>) attributes {dimension_semantics = [#tpu.dimension_semantics<arbitrary>], iteration_bounds = array<i64: 1>, scalar_prefetch = 0 : i64, scratch_operands = 0 : i64, tpu.core_type = #tpu.core_type<tc>, window_params = [{pipeline_mode = #tpu.pipeline_mode<synchronous>, transform_indices = @transform_0, window_bounds = array<i64: 22, 160>}, {pipeline_mode = #tpu.pipeline_mode<synchronous>, transform_indices = @transform_1, window_bounds = array<i64: 3, 160, 256>}, {pipeline_mode = #tpu.pipeline_mode<synchronous>, transform_indices = @transform_2, window_bounds = array<i64: 1, 256>}, {pipeline_mode = #tpu.pipeline_mode<synchronous>, transform_indices = @transform_3, window_bounds = array<i64: 256, 280>}, {pipeline_mode = #tpu.pipeline_mode<synchronous>, transform_indices = @transform_4, window_bounds = array<i64: 1, 280>}, {pipeline_mode = #tpu.pipeline_mode<synchronous>, transform_indices = @transform_5, window_bounds = array<i64: 20, 256>}, {pipeline_mode = #tpu.pipeline_mode<synchronous>, transform_indices = @transform_6, window_bounds = array<i64: 20, 280>}]} {
    %c0 = arith.constant 0 : index
    %c0_0 = arith.constant 0 : index
    %0 = vector.load %arg1[%c0, %c0_0] : memref<22x160xf32, #tpu.memory_space<vmem>>, vector<20x160xf32>
    %1 = arith.truncf %0 : vector<20x160xf32> to vector<20x160xbf16>
    %c0_1 = arith.constant 0 : index
    %c0_2 = arith.constant 0 : index
    %c0_3 = arith.constant 0 : index
    %2 = vector.load %arg2[%c0_1, %c0_2, %c0_3] : memref<3x160x256xbf16, #tpu.memory_space<vmem>>, vector<1x160x256xbf16>
    %3 = vector.shape_cast %2 : vector<1x160x256xbf16> to vector<160x256xbf16>
    %cst = arith.constant dense<0.000000e+00> : vector<20x256xf32>
    %4 = tpu.matmul %1, %3, %cst {dimension_numbers = #tpu.dot_dimension_numbers<[1], [0], [0], [1], [0, 0, 1, 1], [], []>} : vector<20x160xbf16>, vector<160x256xbf16>, vector<20x256xf32> -> vector<20x256xf32>
    %c1 = arith.constant 1 : index
    %c0_4 = arith.constant 0 : index
    %5 = vector.load %arg1[%c1, %c0_4] : memref<22x160xf32, #tpu.memory_space<vmem>>, vector<20x160xf32>
    %6 = arith.truncf %5 : vector<20x160xf32> to vector<20x160xbf16>
    %c1_5 = arith.constant 1 : index
    %c0_6 = arith.constant 0 : index
    %c0_7 = arith.constant 0 : index
    %7 = vector.load %arg2[%c1_5, %c0_6, %c0_7] : memref<3x160x256xbf16, #tpu.memory_space<vmem>>, vector<1x160x256xbf16>
    %8 = vector.shape_cast %7 : vector<1x160x256xbf16> to vector<160x256xbf16>
    %cst_8 = arith.constant dense<0.000000e+00> : vector<20x256xf32>
    %9 = tpu.matmul %6, %8, %cst_8 {dimension_numbers = #tpu.dot_dimension_numbers<[1], [0], [0], [1], [0, 0, 1, 1], [], []>} : vector<20x160xbf16>, vector<160x256xbf16>, vector<20x256xf32> -> vector<20x256xf32>
    %10 = arith.addf %4, %9 : vector<20x256xf32>
    %c2 = arith.constant 2 : index
    %c0_9 = arith.constant 0 : index
    %11 = vector.load %arg1[%c2, %c0_9] : memref<22x160xf32, #tpu.memory_space<vmem>>, vector<20x160xf32>
    %12 = arith.truncf %11 : vector<20x160xf32> to vector<20x160xbf16>
    %c2_10 = arith.constant 2 : index
    %c0_11 = arith.constant 0 : index
    %c0_12 = arith.constant 0 : index
    %13 = vector.load %arg2[%c2_10, %c0_11, %c0_12] : memref<3x160x256xbf16, #tpu.memory_space<vmem>>, vector<1x160x256xbf16>
    %14 = vector.shape_cast %13 : vector<1x160x256xbf16> to vector<160x256xbf16>
    %cst_13 = arith.constant dense<0.000000e+00> : vector<20x256xf32>
    %15 = tpu.matmul %12, %14, %cst_13 {dimension_numbers = #tpu.dot_dimension_numbers<[1], [0], [0], [1], [0, 0, 1, 1], [], []>} : vector<20x160xbf16>, vector<160x256xbf16>, vector<20x256xf32> -> vector<20x256xf32>
    %16 = arith.addf %10, %15 : vector<20x256xf32>
    %c0_14 = arith.constant 0 : index
    %c0_15 = arith.constant 0 : index
    %17 = vector.load %arg3[%c0_14, %c0_15] : memref<1x256xf32, #tpu.memory_space<vmem>>, vector<1x256xf32>
    %18 = vector.broadcast %17 : vector<1x256xf32> to vector<20x256xf32>
    %19 = arith.addf %16, %18 : vector<20x256xf32>
    %cst_16 = arith.constant 0.000000e+00 : f32
    %20 = vector.broadcast %cst_16 : f32 to vector<20x256xf32>
    %21 = arith.maximumf %19, %20 : vector<20x256xf32>
    %c0_17 = arith.constant 0 : index
    %c0_18 = arith.constant 0 : index
    %22 = vector.load %arg6[%c0_17, %c0_18] : memref<20x256xf32, #tpu.memory_space<vmem>>, vector<20x256xf32>
    tpu.vector_store %arg6[%c0_17, %c0_18], %21 {strides = array<i32>} : memref<20x256xf32, #tpu.memory_space<vmem>>, vector<20x256xf32>,
    %23 = arith.truncf %21 : vector<20x256xf32> to vector<20x256xbf16>
    %c0_19 = arith.constant 0 : index
    %c0_20 = arith.constant 0 : index
    %24 = vector.load %arg4[%c0_19, %c0_20] : memref<256x280xbf16, #tpu.memory_space<vmem>>, vector<256x280xbf16>
    %cst_21 = arith.constant dense<0.000000e+00> : vector<20x280xf32>
    %25 = tpu.matmul %23, %24, %cst_21 {dimension_numbers = #tpu.dot_dimension_numbers<[1], [0], [0], [1], [0, 0, 1, 1], [], []>} : vector<20x256xbf16>, vector<256x280xbf16>, vector<20x280xf32> -> vector<20x280xf32>
    %c0_22 = arith.constant 0 : index
    %c0_23 = arith.constant 0 : index
    %26 = vector.load %arg5[%c0_22, %c0_23] : memref<1x280xf32, #tpu.memory_space<vmem>>, vector<1x280xf32>
    %27 = vector.broadcast %26 : vector<1x280xf32> to vector<20x280xf32>
    %28 = arith.addf %25, %27 : vector<20x280xf32>
    %c0_24 = arith.constant 0 : index
    %c0_25 = arith.constant 0 : index
    %29 = vector.load %arg7[%c0_24, %c0_25] : memref<20x280xf32, #tpu.memory_space<vmem>>, vector<20x280xf32>
    tpu.vector_store %arg7[%c0_24, %c0_25], %28 {strides = array<i32>} : memref<20x280xf32, #tpu.memory_space<vmem>>, vector<20x280xf32>,
    return
  }
  func.func @transform_0(%arg0: i32) -> (i32, i32) {
    %c0_i32 = arith.constant 0 : i32
    %c0_i32_0 = arith.constant 0 : i32
    %c0_i32_1 = arith.constant 0 : i32
    return %c0_i32, %c0_i32_0 : i32, i32
  }
  func.func @transform_1(%arg0: i32) -> (i32, i32, i32) {
    %c0_i32 = arith.constant 0 : i32
    %c0_i32_0 = arith.constant 0 : i32
    %c0_i32_1 = arith.constant 0 : i32
    %c0_i32_2 = arith.constant 0 : i32
    return %c0_i32, %c0_i32_0, %c0_i32_1 : i32, i32, i32
  }
  func.func @transform_2(%arg0: i32) -> (i32, i32) {
    %c0_i32 = arith.constant 0 : i32
    %c0_i32_0 = arith.constant 0 : i32
    %c0_i32_1 = arith.constant 0 : i32
    return %c0_i32, %c0_i32_0 : i32, i32
  }
  func.func @transform_3(%arg0: i32) -> (i32, i32) {
    %c0_i32 = arith.constant 0 : i32
    %c0_i32_0 = arith.constant 0 : i32
    %c0_i32_1 = arith.constant 0 : i32
    return %c0_i32, %c0_i32_0 : i32, i32
  }
  func.func @transform_4(%arg0: i32) -> (i32, i32) {
    %c0_i32 = arith.constant 0 : i32
    %c0_i32_0 = arith.constant 0 : i32
    %c0_i32_1 = arith.constant 0 : i32
    return %c0_i32, %c0_i32_0 : i32, i32
  }
  func.func @transform_5(%arg0: i32) -> (i32, i32) {
    %c0_i32 = arith.constant 0 : i32
    %c0_i32_0 = arith.constant 0 : i32
    %c0_i32_1 = arith.constant 0 : i32
    return %c0_i32, %c0_i32_0 : i32, i32
  }
  func.func @transform_6(%arg0: i32) -> (i32, i32) {
    %c0_i32 = arith.constant 0 : i32
    %c0_i32_0 = arith.constant 0 : i32
    %c0_i32_1 = arith.constant 0 : i32
    return %c0_i32, %c0_i32_0 : i32, i32
  }
}

module attributes {stable_mosaic.version = 11 : i64} {
  func.func @_conv3_rows_chain_kernel(%arg0: i32, %arg1: memref<38x144xf32, #tpu.memory_space<vmem>>, %arg2: memref<3x144x256xbf16, #tpu.memory_space<vmem>>, %arg3: memref<1x256xf32, #tpu.memory_space<vmem>>, %arg4: memref<256x80xbf16, #tpu.memory_space<vmem>>, %arg5: memref<1x80xf32, #tpu.memory_space<vmem>>, %arg6: memref<36x256xf32, #tpu.memory_space<vmem>>, %arg7: memref<36x80xf32, #tpu.memory_space<vmem>>) attributes {dimension_semantics = [#tpu.dimension_semantics<arbitrary>], iteration_bounds = array<i64: 1>, scalar_prefetch = 0 : i64, scratch_operands = 0 : i64, tpu.core_type = #tpu.core_type<tc>, window_params = [{pipeline_mode = #tpu.pipeline_mode<synchronous>, transform_indices = @transform_0, window_bounds = array<i64: 38, 144>}, {pipeline_mode = #tpu.pipeline_mode<synchronous>, transform_indices = @transform_1, window_bounds = array<i64: 3, 144, 256>}, {pipeline_mode = #tpu.pipeline_mode<synchronous>, transform_indices = @transform_2, window_bounds = array<i64: 1, 256>}, {pipeline_mode = #tpu.pipeline_mode<synchronous>, transform_indices = @transform_3, window_bounds = array<i64: 256, 80>}, {pipeline_mode = #tpu.pipeline_mode<synchronous>, transform_indices = @transform_4, window_bounds = array<i64: 1, 80>}, {pipeline_mode = #tpu.pipeline_mode<synchronous>, transform_indices = @transform_5, window_bounds = array<i64: 36, 256>}, {pipeline_mode = #tpu.pipeline_mode<synchronous>, transform_indices = @transform_6, window_bounds = array<i64: 36, 80>}]} {
    %c0 = arith.constant 0 : index
    %c0_0 = arith.constant 0 : index
    %0 = vector.load %arg1[%c0, %c0_0] : memref<38x144xf32, #tpu.memory_space<vmem>>, vector<36x144xf32>
    %1 = arith.truncf %0 : vector<36x144xf32> to vector<36x144xbf16>
    %c0_1 = arith.constant 0 : index
    %c0_2 = arith.constant 0 : index
    %c0_3 = arith.constant 0 : index
    %2 = vector.load %arg2[%c0_1, %c0_2, %c0_3] : memref<3x144x256xbf16, #tpu.memory_space<vmem>>, vector<1x144x256xbf16>
    %3 = vector.shape_cast %2 : vector<1x144x256xbf16> to vector<144x256xbf16>
    %cst = arith.constant dense<0.000000e+00> : vector<36x256xf32>
    %4 = tpu.matmul %1, %3, %cst {dimension_numbers = #tpu.dot_dimension_numbers<[1], [0], [0], [1], [0, 0, 1, 1], [], []>} : vector<36x144xbf16>, vector<144x256xbf16>, vector<36x256xf32> -> vector<36x256xf32>
    %c1 = arith.constant 1 : index
    %c0_4 = arith.constant 0 : index
    %5 = vector.load %arg1[%c1, %c0_4] : memref<38x144xf32, #tpu.memory_space<vmem>>, vector<36x144xf32>
    %6 = arith.truncf %5 : vector<36x144xf32> to vector<36x144xbf16>
    %c1_5 = arith.constant 1 : index
    %c0_6 = arith.constant 0 : index
    %c0_7 = arith.constant 0 : index
    %7 = vector.load %arg2[%c1_5, %c0_6, %c0_7] : memref<3x144x256xbf16, #tpu.memory_space<vmem>>, vector<1x144x256xbf16>
    %8 = vector.shape_cast %7 : vector<1x144x256xbf16> to vector<144x256xbf16>
    %cst_8 = arith.constant dense<0.000000e+00> : vector<36x256xf32>
    %9 = tpu.matmul %6, %8, %cst_8 {dimension_numbers = #tpu.dot_dimension_numbers<[1], [0], [0], [1], [0, 0, 1, 1], [], []>} : vector<36x144xbf16>, vector<144x256xbf16>, vector<36x256xf32> -> vector<36x256xf32>
    %10 = arith.addf %4, %9 : vector<36x256xf32>
    %c2 = arith.constant 2 : index
    %c0_9 = arith.constant 0 : index
    %11 = vector.load %arg1[%c2, %c0_9] : memref<38x144xf32, #tpu.memory_space<vmem>>, vector<36x144xf32>
    %12 = arith.truncf %11 : vector<36x144xf32> to vector<36x144xbf16>
    %c2_10 = arith.constant 2 : index
    %c0_11 = arith.constant 0 : index
    %c0_12 = arith.constant 0 : index
    %13 = vector.load %arg2[%c2_10, %c0_11, %c0_12] : memref<3x144x256xbf16, #tpu.memory_space<vmem>>, vector<1x144x256xbf16>
    %14 = vector.shape_cast %13 : vector<1x144x256xbf16> to vector<144x256xbf16>
    %cst_13 = arith.constant dense<0.000000e+00> : vector<36x256xf32>
    %15 = tpu.matmul %12, %14, %cst_13 {dimension_numbers = #tpu.dot_dimension_numbers<[1], [0], [0], [1], [0, 0, 1, 1], [], []>} : vector<36x144xbf16>, vector<144x256xbf16>, vector<36x256xf32> -> vector<36x256xf32>
    %16 = arith.addf %10, %15 : vector<36x256xf32>
    %c0_14 = arith.constant 0 : index
    %c0_15 = arith.constant 0 : index
    %17 = vector.load %arg3[%c0_14, %c0_15] : memref<1x256xf32, #tpu.memory_space<vmem>>, vector<1x256xf32>
    %18 = vector.broadcast %17 : vector<1x256xf32> to vector<36x256xf32>
    %19 = arith.addf %16, %18 : vector<36x256xf32>
    %cst_16 = arith.constant 0.000000e+00 : f32
    %20 = vector.broadcast %cst_16 : f32 to vector<36x256xf32>
    %21 = arith.maximumf %19, %20 : vector<36x256xf32>
    %c0_17 = arith.constant 0 : index
    %c0_18 = arith.constant 0 : index
    %22 = vector.load %arg6[%c0_17, %c0_18] : memref<36x256xf32, #tpu.memory_space<vmem>>, vector<36x256xf32>
    tpu.vector_store %arg6[%c0_17, %c0_18], %21 {strides = array<i32>} : memref<36x256xf32, #tpu.memory_space<vmem>>, vector<36x256xf32>,
    %23 = arith.truncf %21 : vector<36x256xf32> to vector<36x256xbf16>
    %c0_19 = arith.constant 0 : index
    %c0_20 = arith.constant 0 : index
    %24 = vector.load %arg4[%c0_19, %c0_20] : memref<256x80xbf16, #tpu.memory_space<vmem>>, vector<256x80xbf16>
    %cst_21 = arith.constant dense<0.000000e+00> : vector<36x80xf32>
    %25 = tpu.matmul %23, %24, %cst_21 {dimension_numbers = #tpu.dot_dimension_numbers<[1], [0], [0], [1], [0, 0, 1, 1], [], []>} : vector<36x256xbf16>, vector<256x80xbf16>, vector<36x80xf32> -> vector<36x80xf32>
    %c0_22 = arith.constant 0 : index
    %c0_23 = arith.constant 0 : index
    %26 = vector.load %arg5[%c0_22, %c0_23] : memref<1x80xf32, #tpu.memory_space<vmem>>, vector<1x80xf32>
    %27 = vector.broadcast %26 : vector<1x80xf32> to vector<36x80xf32>
    %28 = arith.addf %25, %27 : vector<36x80xf32>
    %c0_24 = arith.constant 0 : index
    %c0_25 = arith.constant 0 : index
    %29 = vector.load %arg7[%c0_24, %c0_25] : memref<36x80xf32, #tpu.memory_space<vmem>>, vector<36x80xf32>
    tpu.vector_store %arg7[%c0_24, %c0_25], %28 {strides = array<i32>} : memref<36x80xf32, #tpu.memory_space<vmem>>, vector<36x80xf32>,
    return
  }
  func.func @transform_0(%arg0: i32) -> (i32, i32) {
    %c0_i32 = arith.constant 0 : i32
    %c0_i32_0 = arith.constant 0 : i32
    %c0_i32_1 = arith.constant 0 : i32
    return %c0_i32, %c0_i32_0 : i32, i32
  }
  func.func @transform_1(%arg0: i32) -> (i32, i32, i32) {
    %c0_i32 = arith.constant 0 : i32
    %c0_i32_0 = arith.constant 0 : i32
    %c0_i32_1 = arith.constant 0 : i32
    %c0_i32_2 = arith.constant 0 : i32
    return %c0_i32, %c0_i32_0, %c0_i32_1 : i32, i32, i32
  }
  func.func @transform_2(%arg0: i32) -> (i32, i32) {
    %c0_i32 = arith.constant 0 : i32
    %c0_i32_0 = arith.constant 0 : i32
    %c0_i32_1 = arith.constant 0 : i32
    return %c0_i32, %c0_i32_0 : i32, i32
  }
  func.func @transform_3(%arg0: i32) -> (i32, i32) {
    %c0_i32 = arith.constant 0 : i32
    %c0_i32_0 = arith.constant 0 : i32
    %c0_i32_1 = arith.constant 0 : i32
    return %c0_i32, %c0_i32_0 : i32, i32
  }
  func.func @transform_4(%arg0: i32) -> (i32, i32) {
    %c0_i32 = arith.constant 0 : i32
    %c0_i32_0 = arith.constant 0 : i32
    %c0_i32_1 = arith.constant 0 : i32
    return %c0_i32, %c0_i32_0 : i32, i32
  }
  func.func @transform_5(%arg0: i32) -> (i32, i32) {
    %c0_i32 = arith.constant 0 : i32
    %c0_i32_0 = arith.constant 0 : i32
    %c0_i32_1 = arith.constant 0 : i32
    return %c0_i32, %c0_i32_0 : i32, i32
  }
  func.func @transform_6(%arg0: i32) -> (i32, i32) {
    %c0_i32 = arith.constant 0 : i32
    %c0_i32_0 = arith.constant 0 : i32
    %c0_i32_1 = arith.constant 0 : i32
    return %c0_i32, %c0_i32_0 : i32, i32
  }
}

</mosaic_0001>

<llo_original>
// kernel: model_builder_forward.4
$region0: #{model_builder_forward.4}
  #allocation0 [shape = 'u32[]', space=smem, size = 0x4, offset = 0x4, fixed_abs, tag = 'smem constant byte address 0x4 - core index']
  #allocation1 [shape = 'u32[72,128]{1,0:T(1,128)}', space=vmem, size = 0x9000, scoped, tag = 'internal scratch']
  %s0 = inlined_call_operand.vmem [shape: f32[38,72], index: 0, kind: input, shape index: {}]
  %s1 = inlined_call_operand.hbm [shape: bf16[3,72,128], index: 1, kind: input, shape index: {}]
  %s2 = inlined_call_operand.hbm [shape: f32[1,128], index: 2, kind: input, shape index: {}]
  %s3 = inlined_call_operand.vmem [shape: f32[36,128], index: 3, kind: output, shape index: {}]
  %s4 = sld [smem:[#allocation0]]
  $region30: #{model_builder_forward.4} parent=0
    _
  %s6 = ssub.s32 1, %s4
  %s7 = scalar_select 0, %s6, %s4
  $region1: #{model_builder_forward.4} parent=0
    #allocation2 [shape = 'u8[55296]{0}', space=vmem, size = 0xd800, scoped, tag = 'input window, operand 1, single buffered']
    #allocation3 [shape = 's32[1]{0}', space=sflag, size = 0x4, scoped, tag = 'scoped memory for model_builder_forward.4']
    #allocation4 [shape = 'u8[512]{0}', space=vmem, size = 0x400, scoped, tag = 'input window, operand 2, single buffered']
    #allocation5 [shape = 's32[1]{0}', space=sflag, size = 0x4, scoped, tag = 'scoped memory for model_builder_forward.4']
    %8 = vsyncpa [#allocation3], 0
    %9 = vsyncpa [#allocation5], 0
    // Predicated region
    $region2: #{model_builder_forward.4} parent=1 // pred_check
      _
    $region3: #{model_builder_forward.4} parent=1 // pred_check_branch
      %11 = sbr.rel (0) target = $region5
    $region4: #{model_builder_forward.4} parent=1 // pred_region
      _
    $region5: #{model_builder_forward.4} parent=1 // pred_fallthru
      _
    // Predicated region
    $region6: #{model_builder_forward.4} parent=1 // pred_check
      _
    $region7: #{model_builder_forward.4} parent=1 // pred_check_branch
      %13 = sbr.rel (0) target = $region9
    $region8: #{model_builder_forward.4} parent=1 // pred_region
      %15 = vsyncadd [#allocation3], 0
      %s16 = sshll.u32 %s1, 4
      %s17 = int_to_ptr.hbm [resolvable:$true] %s16
      %s18 = sshll.u32 [#allocation2], 4
      %s19 = int_to_ptr.vmem [resolvable:$true] %s18
      %24 = dma.hbm_to_vmem [thread:$0]  %s17, 1728, %s19, [#allocation3], 64, 64, 4
    $region9: #{model_builder_forward.4} parent=1 // pred_fallthru
      _
    // Predicated region
    $region10: #{model_builder_forward.4} parent=1 // pred_check
      _
    $region11: #{model_builder_forward.4} parent=1 // pred_check_branch
      %26 = sbr.rel (0) target = $region13
    $region12: #{model_builder_forward.4} parent=1 // pred_region
      %28 = vsyncadd [#allocation5], 0
      %s30 = sshll.u32 %s2, 4
      %s31 = int_to_ptr.hbm [resolvable:$true] %s30
      %s32 = sshll.u32 [#allocation4], 4
      %s33 = int_to_ptr.vmem [resolvable:$true] %s32
      %35 = dma.hbm_to_vmem [thread:$0]  %s31, 16, %s33, [#allocation5]
    $region13: #{model_builder_forward.4} parent=1 // pred_fallthru
      _
    // Predicated region
    $region14: #{model_builder_forward.4} parent=1 // pred_check
      _
    $region15: #{model_builder_forward.4} parent=1 // pred_check_branch
      %37 = sbr.rel (0) target = $region17
    $region16: #{model_builder_forward.4} parent=1 // pred_region
      %39 = dma.done [#allocation3], 1728
    $region17: #{model_builder_forward.4} parent=1 // pred_fallthru
      _
    // Predicated region
    $region18: #{model_builder_forward.4} parent=1 // pred_check
      _
    $region19: #{model_builder_forward.4} parent=1 // pred_check_branch
      %41 = sbr.rel (0) target = $region21
    $region20: #{model_builder_forward.4} parent=1 // pred_region
      %43 = dma.done [#allocation5], 16
    $region21: #{model_builder_forward.4} parent=1 // pred_fallthru
      _
    %v45 = vld [vmem:[%s0] sm:$0xff]
    %v46 = vld [vmem:[%s0 + $0x8] sm:$0xff]
    %v47 = vld [vmem:[%s0 + $0x10] sm:$0xff]
    %v48 = vld [vmem:[%s0 + $0x18] sm:$0xff]
    %v49 = vld [vmem:[%s0 + $0x20] sm:$0xf]
    %v50 = vpack.c.bf16 %v46, %v45
    %v51 = vpack.c.bf16 %v48, %v47
    %v52 = vpack.c.bf16 %v49, %v49
    %v53 = vld [vmem:[#allocation2] sm:$0xf]
    %v54 = vld [vmem:[#allocation2 + $0x4] sm:$0xf]
    %v55 = vld [vmem:[#allocation2 + $0x8] sm:$0xf]
    %v56 = vld [vmem:[#allocation2 + $0xc] sm:$0xf]
    %v57 = vld [vmem:[#allocation2 + $0x10] sm:$0xf]
    %v58 = vld [vmem:[#allocation2 + $0x14] sm:$0xf]
    %v59 = vld [vmem:[#allocation2 + $0x18] sm:$0xf]
    %v60 = vld [vmem:[#allocation2 + $0x1c] sm:$0xf]
    %v61 = vld [vmem:[#allocation2 + $0x20] sm:$0xf]
    %v62 = vld [vmem:[%s0 + $0x1] sm:$0xff]
    %v63 = vld [vmem:[%s0 + $0x9] sm:$0xff]
    %v64 = vld [vmem:[%s0 + $0x11] sm:$0xff]
    %v65 = vld [vmem:[%s0 + $0x19] sm:$0xff]
    %v66 = vld [vmem:[%s0 + $0x21] sm:$0xf]
    %v67 = vpack.c.bf16 %v63, %v62
    %v68 = vpack.c.bf16 %v65, %v64
    %v69 = vpack.c.bf16 %v66, %v66
    %s70 = scalar_lea.vmem [#allocation2], 36
    %v71 = vld [vmem:[%s70] sm:$0xf]
    %v72 = vld [vmem:[%s70 + $0x4] sm:$0xf]
    %v73 = vld [vmem:[%s70 + $0x8] sm:$0xf]
    %v74 = vld [vmem:[%s70 + $0xc] sm:$0xf]
    %v75 = vld [vmem:[%s70 + $0x10] sm:$0xf]
    %v76 = vld [vmem:[%s70 + $0x14] sm:$0xf]
    %v77 = vld [vmem:[%s70 + $0x18] sm:$0xf]
    %v78 = vld [vmem:[%s70 + $0x1c] sm:$0xf]
    %v79 = vld [vmem:[%s70 + $0x20] sm:$0xf]
    %v89 = vunpack.c.l.b16 %v71
    %v90 = vunpack.c.l.b16 %v72
    %v91 = vunpack.c.l.b16 %v73
    %v92 = vunpack.c.l.b16 %v74
    %v93 = vunpack.c.l.b16 %v75
    %v94 = vunpack.c.l.b16 %v76
    %v95 = vunpack.c.l.b16 %v77
    %v96 = vunpack.c.l.b16 %v78
    %v97 = vunpack.c.l.b16 %v79
    %v98 = vpack.c.b16 %v90, %v89
    %v99 = vpack.c.b16 %v92, %v91
    %v100 = vpack.c.b16 %v94, %v93
    %v101 = vpack.c.b16 %v96, %v95
    %v102 = vpack.c.b16 %v97, %v97
    %vm107 = vcmask 588800
    %v109 = vsel %vm107, %v67, 0
    %v112 = vsel %vm107, %v68, 0
    %v115 = vsel %vm107, %v69, 0
    %vm117 = vcmask 1043456
    %v119 = vsel %vm117, %v102, 0
    %121 = vmatpush.bf16.msra.mxu0 0
    %122 = vmatpush.bf16.msra.mxu0 0
    %123 = vmatpush.bf16.msra.mxu0 0
    %124 = vmatpush.bf16.msra.mxu0 %v119
    %125 = vmatpush.bf16.msra.mxu0 %v101
    %126 = vmatpush.bf16.msra.mxu0 %v100
    %127 = vmatpush.bf16.msra.mxu0 %v99
    %128 = vmatpush.bf16.msra.mxu0 %v98
    %129 = vmatmul.bf16.gmra.mxu0 %v109
    %v130 = vpop.f32.mrf.mxu0
    %v131 = vadd.f32 0.0, %v130
    %v132 = vpop.f32.mrf.mxu0
    %v133 = vadd.f32 0.0, %v132
    %134 = vmatmul.bf16.gmra.mxu0 %v112
    %v135 = vpop.f32.mrf.mxu0
    %v136 = vadd.f32 0.0, %v135
    %v137 = vpop.f32.mrf.mxu0
    %v138 = vadd.f32 0.0, %v137
    %139 = vmatmul.bf16.gmra.mxu0 %v115
    %v140 = vpop.f32.mrf.mxu0
    %v141 = vadd.f32 0.0, %v140
    %v142 = vpop.f32.mrf.mxu0
    %143 = vdwg.mxu0
    %v153 = vunpack.c.l.b16 %v53
    %v154 = vunpack.c.l.b16 %v54
    %v155 = vunpack.c.l.b16 %v55
    %v156 = vunpack.c.l.b16 %v56
    %v157 = vunpack.c.l.b16 %v57
    %v158 = vunpack.c.l.b16 %v58
    %v159 = vunpack.c.l.b16 %v59
    %v160 = vunpack.c.l.b16 %v60
    %v161 = vunpack.c.l.b16 %v61
    %v162 = vpack.c.b16 %v154, %v153
    %v163 = vpack.c.b16 %v156, %v155
    %v164 = vpack.c.b16 %v158, %v157
    %v165 = vpack.c.b16 %v160, %v159
    %v166 = vpack.c.b16 %v161, %v161
    %v172 = vsel %vm107, %v50, 0
    %v175 = vsel %vm107, %v51, 0
    %v178 = vsel %vm107, %v52, 0
    %v181 = vsel %vm117, %v166, 0
    %183 = vmatpush.bf16.msra.mxu0 0
    %184 = vmatpush.bf16.msra.mxu0 0
    %185 = vmatpush.bf16.msra.mxu0 0
    %186 = vmatpush.bf16.msra.mxu0 %v181
    %187 = vmatpush.bf16.msra.mxu0 %v165
    %188 = vmatpush.bf16.msra.mxu0 %v164
    %189 = vmatpush.bf16.msra.mxu0 %v163
    %190 = vmatpush.bf16.msra.mxu0 %v162
    %191 = vmatmul.bf16.gmra.mxu0 %v172
    %v192 = vpop.f32.mrf.mxu0
    %v193 = vadd.f32 %v131, %v192
    %v194 = vpop.f32.mrf.mxu0
    %v195 = vadd.f32 %v133, %v194
    %196 = vmatmul.bf16.gmra.mxu0 %v175
    %v197 = vpop.f32.mrf.mxu0
    %v198 = vadd.f32 %v136, %v197
    %v199 = vpop.f32.mrf.mxu0
    %v200 = vadd.f32 %v138, %v199
    %201 = vmatmul.bf16.gmra.mxu0 %v178
    %v202 = vpop.f32.mrf.mxu0
    %v203 = vadd.f32 %v141, %v202
    %v204 = vpop.f32.mrf.mxu0
    %205 = vdwg.mxu0
    %v206 = vld [vmem:[%s0 + $0x2] sm:$0xff]
    %v207 = vld [vmem:[%s0 + $0xa] sm:$0xff]
    %v208 = vld [vmem:[%s0 + $0x12] sm:$0xff]
    %v209 = vld [vmem:[%s0 + $0x1a] sm:$0xff]
    %v210 = vld [vmem:[%s0 + $0x22] sm:$0xf]
    %v211 = vpack.c.bf16 %v207, %v206
    %v212 = vpack.c.bf16 %v209, %v208
    %v213 = vpack.c.bf16 %v210, %v210
    %s214 = scalar_lea.vmem [#allocation2], 72
    %v215 = vld [vmem:[%s214] sm:$0xf]
    %v216 = vld [vmem:[%s214 + $0x4] sm:$0xf]
    %v217 = vld [vmem:[%s214 + $0x8] sm:$0xf]
    %v218 = vld [vmem:[%s214 + $0xc] sm:$0xf]
    %v219 = vld [vmem:[%s214 + $0x10] sm:$0xf]
    %v220 = vld [vmem:[%s214 + $0x14] sm:$0xf]
    %v221 = vld [vmem:[%s214 + $0x18] sm:$0xf]
    %v222 = vld [vmem:[%s214 + $0x1c] sm:$0xf]
    %v223 = vld [vmem:[%s214 + $0x20] sm:$0xf]
    %v233 = vunpack.c.l.b16 %v215
    %v234 = vunpack.c.l.b16 %v216
    %v235 = vunpack.c.l.b16 %v217
    %v236 = vunpack.c.l.b16 %v218
    %v237 = vunpack.c.l.b16 %v219
    %v238 = vunpack.c.l.b16 %v220
    %v239 = vunpack.c.l.b16 %v221
    %v240 = vunpack.c.l.b16 %v222
    %v241 = vunpack.c.l.b16 %v223
    %v242 = vpack.c.b16 %v234, %v233
    %v243 = vpack.c.b16 %v236, %v235
    %v244 = vpack.c.b16 %v238, %v237
    %v245 = vpack.c.b16 %v240, %v239
    %v246 = vpack.c.b16 %v241, %v241
    %v252 = vsel %vm107, %v211, 0
    %v255 = vsel %vm107, %v212, 0
    %v258 = vsel %vm107, %v213, 0
    %v261 = vsel %vm117, %v246, 0
    %263 = vmatpush.bf16.msra.mxu0 0
    %264 = vmatpush.bf16.msra.mxu0 0
    %265 = vmatpush.bf16.msra.mxu0 0
    %266 = vmatpush.bf16.msra.mxu0 %v261
    %267 = vmatpush.bf16.msra.mxu0 %v245
    %268 = vmatpush.bf16.msra.mxu0 %v244
    %269 = vmatpush.bf16.msra.mxu0 %v243
    %270 = vmatpush.bf16.msra.mxu0 %v242
    %271 = vmatmul.bf16.gmra.mxu0 %v252
    %v272 = vpop.f32.mrf.mxu0
    %v273 = vadd.f32 0.0, %v272
    %v274 = vpop.f32.mrf.mxu0
    %v275 = vadd.f32 0.0, %v274
    %276 = vmatmul.bf16.gmra.mxu0 %v255
    %v277 = vpop.f32.mrf.mxu0
    %v278 = vadd.f32 0.0, %v277
    %v279 = vpop.f32.mrf.mxu0
    %v280 = vadd.f32 0.0, %v279
    %281 = vmatmul.bf16.gmra.mxu0 %v258
    %v282 = vpop.f32.mrf.mxu0
    %v283 = vadd.f32 0.0, %v282
    %v284 = vpop.f32.mrf.mxu0
    %285 = vdwg.mxu0
    %v286 = vadd.f32 %v193, %v273
    %v287 = vadd.f32 %v195, %v275
    %v288 = vadd.f32 %v198, %v278
    %v289 = vadd.f32 %v200, %v280
    %v290 = vadd.f32 %v203, %v283
    %v291 = vld [vmem:[#allocation4] sm:$0x1]
    %v293 = vperm.slane %v291, 0
    %v295 = vadd.f32 %v286, %v293
    %v296 = vadd.f32 %v287, %v293
    %v297 = vadd.f32 %v288, %v293
    %v298 = vadd.f32 %v289, %v293
    %v299 = vadd.f32 %v290, %v293
    %v300 = vmax.f32 %v295, 0.0
    %v301 = vmax.f32 %v296, 0.0
    %v302 = vmax.f32 %v297, 0.0
    %v303 = vmax.f32 %v298, 0.0
    %v304 = vmax.f32 %v299, 0.0
    %305 = vst [vmem:[%s3] sm:$0xff] %v300
    %306 = vst [vmem:[%s3 + $0x8] sm:$0xff] %v301
    %307 = vst [vmem:[%s3 + $0x10] sm:$0xff] %v302
    %308 = vst [vmem:[%s3 + $0x18] sm:$0xff] %v303
    %309 = vst [vmem:[%s3 + $0x20] sm:$0xf] %v304
    // Predicated region
    $region22: #{model_builder_forward.4} parent=1 // pred_check
      _
    $region23: #{model_builder_forward.4} parent=1 // pred_check_branch
      %311 = sbr.rel (0) target = $region25
    $region24: #{model_builder_forward.4} parent=1 // pred_region
      _
    $region25: #{model_builder_forward.4} parent=1 // pred_fallthru
      _
    // Predicated region
    $region26: #{model_builder_forward.4} parent=1 // pred_check
      _
    $region27: #{model_builder_forward.4} parent=1 // pred_check_branch
      %313 = sbr.rel (0) target = $region29
    $region28: #{model_builder_forward.4} parent=1 // pred_region
      _
    $region29: #{model_builder_forward.4} parent=1 // pred_fallthru
      _
    %314 = vsyncpa [#allocation3], 1
    %315 = vsyncpa [#allocation5], 1

// kernel: model_builder_forward.5
$region0: #{model_builder_forward.5}
  #allocation0 [shape = 'u32[]', space=smem, size = 0x4, offset = 0x4, fixed_abs, tag = 'smem constant byte address 0x4 - core index']
  #allocation1 [shape = 'u32[72,128]{1,0:T(1,128)}', space=vmem, size = 0x9000, scoped, tag = 'internal scratch']
  %s0 = inlined_call_operand.vmem [shape: f32[38,144], index: 0, kind: input, shape index: {}]
  %s1 = inlined_call_operand.vmem [shape: bf16[3,144,128], index: 1, kind: input, shape index: {}]
  %s2 = inlined_call_operand.vmem [shape: f32[1,128], index: 2, kind: input, shape index: {}]
  %s3 = inlined_call_operand.vmem [shape: f32[36,128], index: 3, kind: output, shape index: {}]
  %s4 = sld [smem:[#allocation0]]
  $region22: #{model_builder_forward.5} parent=0
    _
  %s6 = ssub.s32 1, %s4
  %s7 = scalar_select 0, %s6, %s4
  // Predicated region
  $region2: #{model_builder_forward.5} parent=0 // pred_check
    _
  $region3: #{model_builder_forward.5} parent=0 // pred_check_branch
    %9 = sbr.rel (0) target = $region5
  $region4: #{model_builder_forward.5} parent=0 // pred_region
    _
  $region5: #{model_builder_forward.5} parent=0 // pred_fallthru
    _
  // Predicated region
  $region6: #{model_builder_forward.5} parent=0 // pred_check
    _
  $region7: #{model_builder_forward.5} parent=0 // pred_check_branch
    %11 = sbr.rel (0) target = $region9
  $region8: #{model_builder_forward.5} parent=0 // pred_region
    _
  $region9: #{model_builder_forward.5} parent=0 // pred_fallthru
    _
  // Predicated region
  $region10: #{model_builder_forward.5} parent=0 // pred_check
    _
  $region11: #{model_builder_forward.5} parent=0 // pred_check_branch
    %13 = sbr.rel (0) target = $region13
  $region12: #{model_builder_forward.5} parent=0 // pred_region
    _
  $region13: #{model_builder_forward.5} parent=0 // pred_fallthru
    _
  %v15 = vld [vmem:[%s0] sm:$0xff]
  %v16 = vld [vmem:[%s0 + $0x8] sm:$0xff]
  %v17 = vld [vmem:[%s0 + $0x10] sm:$0xff]
  %v18 = vld [vmem:[%s0 + $0x18] sm:$0xff]
  %v19 = vld [vmem:[%s0 + $0x20] sm:$0xff]
  %v20 = vld [vmem:[%s0 + $0x28] sm:$0xff]
  %v21 = vld [vmem:[%s0 + $0x30] sm:$0xff]
  %v22 = vld [vmem:[%s0 + $0x38] sm:$0xff]
  %v23 = vld [vmem:[%s0 + $0x40] sm:$0xf]
  %v24 = vld [vmem:[%s0 + $0x48] sm:$0xf]
  %v25 = vpack.c.bf16 %v17, %v15
  %v26 = vpack.c.bf16 %v18, %v16
  %v27 = vpack.c.bf16 %v21, %v19
  %v28 = vpack.c.bf16 %v22, %v20
  %v29 = vpack.c.bf16 %v23, %v23
  %v30 = vpack.c.bf16 %v24, %v24
  %v31 = vld [vmem:[%s1] sm:$0xf]
  %v32 = vld [vmem:[%s1 + $0x4] sm:$0xf]
  %v33 = vld [vmem:[%s1 + $0x8] sm:$0xf]
  %v34 = vld [vmem:[%s1 + $0xc] sm:$0xf]
  %v35 = vld [vmem:[%s1 + $0x10] sm:$0xf]
  %v36 = vld [vmem:[%s1 + $0x14] sm:$0xf]
  %v37 = vld [vmem:[%s1 + $0x18] sm:$0xf]
  %v38 = vld [vmem:[%s1 + $0x1c] sm:$0xf]
  %v39 = vld [vmem:[%s1 + $0x20] sm:$0xf]
  %v40 = vld [vmem:[%s1 + $0x24] sm:$0xf]
  %v41 = vld [vmem:[%s1 + $0x28] sm:$0xf]
  %v42 = vld [vmem:[%s1 + $0x2c] sm:$0xf]
  %v43 = vld [vmem:[%s1 + $0x30] sm:$0xf]
  %v44 = vld [vmem:[%s1 + $0x34] sm:$0xf]
  %v45 = vld [vmem:[%s1 + $0x38] sm:$0xf]
  %v46 = vld [vmem:[%s1 + $0x3c] sm:$0xf]
  %v47 = vld [vmem:[%s1 + $0x40] sm:$0xf]
  %v48 = vld [vmem:[%s1 + $0x44] sm:$0xf]
  %v49 = vld [vmem:[%s0] sm:$0xfe]
  %v50 = vld [vmem:[%s0 + $0x8] sm:$0xfe]
  %v51 = vld [vmem:[%s0 + $0x40] sm:$0x1f]
  %v52 = vld [vmem:[%s0 + $0x48] sm:$0x1f]
  %v53 = vpack.c.bf16 %v17, %v49
  %v54 = vpack.c.bf16 %v18, %v50
  %v55 = vpack.c.bf16 %v51, %v51
  %v56 = vpack.c.bf16 %v52, %v52
  %s57 = scalar_lea.vmem %s1, 72
  %v58 = vld [vmem:[%s57] sm:$0xf]
  %v59 = vld [vmem:[%s57 + $0x4] sm:$0xf]
  %v60 = vld [vmem:[%s57 + $0x8] sm:$0xf]
  %v61 = vld [vmem:[%s57 + $0xc] sm:$0xf]
  %v62 = vld [vmem:[%s57 + $0x10] sm:$0xf]
  %v63 = vld [vmem:[%s57 + $0x14] sm:$0xf]
  %v64 = vld [vmem:[%s57 + $0x18] sm:$0xf]
  %v65 = vld [vmem:[%s57 + $0x1c] sm:$0xf]
  %v66 = vld [vmem:[%s57 + $0x20] sm:$0xf]
  %v67 = vld [vmem:[%s57 + $0x24] sm:$0xf]
  %v68 = vld [vmem:[%s57 + $0x28] sm:$0xf]
  %v69 = vld [vmem:[%s57 + $0x2c] sm:$0xf]
  %v70 = vld [vmem:[%s57 + $0x30] sm:$0xf]
  %v71 = vld [vmem:[%s57 + $0x34] sm:$0xf]
  %v72 = vld [vmem:[%s57 + $0x38] sm:$0xf]
  %v73 = vld [vmem:[%s57 + $0x3c] sm:$0xf]
  %v74 = vld [vmem:[%s57 + $0x40] sm:$0xf]
  %v75 = vld [vmem:[%s57 + $0x44] sm:$0xf]
  %vm76 = vsmask.f32 7424
  %v78 = vshrl.u32 %v53, 16
  %v80 = vshll.u32 %v53, 16
  %v82 = vrot.slane %v80, 1
  %v83 = vor.u32 %v78, %v82
  %v85 = vshll.u32 %v27, 16
  %v87 = vrot.slane %v85, 1
  %v88 = vsel %vm76, %v83, %v87
  %v90 = vshrl.u32 %v54, 16
  %v92 = vshll.u32 %v54, 16
  %v94 = vrot.slane %v92, 1
  %v95 = vor.u32 %v90, %v94
  %v97 = vshll.u32 %v28, 16
  %v99 = vrot.slane %v97, 1
  %v100 = vsel %vm76, %v95, %v99
  %v101 = vshrl.u32 %v27, 16
  %v103 = vor.u32 %v101, %v87
  %v105 = vshll.u32 %v55, 16
  %v107 = vrot.slane %v105, 1
  %v108 = vsel %vm76, %v103, %v107
  %v109 = vshrl.u32 %v28, 16
  %v111 = vor.u32 %v109, %v99
  %v113 = vshll.u32 %v56, 16
  %v115 = vrot.slane %v113, 1
  %v116 = vsel %vm76, %v111, %v115
  %v117 = vshrl.u32 %v55, 16
  %v119 = vor.u32 %v117, %v107
  %v120 = vshrl.u32 %v56, 16
  %v122 = vor.u32 %v120, %v115
  %v144 = vunpack.c.l.b16 %v58
  %v145 = vunpack.c.l.b16 %v59
  %v146 = vunpack.c.l.b16 %v60
  %v147 = vunpack.c.l.b16 %v61
  %v148 = vunpack.c.l.b16 %v62
  %v149 = vunpack.c.l.b16 %v63
  %v150 = vunpack.c.l.b16 %v64
  %v151 = vunpack.c.l.b16 %v65
  %v152 = vunpack.c.l.b16 %v66
  %v153 = vunpack.c.l.b16 %v67
  %v154 = vunpack.c.l.b16 %v68
  %v155 = vunpack.c.l.b16 %v69
  %v156 = vunpack.c.l.b16 %v70
  %v157 = vunpack.c.l.b16 %v71
  %v158 = vunpack.c.l.b16 %v72
  %v159 = vunpack.c.l.b16 %v73
  %v160 = vunpack.c.l.b16 %v74
  %v161 = vunpack.c.l.b16 %v75
  %v162 = vpack.c.b16 %v145, %v144
  %v163 = vpack.c.b16 %v147, %v146
  %v164 = vpack.c.b16 %v149, %v148
  %v165 = vpack.c.b16 %v151, %v150
  %v166 = vpack.c.b16 %v153, %v152
  %v167 = vpack.c.b16 %v155, %v154
  %v168 = vpack.c.b16 %v157, %v156
  %v169 = vpack.c.b16 %v159, %v158
  %v170 = vpack.c.b16 %v161, %v160
  %vm180 = vcmask 130048
  %v182 = vsel %vm180, %v100, 0
  %v185 = vsel %vm180, %v116, 0
  %v188 = vsel %vm180, %v122, 0
  %190 = vmatpush.bf16.msra.mxu0 %v169
  %191 = vmatpush.bf16.msra.mxu0 %v168
  %192 = vmatpush.bf16.msra.mxu0 %v167
  %193 = vmatpush.bf16.msra.mxu0 %v166
  %194 = vmatpush.bf16.msra.mxu0 %v165
  %195 = vmatpush.bf16.msra.mxu0 %v164
  %196 = vmatpush.bf16.msra.mxu0 %v163
  %197 = vmatpush.bf16.msra.mxu0 %v162
  %198 = vmatmul.bf16.gmra.mxu0 %v88
  %v199 = vpop.f32.mrf.mxu0
  %v200 = vadd.f32 0.0, %v199
  %v201 = vpop.f32.mrf.mxu0
  %v202 = vadd.f32 0.0, %v201
  %203 = vmatmul.bf16.gmra.mxu0 %v108
  %v204 = vpop.f32.mrf.mxu0
  %v205 = vadd.f32 0.0, %v204
  %v206 = vpop.f32.mrf.mxu0
  %v207 = vadd.f32 0.0, %v206
  %208 = vmatmul.bf16.gmra.mxu0 %v119
  %v209 = vpop.f32.mrf.mxu0
  %v210 = vadd.f32 0.0, %v209
  %v211 = vpop.f32.mrf.mxu0
  %212 = vdwg.mxu0
  %213 = vmatpush.bf16.msra.mxu0 0
  %214 = vmatpush.bf16.msra.mxu0 0
  %215 = vmatpush.bf16.msra.mxu0 0
  %216 = vmatpush.bf16.msra.mxu0 0
  %217 = vmatpush.bf16.msra.mxu0 0
  %218 = vmatpush.bf16.msra.mxu0 0
  %219 = vmatpush.bf16.msra.mxu0 0
  %220 = vmatpush.bf16.msra.mxu0 %v170
  %221 = vmatmul.bf16.gmra.mxu0 %v182
  %v222 = vpop.f32.mrf.mxu0
  %v223 = vadd.f32 %v200, %v222
  %v224 = vpop.f32.mrf.mxu0
  %v225 = vadd.f32 %v202, %v224
  %226 = vmatmul.bf16.gmra.mxu0 %v185
  %v227 = vpop.f32.mrf.mxu0
  %v228 = vadd.f32 %v205, %v227
  %v229 = vpop.f32.mrf.mxu0
  %v230 = vadd.f32 %v207, %v229
  %231 = vmatmul.bf16.gmra.mxu0 %v188
  %v232 = vpop.f32.mrf.mxu0
  %v233 = vadd.f32 %v210, %v232
  %v234 = vpop.f32.mrf.mxu0
  %235 = vdwg.mxu0
  %v254 = vunpack.c.l.b16 %v31
  %v255 = vunpack.c.l.b16 %v32
  %v256 = vunpack.c.l.b16 %v33
  %v257 = vunpack.c.l.b16 %v34
  %v258 = vunpack.c.l.b16 %v35
  %v259 = vunpack.c.l.b16 %v36
  %v260 = vunpack.c.l.b16 %v37
  %v261 = vunpack.c.l.b16 %v38
  %v262 = vunpack.c.l.b16 %v39
  %v263 = vunpack.c.l.b16 %v40
  %v264 = vunpack.c.l.b16 %v41
  %v265 = vunpack.c.l.b16 %v42
  %v266 = vunpack.c.l.b16 %v43
  %v267 = vunpack.c.l.b16 %v44
  %v268 = vunpack.c.l.b16 %v45
  %v269 = vunpack.c.l.b16 %v46
  %v270 = vunpack.c.l.b16 %v47
  %v271 = vunpack.c.l.b16 %v48
  %v272 = vpack.c.b16 %v255, %v254
  %v273 = vpack.c.b16 %v257, %v256
  %v274 = vpack.c.b16 %v259, %v258
  %v275 = vpack.c.b16 %v261, %v260
  %v276 = vpack.c.b16 %v263, %v262
  %v277 = vpack.c.b16 %v265, %v264
  %v278 = vpack.c.b16 %v267, %v266
  %v279 = vpack.c.b16 %v269, %v268
  %v280 = vpack.c.b16 %v271, %v270
  %v291 = vsel %vm180, %v26, 0
  %v293 = vsel %vm180, %v28, 0
  %v296 = vsel %vm180, %v30, 0
  %298 = vmatpush.bf16.msra.mxu0 %v279
  %299 = vmatpush.bf16.msra.mxu0 %v278
  %300 = vmatpush.bf16.msra.mxu0 %v277
  %301 = vmatpush.bf16.msra.mxu0 %v276
  %302 = vmatpush.bf16.msra.mxu0 %v275
  %303 = vmatpush.bf16.msra.mxu0 %v274
  %304 = vmatpush.bf16.msra.mxu0 %v273
  %305 = vmatpush.bf16.msra.mxu0 %v272
  %306 = vmatmul.bf16.gmra.mxu0 %v25
  %v307 = vpop.f32.mrf.mxu0
  %v308 = vadd.f32 %v223, %v307
  %v309 = vpop.f32.mrf.mxu0
  %v310 = vadd.f32 %v225, %v309
  %311 = vmatmul.bf16.gmra.mxu0 %v27
  %v312 = vpop.f32.mrf.mxu0
  %v313 = vadd.f32 %v228, %v312
  %v314 = vpop.f32.mrf.mxu0
  %v315 = vadd.f32 %v230, %v314
  %316 = vmatmul.bf16.gmra.mxu0 %v29
  %v317 = vpop.f32.mrf.mxu0
  %v318 = vadd.f32 %v233, %v317
  %v319 = vpop.f32.mrf.mxu0
  %320 = vdwg.mxu0
  %321 = vmatpush.bf16.msra.mxu0 0
  %322 = vmatpush.bf16.msra.mxu0 0
  %323 = vmatpush.bf16.msra.mxu0 0
  %324 = vmatpush.bf16.msra.mxu0 0
  %325 = vmatpush.bf16.msra.mxu0 0
  %326 = vmatpush.bf16.msra.mxu0 0
  %327 = vmatpush.bf16.msra.mxu0 0
  %328 = vmatpush.bf16.msra.mxu0 %v280
  %329 = vmatmul.bf16.gmra.mxu0 %v291
  %v330 = vpop.f32.mrf.mxu0
  %v331 = vadd.f32 %v308, %v330
  %v332 = vpop.f32.mrf.mxu0
  %v333 = vadd.f32 %v310, %v332
  %334 = vmatmul.bf16.gmra.mxu0 %v293
  %v335 = vpop.f32.mrf.mxu0
  %v336 = vadd.f32 %v313, %v335
  %v337 = vpop.f32.mrf.mxu0
  %v338 = vadd.f32 %v315, %v337
  %339 = vmatmul.bf16.gmra.mxu0 %v296
  %v340 = vpop.f32.mrf.mxu0
  %v341 = vadd.f32 %v318, %v340
  %v342 = vpop.f32.mrf.mxu0
  %343 = vdwg.mxu0
  %v344 = vld [vmem:[%s0] sm:$0xfc]
  %v345 = vld [vmem:[%s0 + $0x8] sm:$0xfc]
  %v346 = vld [vmem:[%s0 + $0x40] sm:$0x3f]
  %v347 = vld [vmem:[%s0 + $0x48] sm:$0x3f]
  %v348 = vpack.c.bf16 %v17, %v344
  %v349 = vpack.c.bf16 %v18, %v345
  %v350 = vpack.c.bf16 %v346, %v346
  %v351 = vpack.c.bf16 %v347, %v347
  %s352 = scalar_lea.vmem %s1, 144
  %v353 = vld [vmem:[%s352] sm:$0xf]
  %v354 = vld [vmem:[%s352 + $0x4] sm:$0xf]
  %v355 = vld [vmem:[%s352 + $0x8] sm:$0xf]
  %v356 = vld [vmem:[%s352 + $0xc] sm:$0xf]
  %v357 = vld [vmem:[%s352 + $0x10] sm:$0xf]
  %v358 = vld [vmem:[%s352 + $0x14] sm:$0xf]
  %v359 = vld [vmem:[%s352 + $0x18] sm:$0xf]
  %v360 = vld [vmem:[%s352 + $0x1c] sm:$0xf]
  %v361 = vld [vmem:[%s352 + $0x20] sm:$0xf]
  %v362 = vld [vmem:[%s352 + $0x24] sm:$0xf]
  %v363 = vld [vmem:[%s352 + $0x28] sm:$0xf]
  %v364 = vld [vmem:[%s352 + $0x2c] sm:$0xf]
  %v365 = vld [vmem:[%s352 + $0x30] sm:$0xf]
  %v366 = vld [vmem:[%s352 + $0x34] sm:$0xf]
  %v367 = vld [vmem:[%s352 + $0x38] sm:$0xf]
  %v368 = vld [vmem:[%s352 + $0x3c] sm:$0xf]
  %v369 = vld [vmem:[%s352 + $0x40] sm:$0xf]
  %v370 = vld [vmem:[%s352 + $0x44] sm:$0xf]
  %vm377 = vcmask 1046528
  %v378 = vrot.slane %v348, 1
  %v379 = vrot.slane %v27, 1
  %v380 = vsel %vm377, %v378, %v379
  %v381 = vrot.slane %v349, 1
  %v382 = vrot.slane %v28, 1
  %v383 = vsel %vm377, %v381, %v382
  %v384 = vrot.slane %v350, 1
  %v385 = vsel %vm377, %v379, %v384
  %v386 = vrot.slane %v351, 1
  %v387 = vsel %vm377, %v382, %v386
  %v409 = vunpack.c.l.b16 %v353
  %v410 = vunpack.c.l.b16 %v354
  %v411 = vunpack.c.l.b16 %v355
  %v412 = vunpack.c.l.b16 %v356
  %v413 = vunpack.c.l.b16 %v357
  %v414 = vunpack.c.l.b16 %v358
  %v415 = vunpack.c.l.b16 %v359
  %v416 = vunpack.c.l.b16 %v360
  %v417 = vunpack.c.l.b16 %v361
  %v418 = vunpack.c.l.b16 %v362
  %v419 = vunpack.c.l.b16 %v363
  %v420 = vunpack.c.l.b16 %v364
  %v421 = vunpack.c.l.b16 %v365
  %v422 = vunpack.c.l.b16 %v366
  %v423 = vunpack.c.l.b16 %v367
  %v424 = vunpack.c.l.b16 %v368
  %v425 = vunpack.c.l.b16 %v369
  %v426 = vunpack.c.l.b16 %v370
  %v427 = vpack.c.b16 %v410, %v409
  %v428 = vpack.c.b16 %v412, %v411
  %v429 = vpack.c.b16 %v414, %v413
  %v430 = vpack.c.b16 %v416, %v415
  %v431 = vpack.c.b16 %v418, %v417
  %v432 = vpack.c.b16 %v420, %v419
  %v433 = vpack.c.b16 %v422, %v421
  %v434 = vpack.c.b16 %v424, %v423
  %v435 = vpack.c.b16 %v426, %v425
  %v446 = vsel %vm180, %v383, 0
  %v449 = vsel %vm180, %v387, 0
  %v452 = vsel %vm180, %v386, 0
  %454 = vmatpush.bf16.msra.mxu0 %v434
  %455 = vmatpush.bf16.msra.mxu0 %v433
  %456 = vmatpush.bf16.msra.mxu0 %v432
  %457 = vmatpush.bf16.msra.mxu0 %v431
  %458 = vmatpush.bf16.msra.mxu0 %v430
  %459 = vmatpush.bf16.msra.mxu0 %v429
  %460 = vmatpush.bf16.msra.mxu0 %v428
  %461 = vmatpush.bf16.msra.mxu0 %v427
  %462 = vmatmul.bf16.gmra.mxu0 %v380
  %v463 = vpop.f32.mrf.mxu0
  %v464 = vadd.f32 0.0, %v463
  %v465 = vpop.f32.mrf.mxu0
  %v466 = vadd.f32 0.0, %v465
  %467 = vmatmul.bf16.gmra.mxu0 %v385
  %v468 = vpop.f32.mrf.mxu0
  %v469 = vadd.f32 0.0, %v468
  %v470 = vpop.f32.mrf.mxu0
  %v471 = vadd.f32 0.0, %v470
  %472 = vmatmul.bf16.gmra.mxu0 %v384
  %v473 = vpop.f32.mrf.mxu0
  %v474 = vadd.f32 0.0, %v473
  %v475 = vpop.f32.mrf.mxu0
  %476 = vdwg.mxu0
  %477 = vmatpush.bf16.msra.mxu0 0
  %478 = vmatpush.bf16.msra.mxu0 0
  %479 = vmatpush.bf16.msra.mxu0 0
  %480 = vmatpush.bf16.msra.mxu0 0
  %481 = vmatpush.bf16.msra.mxu0 0
  %482 = vmatpush.bf16.msra.mxu0 0
  %483 = vmatpush.bf16.msra.mxu0 0
  %484 = vmatpush.bf16.msra.mxu0 %v435
  %485 = vmatmul.bf16.gmra.mxu0 %v446
  %v486 = vpop.f32.mrf.mxu0
  %v487 = vadd.f32 %v464, %v486
  %v488 = vpop.f32.mrf.mxu0
  %v489 = vadd.f32 %v466, %v488
  %490 = vmatmul.bf16.gmra.mxu0 %v449
  %v491 = vpop.f32.mrf.mxu0
  %v492 = vadd.f32 %v469, %v491
  %v493 = vpop.f32.mrf.mxu0
  %v494 = vadd.f32 %v471, %v493
  %495 = vmatmul.bf16.gmra.mxu0 %v452
  %v496 = vpop.f32.mrf.mxu0
  %v497 = vadd.f32 %v474, %v496
  %v498 = vpop.f32.mrf.mxu0
  %499 = vdwg.mxu0
  %v500 = vadd.f32 %v331, %v487
  %v501 = vadd.f32 %v333, %v489
  %v502 = vadd.f32 %v336, %v492
  %v503 = vadd.f32 %v338, %v494
  %v504 = vadd.f32 %v341, %v497
  %v505 = vld [vmem:[%s2] sm:$0x1]
  %v507 = vperm.slane %v505, 0
  %v509 = vadd.f32 %v500, %v507
  %v510 = vadd.f32 %v501, %v507
  %v511 = vadd.f32 %v502, %v507
  %v512 = vadd.f32 %v503, %v507
  %v513 = vadd.f32 %v504, %v507
  %v514 = vmax.f32 %v509, 0.0
  %v515 = vmax.f32 %v510, 0.0
  %v516 = vmax.f32 %v511, 0.0
  %v517 = vmax.f32 %v512, 0.0
  %v518 = vmax.f32 %v513, 0.0
  %519 = vst [vmem:[%s3] sm:$0xff] %v514
  %520 = vst [vmem:[%s3 + $0x8] sm:$0xff] %v515
  %521 = vst [vmem:[%s3 + $0x10] sm:$0xff] %v516
  %522 = vst [vmem:[%s3 + $0x18] sm:$0xff] %v517
  %523 = vst [vmem:[%s3 + $0x20] sm:$0xf] %v518
  // Predicated region
  $region14: #{model_builder_forward.5} parent=0 // pred_check
    _
  $region15: #{model_builder_forward.5} parent=0 // pred_check_branch
    %525 = sbr.rel (0) target = $region17
  $region16: #{model_builder_forward.5} parent=0 // pred_region
    _
  $region17: #{model_builder_forward.5} parent=0 // pred_fallthru
    _
  // Predicated region
  $region18: #{model_builder_forward.5} parent=0 // pred_check
    _
  $region19: #{model_builder_forward.5} parent=0 // pred_check_branch
    %527 = sbr.rel (0) target = $region21
  $region20: #{model_builder_forward.5} parent=0 // pred_region
    _
  $region21: #{model_builder_forward.5} parent=0 // pred_fallthru
    _

// kernel: tile.8
$region0: #{tile.8}
  #allocation0 [shape = 's32[1]{0}', space=sflag, size = 0x4, scoped, tag = 'scoped memory for tile.8']
  %s0 = inlined_call_operand.vmem [shape: f32[35], index: 0, kind: input, shape index: {}]
  %s1 = inlined_call_operand.vmem [shape: f32[8,35], index: 1, kind: output, shape index: {}]
  // Predicated region
  $region2: #{tile.8} parent=0 // pred_check
    _
  $region3: #{tile.8} parent=0 // pred_check_branch
    %3 = sbr.rel (0) target = $region5
  $region4: #{tile.8} parent=0 // pred_region
    _
  $region5: #{tile.8} parent=0 // pred_fallthru
    _
  %v4 = vld [vmem:[%s0] ss:$0 sm:$0xff]
  %5 = vst [vmem:[%s1] sm:$0xff] %v4

// kernel: tile.9
$region0: #{tile.9}
  %s0 = inlined_call_operand.vmem [shape: f32[8,35], index: 0, kind: input, shape index: {}]
  %s1 = inlined_call_operand.vmem [shape: f32[1,280], index: 1, kind: output, shape index: {}]
  $region1: #{tile.9} parent=0
    #allocation0 [shape = 'u8[12288]{0}', space=vmem, size = 0x3000, scoped, tag = 'scoped mem for output reshape']
    %v2 = vld [vmem:[%s0] sm:$0x1]
    %vm3 = vcmask 285696
    %4 = vst.msk [vmem:[#allocation0] sm:$0x1] %vm3, %v2
    %s5 = scalar_lea.vmem %s0, 7
    %v6 = vld [vmem:[%s5] sm:$0x1]
    %s7 = scalar_lea.vmem %s0, 7
    %v8 = vld [vmem:[%s7] sm:$0x1]
    %vm9 = vcmask 89088
    %v10 = vsel %vm9, %v8, %v6
    %11 = vrot.lane.b32.xlu0 %v10, 117
    %v12 = vpop.permute.xlu0 %11
    %vm13 = vcmask 195584
    %s14 = scalar_lea.vmem [#allocation0], 16
    %15 = vst.msk [vmem:[%s14] sm:$0x1] %vm13, %v12
    %vm16 = vcmask 1048488
    %s17 = scalar_lea.vmem [#allocation0], 8
    %18 = vst.msk [vmem:[%s17] sm:$0x1] %vm16, %v12
    %s19 = scalar_lea.vmem %s0, 3
    %v20 = vld [vmem:[%s19] sm:$0x1]
    %s21 = scalar_lea.vmem %s0, 3
    %v22 = vld [vmem:[%s21] sm:$0x1]
    %vm23 = vcmask 187392
    %v24 = vsel %vm23, %v22, %v20
    %25 = vrot.lane.b32.xlu0 %v24, 105
    %v26 = vpop.permute.xlu0 %25
    %vm27 = vcmask 97280
    %s28 = scalar_lea.vmem [#allocation0], 8
    %29 = vst.msk [vmem:[%s28] sm:$0x1] %vm27, %v26
    %vm30 = vcmask 1048392
    %31 = vst.msk [vmem:[#allocation0] sm:$0x1] %vm30, %v26
    %s32 = scalar_lea.vmem %s0, 6
    %v33 = vld [vmem:[%s32] sm:$0x1]
    %34 = vrot.lane.b32.xlu0 %v33, 82
    %v35 = vpop.permute.xlu0 %34
    %vm36 = vcmask 958096
    %s37 = scalar_lea.vmem [#allocation0], 8
    %38 = vst.msk [vmem:[%s37] sm:$0x1] %vm36, %v35
    %s39 = scalar_lea.vmem %s0, 2
    %v40 = vld [vmem:[%s39] sm:$0x1]
    %41 = vrot.lane.b32.xlu0 %v40, 70
    %v42 = vpop.permute.xlu0 %41
    %vm43 = vcmask 859696
    %44 = vst.msk [vmem:[#allocation0] sm:$0x1] %vm43, %v42
    %s45 = scalar_lea.vmem %s0, 5
    %v46 = vld [vmem:[%s45] sm:$0x1]
    %47 = vrot.lane.b32.xlu0 %v46, 47
    %v48 = vpop.permute.xlu0 %47
    %vm49 = vcmask 671096
    %s50 = scalar_lea.vmem [#allocation0], 8
    %51 = vst.msk [vmem:[%s50] sm:$0x1] %vm49, %v48
    %s52 = scalar_lea.vmem %s0, 1
    %v53 = vld [vmem:[%s52] sm:$0x1]
    %54 = vrot.lane.b32.xlu0 %v53, 35
    %v55 = vpop.permute.xlu0 %54
    %vm56 = vcmask 572696
    %57 = vst.msk [vmem:[#allocation0] sm:$0x1] %vm56, %v55
    %s58 = scalar_lea.vmem %s0, 4
    %v59 = vld [vmem:[%s58] sm:$0x1]
    %60 = vrot.lane.b32.xlu0 %v59, 12
    %v61 = vpop.permute.xlu0 %60
    %vm62 = vcmask 384096
    %s63 = scalar_lea.vmem [#allocation0], 8
    %64 = vst.msk [vmem:[%s63] sm:$0x1] %vm62, %v61
    %s66 = ssub.s32 2, 1
    %v67 = vld [vmem:[#allocation0] sm:%s66]
    %s69 = ssub.s32 2, 1
    %70 = vst [vmem:[%s1] sm:%s69] %v67
    %s71 = scalar_lea.vmem [#allocation0], 8
    %v72 = vld [vmem:[%s71] sm:%s66]
    %s74 = ssub.s32 2, 1
    %s75 = scalar_lea.vmem %s1, 1
    %76 = vst [vmem:[%s75] sm:%s74] %v72
    %s77 = scalar_lea.vmem [#allocation0], 16
    %v78 = vld [vmem:[%s77] sm:%s66]
    %s80 = ssub.s32 2, 1
    %s81 = scalar_lea.vmem %s1, 2
    %82 = vst [vmem:[%s81] sm:%s80] %v78

// kernel: model_builder_forward.6
$region0: #{model_builder_forward.6}
  #allocation0 [shape = 'u32[]', space=smem, size = 0x4, offset = 0x4, fixed_abs, tag = 'smem constant byte address 0x4 - core index']
  #allocation1 [shape = 'u32[72,128]{1,0:T(1,128)}', space=vmem, size = 0x9000, scoped, tag = 'internal scratch']
  %s0 = inlined_call_operand.vmem [shape: f32[22,160], index: 0, kind: input, shape index: {}]
  %s1 = inlined_call_operand.vmem [shape: bf16[3,160,256], index: 1, kind: input, shape index: {}]
  %s2 = inlined_call_operand.vmem [shape: f32[1,256], index: 2, kind: input, shape index: {}]
  %s3 = inlined_call_operand.vmem [shape: bf16[256,280], index: 3, kind: input, shape index: {}]
  %s4 = inlined_call_operand.vmem [shape: f32[1,280], index: 4, kind: input, shape index: {}]
  %s5 = inlined_call_operand.vmem [shape: f32[20,256], index: 5, kind: output, shape index: {0}]
  %s6 = inlined_call_operand.vmem [shape: f32[20,280], index: 6, kind: output, shape index: {1}]
  %7 = xla_tuple %s5, %s6
  %s8 = sld [smem:[#allocation0]]
  $region38: #{model_builder_forward.6} parent=0
    _
  %s10 = ssub.s32 1, %s8
  %s11 = scalar_select 0, %s10, %s8
  // Predicated region
  $region2: #{model_builder_forward.6} parent=0 // pred_check
    _
  $region3: #{model_builder_forward.6} parent=0 // pred_check_branch
    %13 = sbr.rel (0) target = $region5
  $region4: #{model_builder_forward.6} parent=0 // pred_region
    _
  $region5: #{model_builder_forward.6} parent=0 // pred_fallthru
    _
  // Predicated region
  $region6: #{model_builder_forward.6} parent=0 // pred_check
    _
  $region7: #{model_builder_forward.6} parent=0 // pred_check_branch
    %15 = sbr.rel (0) target = $region9
  $region8: #{model_builder_forward.6} parent=0 // pred_region
    _
  $region9: #{model_builder_forward.6} parent=0 // pred_fallthru
    _
  // Predicated region
  $region10: #{model_builder_forward.6} parent=0 // pred_check
    _
  $region11: #{model_builder_forward.6} parent=0 // pred_check_branch
    %17 = sbr.rel (0) target = $region13
  $region12: #{model_builder_forward.6} parent=0 // pred_region
    _
  $region13: #{model_builder_forward.6} parent=0 // pred_fallthru
    _
  // Predicated region
  $region14: #{model_builder_forward.6} parent=0 // pred_check
    _
  $region15: #{model_builder_forward.6} parent=0 // pred_check_branch
    %19 = sbr.rel (0) target = $region17
  $region16: #{model_builder_forward.6} parent=0 // pred_region
    _
  $region17: #{model_builder_forward.6} parent=0 // pred_fallthru
    _
  // Predicated region
  $region18: #{model_builder_forward.6} parent=0 // pred_check
    _
  $region19: #{model_builder_forward.6} parent=0 // pred_check_branch
    %21 = sbr.rel (0) target = $region21
  $region20: #{model_builder_forward.6} parent=0 // pred_region
    _
  $region21: #{model_builder_forward.6} parent=0 // pred_fallthru
    _
  %v23 = vld [vmem:[%s0] sm:$0xff]
  %v24 = vld [vmem:[%s0 + $0x8] sm:$0xff]
  %v25 = vld [vmem:[%s0 + $0x10] sm:$0xff]
  %v26 = vld [vmem:[%s0 + $0x18] sm:$0xff]
  %v27 = vld [vmem:[%s0 + $0x20] sm:$0xf]
  %v28 = vld [vmem:[%s0 + $0x28] sm:$0xf]
  %v29 = vpack.c.bf16 %v25, %v23
  %v30 = vpack.c.bf16 %v26, %v24
  %v31 = vpack.c.bf16 %v27, %v27
  %v32 = vpack.c.bf16 %v28, %v28
  %v33 = vld [vmem:[%s1] sm:$0xff]
  %v34 = vld [vmem:[%s1 + $0x8] sm:$0xff]
  %v35 = vld [vmem:[%s1 + $0x10] sm:$0xff]
  %v36 = vld [vmem:[%s1 + $0x18] sm:$0xff]
  %v37 = vld [vmem:[%s1 + $0x20] sm:$0xff]
  %v38 = vld [vmem:[%s1 + $0x28] sm:$0xff]
  %v39 = vld [vmem:[%s1 + $0x30] sm:$0xff]
  %v40 = vld [vmem:[%s1 + $0x38] sm:$0xff]
  %v41 = vld [vmem:[%s1 + $0x40] sm:$0xff]
  %v42 = vld [vmem:[%s1 + $0x48] sm:$0xff]
  %v43 = vld [vmem:[%s1 + $0x50] sm:$0xff]
  %v44 = vld [vmem:[%s1 + $0x58] sm:$0xff]
  %v45 = vld [vmem:[%s1 + $0x60] sm:$0xff]
  %v46 = vld [vmem:[%s1 + $0x68] sm:$0xff]
  %v47 = vld [vmem:[%s1 + $0x70] sm:$0xff]
  %v48 = vld [vmem:[%s1 + $0x78] sm:$0xff]
  %v49 = vld [vmem:[%s1 + $0x80] sm:$0xff]
  %v50 = vld [vmem:[%s1 + $0x88] sm:$0xff]
  %v51 = vld [vmem:[%s1 + $0x90] sm:$0xff]
  %v52 = vld [vmem:[%s1 + $0x98] sm:$0xff]
  %v53 = vld [vmem:[%s0] sm:$0xfe]
  %v54 = vld [vmem:[%s0 + $0x8] sm:$0xfe]
  %v55 = vld [vmem:[%s0 + $0x20] sm:$0x1f]
  %v56 = vld [vmem:[%s0 + $0x28] sm:$0x1f]
  %v57 = vpack.c.bf16 %v25, %v53
  %v58 = vpack.c.bf16 %v26, %v54
  %v59 = vpack.c.bf16 %v55, %v55
  %v60 = vpack.c.bf16 %v56, %v56
  %s61 = scalar_lea.vmem %s1, 160
  %v62 = vld [vmem:[%s61] sm:$0xff]
  %v63 = vld [vmem:[%s61 + $0x8] sm:$0xff]
  %v64 = vld [vmem:[%s61 + $0x10] sm:$0xff]
  %v65 = vld [vmem:[%s61 + $0x18] sm:$0xff]
  %v66 = vld [vmem:[%s61 + $0x20] sm:$0xff]
  %v67 = vld [vmem:[%s61 + $0x28] sm:$0xff]
  %v68 = vld [vmem:[%s61 + $0x30] sm:$0xff]
  %v69 = vld [vmem:[%s61 + $0x38] sm:$0xff]
  %v70 = vld [vmem:[%s61 + $0x40] sm:$0xff]
  %v71 = vld [vmem:[%s61 + $0x48] sm:$0xff]
  %v72 = vld [vmem:[%s61 + $0x50] sm:$0xff]
  %v73 = vld [vmem:[%s61 + $0x58] sm:$0xff]
  %v74 = vld [vmem:[%s61 + $0x60] sm:$0xff]
  %v75 = vld [vmem:[%s61 + $0x68] sm:$0xff]
  %v76 = vld [vmem:[%s61 + $0x70] sm:$0xff]
  %v77 = vld [vmem:[%s61 + $0x78] sm:$0xff]
  %v78 = vld [vmem:[%s61 + $0x80] sm:$0xff]
  %v79 = vld [vmem:[%s61 + $0x88] sm:$0xff]
  %v80 = vld [vmem:[%s61 + $0x90] sm:$0xff]
  %v81 = vld [vmem:[%s61 + $0x98] sm:$0xff]
  %vm82 = vsmask.f32 7424
  %v84 = vshrl.u32 %v57, 16
  %v86 = vshll.u32 %v57, 16
  %v88 = vrot.slane %v86, 1
  %v89 = vor.u32 %v84, %v88
  %v91 = vshll.u32 %v59, 16
  %v93 = vrot.slane %v91, 1
  %v94 = vsel %vm82, %v89, %v93
  %v96 = vshrl.u32 %v58, 16
  %v98 = vshll.u32 %v58, 16
  %v100 = vrot.slane %v98, 1
  %v101 = vor.u32 %v96, %v100
  %v103 = vshll.u32 %v60, 16
  %v105 = vrot.slane %v103, 1
  %v106 = vsel %vm82, %v101, %v105
  %v107 = vshrl.u32 %v59, 16
  %v109 = vor.u32 %v107, %v93
  %v110 = vshrl.u32 %v60, 16
  %v112 = vor.u32 %v110, %v105
  %v135 = vunpack.c.l.b16 %v62
  %v136 = vunpack.c.h.b16 %v62
  %v137 = vunpack.c.l.b16 %v63
  %v138 = vunpack.c.h.b16 %v63
  %v139 = vunpack.c.l.b16 %v64
  %v140 = vunpack.c.h.b16 %v64
  %v141 = vunpack.c.l.b16 %v65
  %v142 = vunpack.c.h.b16 %v65
  %v143 = vunpack.c.l.b16 %v66
  %v144 = vunpack.c.h.b16 %v66
  %v145 = vunpack.c.l.b16 %v67
  %v146 = vunpack.c.h.b16 %v67
  %v147 = vunpack.c.l.b16 %v68
  %v148 = vunpack.c.h.b16 %v68
  %v149 = vunpack.c.l.b16 %v69
  %v150 = vunpack.c.h.b16 %v69
  %v151 = vunpack.c.l.b16 %v70
  %v152 = vunpack.c.h.b16 %v70
  %v153 = vunpack.c.l.b16 %v71
  %v154 = vunpack.c.h.b16 %v71
  %v155 = vunpack.c.l.b16 %v72
  %v156 = vunpack.c.h.b16 %v72
  %v157 = vunpack.c.l.b16 %v73
  %v158 = vunpack.c.h.b16 %v73
  %v159 = vunpack.c.l.b16 %v74
  %v160 = vunpack.c.h.b16 %v74
  %v161 = vunpack.c.l.b16 %v75
  %v162 = vunpack.c.h.b16 %v75
  %v163 = vunpack.c.l.b16 %v76
  %v164 = vunpack.c.h.b16 %v76
  %v165 = vunpack.c.l.b16 %v77
  %v166 = vunpack.c.h.b16 %v77
  %v167 = vunpack.c.l.b16 %v78
  %v168 = vunpack.c.h.b16 %v78
  %v169 = vunpack.c.l.b16 %v79
  %v170 = vunpack.c.h.b16 %v79
  %v171 = vunpack.c.l.b16 %v80
  %v172 = vunpack.c.h.b16 %v80
  %v173 = vunpack.c.l.b16 %v81
  %v174 = vunpack.c.h.b16 %v81
  %v175 = vpack.c.b16 %v137, %v135
  %v176 = vpack.c.b16 %v138, %v136
  %v177 = vpack.c.b16 %v141, %v139
  %v178 = vpack.c.b16 %v142, %v140
  %v179 = vpack.c.b16 %v145, %v143
  %v180 = vpack.c.b16 %v146, %v144
  %v181 = vpack.c.b16 %v149, %v147
  %v182 = vpack.c.b16 %v150, %v148
  %v183 = vpack.c.b16 %v153, %v151
  %v184 = vpack.c.b16 %v154, %v152
  %v185 = vpack.c.b16 %v157, %v155
  %v186 = vpack.c.b16 %v158, %v156
  %v187 = vpack.c.b16 %v161, %v159
  %v188 = vpack.c.b16 %v162, %v160
  %v189 = vpack.c.b16 %v165, %v163
  %v190 = vpack.c.b16 %v166, %v164
  %v191 = vpack.c.b16 %v169, %v167
  %v192 = vpack.c.b16 %v170, %v168
  %v193 = vpack.c.b16 %v173, %v171
  %v194 = vpack.c.b16 %v174, %v172
  %vm215 = vcmask 261120
  %v217 = vsel %vm215, %v106, 0
  %v220 = vsel %vm215, %v112, 0
  %222 = vmatpush.bf16.msra.mxu0 %v189
  %223 = vmatpush.bf16.msra.mxu0 %v187
  %224 = vmatpush.bf16.msra.mxu0 %v185
  %225 = vmatpush.bf16.msra.mxu0 %v183
  %226 = vmatpush.bf16.msra.mxu0 %v181
  %227 = vmatpush.bf16.msra.mxu0 %v179
  %228 = vmatpush.bf16.msra.mxu0 %v177
  %229 = vmatpush.bf16.msra.mxu0 %v175
  %230 = vmatmul.bf16.gmra.mxu0 %v94
  %v231 = vpop.f32.mrf.mxu0
  %v232 = vadd.f32 0.0, %v231
  %v233 = vpop.f32.mrf.mxu0
  %v234 = vadd.f32 0.0, %v233
  %235 = vmatmul.bf16.gmra.mxu0 %v109
  %v236 = vpop.f32.mrf.mxu0
  %v237 = vadd.f32 0.0, %v236
  %v238 = vpop.f32.mrf.mxu0
  %239 = vdwg.mxu0
  %240 = vmatpush.bf16.msra.mxu0 0
  %241 = vmatpush.bf16.msra.mxu0 0
  %242 = vmatpush.bf16.msra.mxu0 0
  %243 = vmatpush.bf16.msra.mxu0 0
  %244 = vmatpush.bf16.msra.mxu0 0
  %245 = vmatpush.bf16.msra.mxu0 0
  %246 = vmatpush.bf16.msra.mxu0 %v193
  %247 = vmatpush.bf16.msra.mxu0 %v191
  %248 = vmatmul.bf16.gmra.mxu0 %v217
  %v249 = vpop.f32.mrf.mxu0
  %v250 = vadd.f32 %v232, %v249
  %v251 = vpop.f32.mrf.mxu0
  %v252 = vadd.f32 %v234, %v251
  %253 = vmatmul.bf16.gmra.mxu0 %v220
  %v254 = vpop.f32.mrf.mxu0
  %v255 = vadd.f32 %v237, %v254
  %v256 = vpop.f32.mrf.mxu0
  %257 = vdwg.mxu0
  %258 = vmatpush.bf16.msra.mxu0 %v190
  %259 = vmatpush.bf16.msra.mxu0 %v188
  %260 = vmatpush.bf16.msra.mxu0 %v186
  %261 = vmatpush.bf16.msra.mxu0 %v184
  %262 = vmatpush.bf16.msra.mxu0 %v182
  %263 = vmatpush.bf16.msra.mxu0 %v180
  %264 = vmatpush.bf16.msra.mxu0 %v178
  %265 = vmatpush.bf16.msra.mxu0 %v176
  %266 = vmatmul.bf16.gmra.mxu0 %v94
  %v267 = vpop.f32.mrf.mxu0
  %v268 = vadd.f32 0.0, %v267
  %v269 = vpop.f32.mrf.mxu0
  %v270 = vadd.f32 0.0, %v269
  %271 = vmatmul.bf16.gmra.mxu0 %v109
  %v272 = vpop.f32.mrf.mxu0
  %v273 = vadd.f32 0.0, %v272
  %v274 = vpop.f32.mrf.mxu0
  %275 = vdwg.mxu0
  %276 = vmatpush.bf16.msra.mxu0 0
  %277 = vmatpush.bf16.msra.mxu0 0
  %278 = vmatpush.bf16.msra.mxu0 0
  %279 = vmatpush.bf16.msra.mxu0 0
  %280 = vmatpush.bf16.msra.mxu0 0
  %281 = vmatpush.bf16.msra.mxu0 0
  %282 = vmatpush.bf16.msra.mxu0 %v194
  %283 = vmatpush.bf16.msra.mxu0 %v192
  %284 = vmatmul.bf16.gmra.mxu0 %v217
  %v285 = vpop.f32.mrf.mxu0
  %v286 = vadd.f32 %v268, %v285
  %v287 = vpop.f32.mrf.mxu0
  %v288 = vadd.f32 %v270, %v287
  %289 = vmatmul.bf16.gmra.mxu0 %v220
  %v290 = vpop.f32.mrf.mxu0
  %v291 = vadd.f32 %v273, %v290
  %v292 = vpop.f32.mrf.mxu0
  %293 = vdwg.mxu0
  %v314 = vunpack.c.l.b16 %v33
  %v315 = vunpack.c.h.b16 %v33
  %v316 = vunpack.c.l.b16 %v34
  %v317 = vunpack.c.h.b16 %v34
  %v318 = vunpack.c.l.b16 %v35
  %v319 = vunpack.c.h.b16 %v35
  %v320 = vunpack.c.l.b16 %v36
  %v321 = vunpack.c.h.b16 %v36
  %v322 = vunpack.c.l.b16 %v37
  %v323 = vunpack.c.h.b16 %v37
  %v324 = vunpack.c.l.b16 %v38
  %v325 = vunpack.c.h.b16 %v38
  %v326 = vunpack.c.l.b16 %v39
  %v327 = vunpack.c.h.b16 %v39
  %v328 = vunpack.c.l.b16 %v40
  %v329 = vunpack.c.h.b16 %v40
  %v330 = vunpack.c.l.b16 %v41
  %v331 = vunpack.c.h.b16 %v41
  %v332 = vunpack.c.l.b16 %v42
  %v333 = vunpack.c.h.b16 %v42
  %v334 = vunpack.c.l.b16 %v43
  %v335 = vunpack.c.h.b16 %v43
  %v336 = vunpack.c.l.b16 %v44
  %v337 = vunpack.c.h.b16 %v44
  %v338 = vunpack.c.l.b16 %v45
  %v339 = vunpack.c.h.b16 %v45
  %v340 = vunpack.c.l.b16 %v46
  %v341 = vunpack.c.h.b16 %v46
  %v342 = vunpack.c.l.b16 %v47
  %v343 = vunpack.c.h.b16 %v47
  %v344 = vunpack.c.l.b16 %v48
  %v345 = vunpack.c.h.b16 %v48
  %v346 = vunpack.c.l.b16 %v49
  %v347 = vunpack.c.h.b16 %v49
  %v348 = vunpack.c.l.b16 %v50
  %v349 = vunpack.c.h.b16 %v50
  %v350 = vunpack.c.l.b16 %v51
  %v351 = vunpack.c.h.b16 %v51
  %v352 = vunpack.c.l.b16 %v52
  %v353 = vunpack.c.h.b16 %v52
  %v354 = vpack.c.b16 %v316, %v314
  %v355 = vpack.c.b16 %v317, %v315
  %v356 = vpack.c.b16 %v320, %v318
  %v357 = vpack.c.b16 %v321, %v319
  %v358 = vpack.c.b16 %v324, %v322
  %v359 = vpack.c.b16 %v325, %v323
  %v360 = vpack.c.b16 %v328, %v326
  %v361 = vpack.c.b16 %v329, %v327
  %v362 = vpack.c.b16 %v332, %v330
  %v363 = vpack.c.b16 %v333, %v331
  %v364 = vpack.c.b16 %v336, %v334
  %v365 = vpack.c.b16 %v337, %v335
  %v366 = vpack.c.b16 %v340, %v338
  %v367 = vpack.c.b16 %v341, %v339
  %v368 = vpack.c.b16 %v344, %v342
  %v369 = vpack.c.b16 %v345, %v343
  %v370 = vpack.c.b16 %v348, %v346
  %v371 = vpack.c.b16 %v349, %v347
  %v372 = vpack.c.b16 %v352, %v350
  %v373 = vpack.c.b16 %v353, %v351
  %v395 = vsel %vm215, %v30, 0
  %v398 = vsel %vm215, %v32, 0
  %400 = vmatpush.bf16.msra.mxu0 %v368
  %401 = vmatpush.bf16.msra.mxu0 %v366
  %402 = vmatpush.bf16.msra.mxu0 %v364
  %403 = vmatpush.bf16.msra.mxu0 %v362
  %404 = vmatpush.bf16.msra.mxu0 %v360
  %405 = vmatpush.bf16.msra.mxu0 %v358
  %406 = vmatpush.bf16.msra.mxu0 %v356
  %407 = vmatpush.bf16.msra.mxu0 %v354
  %408 = vmatmul.bf16.gmra.mxu0 %v29
  %v409 = vpop.f32.mrf.mxu0
  %v410 = vadd.f32 %v250, %v409
  %v411 = vpop.f32.mrf.mxu0
  %v412 = vadd.f32 %v252, %v411
  %413 = vmatmul.bf16.gmra.mxu0 %v31
  %v414 = vpop.f32.mrf.mxu0
  %v415 = vadd.f32 %v255, %v414
  %v416 = vpop.f32.mrf.mxu0
  %417 = vdwg.mxu0
  %418 = vmatpush.bf16.msra.mxu0 0
  %419 = vmatpush.bf16.msra.mxu0 0
  %420 = vmatpush.bf16.msra.mxu0 0
  %421 = vmatpush.bf16.msra.mxu0 0
  %422 = vmatpush.bf16.msra.mxu0 0
  %423 = vmatpush.bf16.msra.mxu0 0
  %424 = vmatpush.bf16.msra.mxu0 %v372
  %425 = vmatpush.bf16.msra.mxu0 %v370
  %426 = vmatmul.bf16.gmra.mxu0 %v395
  %v427 = vpop.f32.mrf.mxu0
  %v428 = vadd.f32 %v410, %v427
  %v429 = vpop.f32.mrf.mxu0
  %v430 = vadd.f32 %v412, %v429
  %431 = vmatmul.bf16.gmra.mxu0 %v398
  %v432 = vpop.f32.mrf.mxu0
  %v433 = vadd.f32 %v415, %v432
  %v434 = vpop.f32.mrf.mxu0
  %435 = vdwg.mxu0
  %436 = vmatpush.bf16.msra.mxu0 %v369
  %437 = vmatpush.bf16.msra.mxu0 %v367
  %438 = vmatpush.bf16.msra.mxu0 %v365
  %439 = vmatpush.bf16.msra.mxu0 %v363
  %440 = vmatpush.bf16.msra.mxu0 %v361
  %441 = vmatpush.bf16.msra.mxu0 %v359
  %442 = vmatpush.bf16.msra.mxu0 %v357
  %443 = vmatpush.bf16.msra.mxu0 %v355
  %444 = vmatmul.bf16.gmra.mxu0 %v29
  %v445 = vpop.f32.mrf.mxu0
  %v446 = vadd.f32 %v286, %v445
  %v447 = vpop.f32.mrf.mxu0
  %v448 = vadd.f32 %v288, %v447
  %449 = vmatmul.bf16.gmra.mxu0 %v31
  %v450 = vpop.f32.mrf.mxu0
  %v451 = vadd.f32 %v291, %v450
  %v452 = vpop.f32.mrf.mxu0
  %453 = vdwg.mxu0
  %454 = vmatpush.bf16.msra.mxu0 0
  %455 = vmatpush.bf16.msra.mxu0 0
  %456 = vmatpush.bf16.msra.mxu0 0
  %457 = vmatpush.bf16.msra.mxu0 0
  %458 = vmatpush.bf16.msra.mxu0 0
  %459 = vmatpush.bf16.msra.mxu0 0
  %460 = vmatpush.bf16.msra.mxu0 %v373
  %461 = vmatpush.bf16.msra.mxu0 %v371
  %462 = vmatmul.bf16.gmra.mxu0 %v395
  %v463 = vpop.f32.mrf.mxu0
  %v464 = vadd.f32 %v446, %v463
  %v465 = vpop.f32.mrf.mxu0
  %v466 = vadd.f32 %v448, %v465
  %467 = vmatmul.bf16.gmra.mxu0 %v398
  %v468 = vpop.f32.mrf.mxu0
  %v469 = vadd.f32 %v451, %v468
  %v470 = vpop.f32.mrf.mxu0
  %471 = vdwg.mxu0
  %v472 = vld [vmem:[%s0] sm:$0xfc]
  %v473 = vld [vmem:[%s0 + $0x8] sm:$0xfc]
  %v474 = vld [vmem:[%s0 + $0x20] sm:$0x3f]
  %v475 = vld [vmem:[%s0 + $0x28] sm:$0x3f]
  %v476 = vpack.c.bf16 %v25, %v472
  %v477 = vpack.c.bf16 %v26, %v473
  %v478 = vpack.c.bf16 %v474, %v474
  %v479 = vpack.c.bf16 %v475, %v475
  %s480 = scalar_lea.vmem %s1, 320
  %v481 = vld [vmem:[%s480] sm:$0xff]
  %v482 = vld [vmem:[%s480 + $0x8] sm:$0xff]
  %v483 = vld [vmem:[%s480 + $0x10] sm:$0xff]
  %v484 = vld [vmem:[%s480 + $0x18] sm:$0xff]
  %v485 = vld [vmem:[%s480 + $0x20] sm:$0xff]
  %v486 = vld [vmem:[%s480 + $0x28] sm:$0xff]
  %v487 = vld [vmem:[%s480 + $0x30] sm:$0xff]
  %v488 = vld [vmem:[%s480 + $0x38] sm:$0xff]
  %v489 = vld [vmem:[%s480 + $0x40] sm:$0xff]
  %v490 = vld [vmem:[%s480 + $0x48] sm:$0xff]
  %v491 = vld [vmem:[%s480 + $0x50] sm:$0xff]
  %v492 = vld [vmem:[%s480 + $0x58] sm:$0xff]
  %v493 = vld [vmem:[%s480 + $0x60] sm:$0xff]
  %v494 = vld [vmem:[%s480 + $0x68] sm:$0xff]
  %v495 = vld [vmem:[%s480 + $0x70] sm:$0xff]
  %v496 = vld [vmem:[%s480 + $0x78] sm:$0xff]
  %v497 = vld [vmem:[%s480 + $0x80] sm:$0xff]
  %v498 = vld [vmem:[%s480 + $0x88] sm:$0xff]
  %v499 = vld [vmem:[%s480 + $0x90] sm:$0xff]
  %v500 = vld [vmem:[%s480 + $0x98] sm:$0xff]
  %vm505 = vcmask 1046528
  %v506 = vrot.slane %v476, 1
  %v507 = vrot.slane %v478, 1
  %v508 = vsel %vm505, %v506, %v507
  %v509 = vrot.slane %v477, 1
  %v510 = vrot.slane %v479, 1
  %v511 = vsel %vm505, %v509, %v510
  %v534 = vunpack.c.l.b16 %v481
  %v535 = vunpack.c.h.b16 %v481
  %v536 = vunpack.c.l.b16 %v482
  %v537 = vunpack.c.h.b16 %v482
  %v538 = vunpack.c.l.b16 %v483
  %v539 = vunpack.c.h.b16 %v483
  %v540 = vunpack.c.l.b16 %v484
  %v541 = vunpack.c.h.b16 %v484
  %v542 = vunpack.c.l.b16 %v485
  %v543 = vunpack.c.h.b16 %v485
  %v544 = vunpack.c.l.b16 %v486
  %v545 = vunpack.c.h.b16 %v486
  %v546 = vunpack.c.l.b16 %v487
  %v547 = vunpack.c.h.b16 %v487
  %v548 = vunpack.c.l.b16 %v488
  %v549 = vunpack.c.h.b16 %v488
  %v550 = vunpack.c.l.b16 %v489
  %v551 = vunpack.c.h.b16 %v489
  %v552 = vunpack.c.l.b16 %v490
  %v553 = vunpack.c.h.b16 %v490
  %v554 = vunpack.c.l.b16 %v491
  %v555 = vunpack.c.h.b16 %v491
  %v556 = vunpack.c.l.b16 %v492
  %v557 = vunpack.c.h.b16 %v492
  %v558 = vunpack.c.l.b16 %v493
  %v559 = vunpack.c.h.b16 %v493
  %v560 = vunpack.c.l.b16 %v494
  %v561 = vunpack.c.h.b16 %v494
  %v562 = vunpack.c.l.b16 %v495
  %v563 = vunpack.c.h.b16 %v495
  %v564 = vunpack.c.l.b16 %v496
  %v565 = vunpack.c.h.b16 %v496
  %v566 = vunpack.c.l.b16 %v497
  %v567 = vunpack.c.h.b16 %v497
  %v568 = vunpack.c.l.b16 %v498
  %v569 = vunpack.c.h.b16 %v498
  %v570 = vunpack.c.l.b16 %v499
  %v571 = vunpack.c.h.b16 %v499
  %v572 = vunpack.c.l.b16 %v500
  %v573 = vunpack.c.h.b16 %v500
  %v574 = vpack.c.b16 %v536, %v534
  %v575 = vpack.c.b16 %v537, %v535
  %v576 = vpack.c.b16 %v540, %v538
  %v577 = vpack.c.b16 %v541, %v539
  %v578 = vpack.c.b16 %v544, %v542
  %v579 = vpack.c.b16 %v545, %v543
  %v580 = vpack.c.b16 %v548, %v546
  %v581 = vpack.c.b16 %v549, %v547
  %v582 = vpack.c.b16 %v552, %v550
  %v583 = vpack.c.b16 %v553, %v551
  %v584 = vpack.c.b16 %v556, %v554
  %v585 = vpack.c.b16 %v557, %v555
  %v586 = vpack.c.b16 %v560, %v558
  %v587 = vpack.c.b16 %v561, %v559
  %v588 = vpack.c.b16 %v564, %v562
  %v589 = vpack.c.b16 %v565, %v563
  %v590 = vpack.c.b16 %v568, %v566
  %v591 = vpack.c.b16 %v569, %v567
  %v592 = vpack.c.b16 %v572, %v570
  %v593 = vpack.c.b16 %v573, %v571
  %v615 = vsel %vm215, %v511, 0
  %v618 = vsel %vm215, %v510, 0
  %620 = vmatpush.bf16.msra.mxu0 %v588
  %621 = vmatpush.bf16.msra.mxu0 %v586
  %622 = vmatpush.bf16.msra.mxu0 %v584
  %623 = vmatpush.bf16.msra.mxu0 %v582
  %624 = vmatpush.bf16.msra.mxu0 %v580
  %625 = vmatpush.bf16.msra.mxu0 %v578
  %626 = vmatpush.bf16.msra.mxu0 %v576
  %627 = vmatpush.bf16.msra.mxu0 %v574
  %628 = vmatmul.bf16.gmra.mxu0 %v508
  %v629 = vpop.f32.mrf.mxu0
  %v630 = vadd.f32 0.0, %v629
  %v631 = vpop.f32.mrf.mxu0
  %v632 = vadd.f32 0.0, %v631
  %633 = vmatmul.bf16.gmra.mxu0 %v507
  %v634 = vpop.f32.mrf.mxu0
  %v635 = vadd.f32 0.0, %v634
  %v636 = vpop.f32.mrf.mxu0
  %637 = vdwg.mxu0
  %638 = vmatpush.bf16.msra.mxu0 0
  %639 = vmatpush.bf16.msra.mxu0 0
  %640 = vmatpush.bf16.msra.mxu0 0
  %641 = vmatpush.bf16.msra.mxu0 0
  %642 = vmatpush.bf16.msra.mxu0 0
  %643 = vmatpush.bf16.msra.mxu0 0
  %644 = vmatpush.bf16.msra.mxu0 %v592
  %645 = vmatpush.bf16.msra.mxu0 %v590
  %646 = vmatmul.bf16.gmra.mxu0 %v615
  %v647 = vpop.f32.mrf.mxu0
  %v648 = vadd.f32 %v630, %v647
  %v649 = vpop.f32.mrf.mxu0
  %v650 = vadd.f32 %v632, %v649
  %651 = vmatmul.bf16.gmra.mxu0 %v618
  %v652 = vpop.f32.mrf.mxu0
  %v653 = vadd.f32 %v635, %v652
  %v654 = vpop.f32.mrf.mxu0
  %655 = vdwg.mxu0
  %656 = vmatpush.bf16.msra.mxu0 %v589
  %657 = vmatpush.bf16.msra.mxu0 %v587
  %658 = vmatpush.bf16.msra.mxu0 %v585
  %659 = vmatpush.bf16.msra.mxu0 %v583
  %660 = vmatpush.bf16.msra.mxu0 %v581
  %661 = vmatpush.bf16.msra.mxu0 %v579
  %662 = vmatpush.bf16.msra.mxu0 %v577
  %663 = vmatpush.bf16.msra.mxu0 %v575
  %664 = vmatmul.bf16.gmra.mxu0 %v508
  %v665 = vpop.f32.mrf.mxu0
  %v666 = vadd.f32 0.0, %v665
  %v667 = vpop.f32.mrf.mxu0
  %v668 = vadd.f32 0.0, %v667
  %669 = vmatmul.bf16.gmra.mxu0 %v507
  %v670 = vpop.f32.mrf.mxu0
  %v671 = vadd.f32 0.0, %v670
  %v672 = vpop.f32.mrf.mxu0
  %673 = vdwg.mxu0
  %674 = vmatpush.bf16.msra.mxu0 0
  %675 = vmatpush.bf16.msra.mxu0 0
  %676 = vmatpush.bf16.msra.mxu0 0
  %677 = vmatpush.bf16.msra.mxu0 0
  %678 = vmatpush.bf16.msra.mxu0 0
  %679 = vmatpush.bf16.msra.mxu0 0
  %680 = vmatpush.bf16.msra.mxu0 %v593
  %681 = vmatpush.bf16.msra.mxu0 %v591
  %682 = vmatmul.bf16.gmra.mxu0 %v615
  %v683 = vpop.f32.mrf.mxu0
  %v684 = vadd.f32 %v666, %v683
  %v685 = vpop.f32.mrf.mxu0
  %v686 = vadd.f32 %v668, %v685
  %687 = vmatmul.bf16.gmra.mxu0 %v618
  %v688 = vpop.f32.mrf.mxu0
  %v689 = vadd.f32 %v671, %v688
  %v690 = vpop.f32.mrf.mxu0
  %691 = vdwg.mxu0
  %v692 = vadd.f32 %v428, %v648
  %v693 = vadd.f32 %v464, %v684
  %v694 = vadd.f32 %v430, %v650
  %v695 = vadd.f32 %v466, %v686
  %v696 = vadd.f32 %v433, %v653
  %v697 = vadd.f32 %v469, %v689
  %v698 = vld [vmem:[%s2] sm:$0x3]
  %v700 = vperm.slane %v698, 0
  %v701 = vperm.slane %v698, 1
  %v704 = vadd.f32 %v692, %v700
  %v705 = vadd.f32 %v693, %v701
  %v706 = vadd.f32 %v694, %v700
  %v707 = vadd.f32 %v695, %v701
  %v708 = vadd.f32 %v696, %v700
  %v709 = vadd.f32 %v697, %v701
  %v710 = vmax.f32 %v704, 0.0
  %v711 = vmax.f32 %v705, 0.0
  %v712 = vmax.f32 %v706, 0.0
  %v713 = vmax.f32 %v707, 0.0
  %v714 = vmax.f32 %v708, 0.0
  %v715 = vmax.f32 %v709, 0.0
  %716 = vst [vmem:[%s5] sm:$0xff] %v710
  %717 = vst [vmem:[%s5 + $0x8] sm:$0xff] %v711
  %718 = vst [vmem:[%s5 + $0x10] sm:$0xff] %v712
  %719 = vst [vmem:[%s5 + $0x18] sm:$0xff] %v713
  %720 = vst [vmem:[%s5 + $0x20] sm:$0xf] %v714
  %721 = vst [vmem:[%s5 + $0x28] sm:$0xf] %v715
  %v722 = vpack.c.bf16 %v712, %v710
  %v723 = vpack.c.bf16 %v713, %v711
  %v724 = vpack.c.bf16 %v714, %v714
  %v725 = vpack.c.bf16 %v715, %v715
  %v726 = vld [vmem:[%s3] sm:$0xff]
  %v727 = vld [vmem:[%s3 + $0x8] sm:$0xf]
  %v728 = vld [vmem:[%s3 + $0xc] sm:$0xff]
  %v729 = vld [vmem:[%s3 + $0x14] sm:$0xf]
  %v730 = vld [vmem:[%s3 + $0x18] sm:$0xff]
  %v731 = vld [vmem:[%s3 + $0x20] sm:$0xf]
  %v732 = vld [vmem:[%s3 + $0x24] sm:$0xff]
  %v733 = vld [vmem:[%s3 + $0x2c] sm:$0xf]
  %v734 = vld [vmem:[%s3 + $0x30] sm:$0xff]
  %v735 = vld [vmem:[%s3 + $0x38] sm:$0xf]
  %v736 = vld [vmem:[%s3 + $0x3c] sm:$0xff]
  %v737 = vld [vmem:[%s3 + $0x44] sm:$0xf]
  %v738 = vld [vmem:[%s3 + $0x48] sm:$0xff]
  %v739 = vld [vmem:[%s3 + $0x50] sm:$0xf]
  %v740 = vld [vmem:[%s3 + $0x54] sm:$0xff]
  %v741 = vld [vmem:[%s3 + $0x5c] sm:$0xf]
  %v742 = vld [vmem:[%s3 + $0x60] sm:$0xff]
  %v743 = vld [vmem:[%s3 + $0x68] sm:$0xf]
  %v744 = vld [vmem:[%s3 + $0x6c] sm:$0xff]
  %v745 = vld [vmem:[%s3 + $0x74] sm:$0xf]
  %v746 = vld [vmem:[%s3 + $0x78] sm:$0xff]
  %v747 = vld [vmem:[%s3 + $0x80] sm:$0xf]
  %v748 = vld [vmem:[%s3 + $0x84] sm:$0xff]
  %v749 = vld [vmem:[%s3 + $0x8c] sm:$0xf]
  %v750 = vld [vmem:[%s3 + $0x90] sm:$0xff]
  %v751 = vld [vmem:[%s3 + $0x98] sm:$0xf]
  %v752 = vld [vmem:[%s3 + $0x9c] sm:$0xff]
  %v753 = vld [vmem:[%s3 + $0xa4] sm:$0xf]
  %v754 = vld [vmem:[%s3 + $0xa8] sm:$0xff]
  %v755 = vld [vmem:[%s3 + $0xb0] sm:$0xf]
  %v756 = vld [vmem:[%s3 + $0xb4] sm:$0xff]
  %v757 = vld [vmem:[%s3 + $0xbc] sm:$0xf]
  %v758 = vld [vmem:[%s3 + $0xc0] sm:$0xff]
  %v759 = vld [vmem:[%s3 + $0xc8] sm:$0xf]
  %v760 = vld [vmem:[%s3 + $0xcc] sm:$0xff]
  %v761 = vld [vmem:[%s3 + $0xd4] sm:$0xf]
  %v762 = vld [vmem:[%s3 + $0xd8] sm:$0xff]
  %v763 = vld [vmem:[%s3 + $0xe0] sm:$0xf]
  %v764 = vld [vmem:[%s3 + $0xe4] sm:$0xff]
  %v765 = vld [vmem:[%s3 + $0xec] sm:$0xf]
  %v766 = vld [vmem:[%s3 + $0xf0] sm:$0xff]
  %v767 = vld [vmem:[%s3 + $0xf8] sm:$0xf]
  %v768 = vld [vmem:[%s3 + $0xfc] sm:$0xff]
  %v769 = vld [vmem:[%s3 + $0x104] sm:$0xf]
  %v770 = vld [vmem:[%s3 + $0x108] sm:$0xff]
  %v771 = vld [vmem:[%s3 + $0x110] sm:$0xf]
  %v772 = vld [vmem:[%s3 + $0x114] sm:$0xff]
  %v773 = vld [vmem:[%s3 + $0x11c] sm:$0xf]
  %v774 = vld [vmem:[%s3 + $0x120] sm:$0xff]
  %v775 = vld [vmem:[%s3 + $0x128] sm:$0xf]
  %v776 = vld [vmem:[%s3 + $0x12c] sm:$0xff]
  %v777 = vld [vmem:[%s3 + $0x134] sm:$0xf]
  %v778 = vld [vmem:[%s3 + $0x138] sm:$0xff]
  %v779 = vld [vmem:[%s3 + $0x140] sm:$0xf]
  %v780 = vld [vmem:[%s3 + $0x144] sm:$0xff]
  %v781 = vld [vmem:[%s3 + $0x14c] sm:$0xf]
  %v782 = vld [vmem:[%s3 + $0x150] sm:$0xff]
  %v783 = vld [vmem:[%s3 + $0x158] sm:$0xf]
  %v784 = vld [vmem:[%s3 + $0x15c] sm:$0xff]
  %v785 = vld [vmem:[%s3 + $0x164] sm:$0xf]
  %v786 = vld [vmem:[%s3 + $0x168] sm:$0xff]
  %v787 = vld [vmem:[%s3 + $0x170] sm:$0xf]
  %v788 = vld [vmem:[%s3 + $0x174] sm:$0xff]
  %v789 = vld [vmem:[%s3 + $0x17c] sm:$0xf]
  %v790 = vld [vmem:[%s4] sm:$0x7]
  %v792 = vperm.slane %v790, 0
  %v793 = vperm.slane %v790, 1
  %v794 = vperm.slane %v790, 2
  %v862 = vunpack.c.l.b16 %v726
  %v863 = vunpack.c.h.b16 %v726
  %v864 = vunpack.c.l.b16 %v727
  %v865 = vunpack.c.l.b16 %v728
  %v866 = vunpack.c.h.b16 %v728
  %v867 = vunpack.c.l.b16 %v729
  %v868 = vunpack.c.l.b16 %v730
  %v869 = vunpack.c.h.b16 %v730
  %v870 = vunpack.c.l.b16 %v731
  %v871 = vunpack.c.l.b16 %v732
  %v872 = vunpack.c.h.b16 %v732
  %v873 = vunpack.c.l.b16 %v733
  %v874 = vunpack.c.l.b16 %v734
  %v875 = vunpack.c.h.b16 %v734
  %v876 = vunpack.c.l.b16 %v735
  %v877 = vunpack.c.l.b16 %v736
  %v878 = vunpack.c.h.b16 %v736
  %v879 = vunpack.c.l.b16 %v737
  %v880 = vunpack.c.l.b16 %v738
  %v881 = vunpack.c.h.b16 %v738
  %v882 = vunpack.c.l.b16 %v739
  %v883 = vunpack.c.l.b16 %v740
  %v884 = vunpack.c.h.b16 %v740
  %v885 = vunpack.c.l.b16 %v741
  %v886 = vunpack.c.l.b16 %v742
  %v887 = vunpack.c.h.b16 %v742
  %v888 = vunpack.c.l.b16 %v743
  %v889 = vunpack.c.l.b16 %v744
  %v890 = vunpack.c.h.b16 %v744
  %v891 = vunpack.c.l.b16 %v745
  %v892 = vunpack.c.l.b16 %v746
  %v893 = vunpack.c.h.b16 %v746
  %v894 = vunpack.c.l.b16 %v747
  %v895 = vunpack.c.l.b16 %v748
  %v896 = vunpack.c.h.b16 %v748
  %v897 = vunpack.c.l.b16 %v749
  %v898 = vunpack.c.l.b16 %v750
  %v899 = vunpack.c.h.b16 %v750
  %v900 = vunpack.c.l.b16 %v751
  %v901 = vunpack.c.l.b16 %v752
  %v902 = vunpack.c.h.b16 %v752
  %v903 = vunpack.c.l.b16 %v753
  %v904 = vunpack.c.l.b16 %v754
  %v905 = vunpack.c.h.b16 %v754
  %v906 = vunpack.c.l.b16 %v755
  %v907 = vunpack.c.l.b16 %v756
  %v908 = vunpack.c.h.b16 %v756
  %v909 = vunpack.c.l.b16 %v757
  %v910 = vunpack.c.l.b16 %v758
  %v911 = vunpack.c.h.b16 %v758
  %v912 = vunpack.c.l.b16 %v759
  %v913 = vunpack.c.l.b16 %v760
  %v914 = vunpack.c.h.b16 %v760
  %v915 = vunpack.c.l.b16 %v761
  %v916 = vunpack.c.l.b16 %v762
  %v917 = vunpack.c.h.b16 %v762
  %v918 = vunpack.c.l.b16 %v763
  %v919 = vunpack.c.l.b16 %v764
  %v920 = vunpack.c.h.b16 %v764
  %v921 = vunpack.c.l.b16 %v765
  %v922 = vunpack.c.l.b16 %v766
  %v923 = vunpack.c.h.b16 %v766
  %v924 = vunpack.c.l.b16 %v767
  %v925 = vunpack.c.l.b16 %v768
  %v926 = vunpack.c.h.b16 %v768
  %v927 = vunpack.c.l.b16 %v769
  %v928 = vunpack.c.l.b16 %v770
  %v929 = vunpack.c.h.b16 %v770
  %v930 = vunpack.c.l.b16 %v771
  %v931 = vunpack.c.l.b16 %v772
  %v932 = vunpack.c.h.b16 %v772
  %v933 = vunpack.c.l.b16 %v773
  %v934 = vunpack.c.l.b16 %v774
  %v935 = vunpack.c.h.b16 %v774
  %v936 = vunpack.c.l.b16 %v775
  %v937 = vunpack.c.l.b16 %v776
  %v938 = vunpack.c.h.b16 %v776
  %v939 = vunpack.c.l.b16 %v777
  %v940 = vunpack.c.l.b16 %v778
  %v941 = vunpack.c.h.b16 %v778
  %v942 = vunpack.c.l.b16 %v779
  %v943 = vunpack.c.l.b16 %v780
  %v944 = vunpack.c.h.b16 %v780
  %v945 = vunpack.c.l.b16 %v781
  %v946 = vunpack.c.l.b16 %v782
  %v947 = vunpack.c.h.b16 %v782
  %v948 = vunpack.c.l.b16 %v783
  %v949 = vunpack.c.l.b16 %v784
  %v950 = vunpack.c.h.b16 %v784
  %v951 = vunpack.c.l.b16 %v785
  %v952 = vunpack.c.l.b16 %v786
  %v953 = vunpack.c.h.b16 %v786
  %v954 = vunpack.c.l.b16 %v787
  %v955 = vunpack.c.l.b16 %v788
  %v956 = vunpack.c.h.b16 %v788
  %v957 = vunpack.c.l.b16 %v789
  %v958 = vpack.c.b16 %v865, %v862
  %v959 = vpack.c.b16 %v866, %v863
  %v960 = vpack.c.b16 %v867, %v864
  %v961 = vpack.c.b16 %v871, %v868
  %v962 = vpack.c.b16 %v872, %v869
  %v963 = vpack.c.b16 %v873, %v870
  %v964 = vpack.c.b16 %v877, %v874
  %v965 = vpack.c.b16 %v878, %v875
  %v966 = vpack.c.b16 %v879, %v876
  %v967 = vpack.c.b16 %v883, %v880
  %v968 = vpack.c.b16 %v884, %v881
  %v969 = vpack.c.b16 %v885, %v882
  %v970 = vpack.c.b16 %v889, %v886
  %v971 = vpack.c.b16 %v890, %v887
  %v972 = vpack.c.b16 %v891, %v888
  %v973 = vpack.c.b16 %v895, %v892
  %v974 = vpack.c.b16 %v896, %v893
  %v975 = vpack.c.b16 %v897, %v894
  %v976 = vpack.c.b16 %v901, %v898
  %v977 = vpack.c.b16 %v902, %v899
  %v978 = vpack.c.b16 %v903, %v900
  %v979 = vpack.c.b16 %v907, %v904
  %v980 = vpack.c.b16 %v908, %v905
  %v981 = vpack.c.b16 %v909, %v906
  %v982 = vpack.c.b16 %v913, %v910
  %v983 = vpack.c.b16 %v914, %v911
  %v984 = vpack.c.b16 %v915, %v912
  %v985 = vpack.c.b16 %v919, %v916
  %v986 = vpack.c.b16 %v920, %v917
  %v987 = vpack.c.b16 %v921, %v918
  %v988 = vpack.c.b16 %v925, %v922
  %v989 = vpack.c.b16 %v926, %v923
  %v990 = vpack.c.b16 %v927, %v924
  %v991 = vpack.c.b16 %v931, %v928
  %v992 = vpack.c.b16 %v932, %v929
  %v993 = vpack.c.b16 %v933, %v930
  %v994 = vpack.c.b16 %v937, %v934
  %v995 = vpack.c.b16 %v938, %v935
  %v996 = vpack.c.b16 %v939, %v936
  %v997 = vpack.c.b16 %v943, %v940
  %v998 = vpack.c.b16 %v944, %v941
  %v999 = vpack.c.b16 %v945, %v942
  %v1000 = vpack.c.b16 %v949, %v946
  %v1001 = vpack.c.b16 %v950, %v947
  %v1002 = vpack.c.b16 %v951, %v948
  %v1003 = vpack.c.b16 %v955, %v952
  %v1004 = vpack.c.b16 %v956, %v953
  %v1005 = vpack.c.b16 %v957, %v954
  %1054 = vmatpush.bf16.msra.mxu0 %v979
  %1055 = vmatpush.bf16.msra.mxu0 %v976
  %1056 = vmatpush.bf16.msra.mxu0 %v973
  %1057 = vmatpush.bf16.msra.mxu0 %v970
  %1058 = vmatpush.bf16.msra.mxu0 %v967
  %1059 = vmatpush.bf16.msra.mxu0 %v964
  %1060 = vmatpush.bf16.msra.mxu0 %v961
  %1061 = vmatpush.bf16.msra.mxu0 %v958
  %1062 = vmatmul.bf16.gmra.mxu0 %v722
  %v1063 = vpop.f32.mrf.mxu0
  %v1064 = vadd.f32 %v792, %v1063
  %v1065 = vpop.f32.mrf.mxu0
  %v1066 = vadd.f32 %v792, %v1065
  %1067 = vmatmul.bf16.gmra.mxu0 %v724
  %v1068 = vpop.f32.mrf.mxu0
  %v1069 = vadd.f32 %v792, %v1068
  %v1070 = vpop.f32.mrf.mxu0
  %1071 = vdwg.mxu0
  %1072 = vmatpush.bf16.msra.mxu0 %v1003
  %1073 = vmatpush.bf16.msra.mxu0 %v1000
  %1074 = vmatpush.bf16.msra.mxu0 %v997
  %1075 = vmatpush.bf16.msra.mxu0 %v994
  %1076 = vmatpush.bf16.msra.mxu0 %v991
  %1077 = vmatpush.bf16.msra.mxu0 %v988
  %1078 = vmatpush.bf16.msra.mxu0 %v985
  %1079 = vmatpush.bf16.msra.mxu0 %v982
  %1080 = vmatmul.bf16.gmra.mxu0 %v723
  %v1081 = vpop.f32.mrf.mxu0
  %v1082 = vadd.f32 %v1064, %v1081
  %v1083 = vpop.f32.mrf.mxu0
  %v1084 = vadd.f32 %v1066, %v1083
  %1085 = vmatmul.bf16.gmra.mxu0 %v725
  %v1086 = vpop.f32.mrf.mxu0
  %v1087 = vadd.f32 %v1069, %v1086
  %v1088 = vpop.f32.mrf.mxu0
  %1089 = vdwg.mxu0
  %1090 = vmatpush.bf16.msra.mxu0 %v980
  %1091 = vmatpush.bf16.msra.mxu0 %v977
  %1092 = vmatpush.bf16.msra.mxu0 %v974
  %1093 = vmatpush.bf16.msra.mxu0 %v971
  %1094 = vmatpush.bf16.msra.mxu0 %v968
  %1095 = vmatpush.bf16.msra.mxu0 %v965
  %1096 = vmatpush.bf16.msra.mxu0 %v962
  %1097 = vmatpush.bf16.msra.mxu0 %v959
  %1098 = vmatmul.bf16.gmra.mxu0 %v722
  %v1099 = vpop.f32.mrf.mxu0
  %v1100 = vadd.f32 %v793, %v1099
  %v1101 = vpop.f32.mrf.mxu0
  %v1102 = vadd.f32 %v793, %v1101
  %1103 = vmatmul.bf16.gmra.mxu0 %v724
  %v1104 = vpop.f32.mrf.mxu0
  %v1105 = vadd.f32 %v793, %v1104
  %v1106 = vpop.f32.mrf.mxu0
  %1107 = vdwg.mxu0
  %1108 = vmatpush.bf16.msra.mxu0 %v1004
  %1109 = vmatpush.bf16.msra.mxu0 %v1001
  %1110 = vmatpush.bf16.msra.mxu0 %v998
  %1111 = vmatpush.bf16.msra.mxu0 %v995
  %1112 = vmatpush.bf16.msra.mxu0 %v992
  %1113 = vmatpush.bf16.msra.mxu0 %v989
  %1114 = vmatpush.bf16.msra.mxu0 %v986
  %1115 = vmatpush.bf16.msra.mxu0 %v983
  %1116 = vmatmul.bf16.gmra.mxu0 %v723
  %v1117 = vpop.f32.mrf.mxu0
  %v1118 = vadd.f32 %v1100, %v1117
  %v1119 = vpop.f32.mrf.mxu0
  %v1120 = vadd.f32 %v1102, %v1119
  %1121 = vmatmul.bf16.gmra.mxu0 %v725
  %v1122 = vpop.f32.mrf.mxu0
  %v1123 = vadd.f32 %v1105, %v1122
  %v1124 = vpop.f32.mrf.mxu0
  %1125 = vdwg.mxu0
  %1126 = vmatpush.bf16.msra.mxu0 %v981
  %1127 = vmatpush.bf16.msra.mxu0 %v978
  %1128 = vmatpush.bf16.msra.mxu0 %v975
  %1129 = vmatpush.bf16.msra.mxu0 %v972
  %1130 = vmatpush.bf16.msra.mxu0 %v969
  %1131 = vmatpush.bf16.msra.mxu0 %v966
  %1132 = vmatpush.bf16.msra.mxu0 %v963
  %1133 = vmatpush.bf16.msra.mxu0 %v960
  %1134 = vmatmul.bf16.gmra.mxu0 %v722
  %v1135 = vpop.f32.mrf.mxu0
  %v1136 = vadd.f32 %v794, %v1135
  %v1137 = vpop.f32.mrf.mxu0
  %v1138 = vadd.f32 %v794, %v1137
  %1139 = vmatmul.bf16.gmra.mxu0 %v724
  %v1140 = vpop.f32.mrf.mxu0
  %v1141 = vadd.f32 %v794, %v1140
  %v1142 = vpop.f32.mrf.mxu0
  %1143 = vdwg.mxu0
  %1144 = vmatpush.bf16.msra.mxu0 %v1005
  %1145 = vmatpush.bf16.msra.mxu0 %v1002
  %1146 = vmatpush.bf16.msra.mxu0 %v999
  %1147 = vmatpush.bf16.msra.mxu0 %v996
  %1148 = vmatpush.bf16.msra.mxu0 %v993
  %1149 = vmatpush.bf16.msra.mxu0 %v990
  %1150 = vmatpush.bf16.msra.mxu0 %v987
  %1151 = vmatpush.bf16.msra.mxu0 %v984
  %1152 = vmatmul.bf16.gmra.mxu0 %v723
  %v1153 = vpop.f32.mrf.mxu0
  %v1154 = vadd.f32 %v1136, %v1153
  %v1155 = vpop.f32.mrf.mxu0
  %v1156 = vadd.f32 %v1138, %v1155
  %1157 = vmatmul.bf16.gmra.mxu0 %v725
  %v1158 = vpop.f32.mrf.mxu0
  %v1159 = vadd.f32 %v1141, %v1158
  %v1160 = vpop.f32.mrf.mxu0
  %1161 = vdwg.mxu0
  %1162 = vst [vmem:[%s6] sm:$0xff] %v1082
  %1163 = vst [vmem:[%s6 + $0x8] sm:$0xff] %v1118
  %vm1164 = vcmask 195584
  %1165 = vst.msk [vmem:[%s6 + $0x10] sm:$0xff] %vm1164, %v1154
  %1166 = vst [vmem:[%s6 + $0x18] sm:$0xff] %v1084
  %1167 = vst [vmem:[%s6 + $0x20] sm:$0xff] %v1120
  %1168 = vst.msk [vmem:[%s6 + $0x28] sm:$0xff] %vm1164, %v1156
  %1169 = vst [vmem:[%s6 + $0x30] sm:$0xf] %v1087
  %1170 = vst [vmem:[%s6 + $0x38] sm:$0xf] %v1123
  %vm1171 = vcmask 191488
  %1172 = vst.msk [vmem:[%s6 + $0x40] sm:$0xf] %vm1171, %v1159
  // Predicated region
  $region22: #{model_builder_forward.6} parent=0 // pred_check
    _
  $region23: #{model_builder_forward.6} parent=0 // pred_check_branch
    %1174 = sbr.rel (0) target = $region25
  $region24: #{model_builder_forward.6} parent=0 // pred_region
    _
  $region25: #{model_builder_forward.6} parent=0 // pred_fallthru
    _
  // Predicated region
  $region26: #{model_builder_forward.6} parent=0 // pred_check
    _
  $region27: #{model_builder_forward.6} parent=0 // pred_check_branch
    %1176 = sbr.rel (0) target = $region29
  $region28: #{model_builder_forward.6} parent=0 // pred_region
    _
  $region29: #{model_builder_forward.6} parent=0 // pred_fallthru
    _
  // Predicated region
  $region30: #{model_builder_forward.6} parent=0 // pred_check
    _
  $region31: #{model_builder_forward.6} parent=0 // pred_check_branch
    %1178 = sbr.rel (0) target = $region33
  $region32: #{model_builder_forward.6} parent=0 // pred_region
    _
  $region33: #{model_builder_forward.6} parent=0 // pred_fallthru
    _
  // Predicated region
  $region34: #{model_builder_forward.6} parent=0 // pred_check
    _
  $region35: #{model_builder_forward.6} parent=0 // pred_check_branch
    %1180 = sbr.rel (0) target = $region37
  $region36: #{model_builder_forward.6} parent=0 // pred_region
    _
  $region37: #{model_builder_forward.6} parent=0 // pred_fallthru
    _

// kernel: model_builder_forward.7
$region0: #{model_builder_forward.7}
  #allocation0 [shape = 'u32[]', space=smem, size = 0x4, offset = 0x4, fixed_abs, tag = 'smem constant byte address 0x4 - core index']
  #allocation1 [shape = 'u32[72,128]{1,0:T(1,128)}', space=vmem, size = 0x9000, scoped, tag = 'internal scratch']
  %s0 = inlined_call_operand.vmem [shape: f32[38,144], index: 0, kind: input, shape index: {}]
  %s1 = inlined_call_operand.vmem [shape: bf16[3,144,256], index: 1, kind: input, shape index: {}]
  %s2 = inlined_call_operand.vmem [shape: f32[1,256], index: 2, kind: input, shape index: {}]
  %s3 = inlined_call_operand.vmem [shape: bf16[256,80], index: 3, kind: input, shape index: {}]
  %s4 = inlined_call_operand.vmem [shape: f32[1,80], index: 4, kind: input, shape index: {}]
  %s5 = inlined_call_operand.hbm [shape: f32[36,256], index: 5, kind: output, shape index: {0}]
  %s6 = inlined_call_operand.vmem [shape: f32[36,80], index: 6, kind: output, shape index: {1}]
  %7 = xla_tuple %s5, %s6
  %s8 = sld [smem:[#allocation0]]
  $region38: #{model_builder_forward.7} parent=0
    _
  %s10 = ssub.s32 1, %s8
  %s11 = scalar_select 0, %s10, %s8
  $region1: #{model_builder_forward.7} parent=0
    #allocation2 [shape = 'u8[40960]{0}', space=vmem, size = 0xa000, scoped, tag = 'output window, operand 0, single buffered']
    #allocation3 [shape = 's32[1]{0}', space=sflag, size = 0x4, scoped, tag = 'scoped memory for model_builder_forward.7']
    %12 = vsyncpa [#allocation3], 0
    // Predicated region
    $region2: #{model_builder_forward.7} parent=1 // pred_check
      _
    $region3: #{model_builder_forward.7} parent=1 // pred_check_branch
      %14 = sbr.rel (0) target = $region5
    $region4: #{model_builder_forward.7} parent=1 // pred_region
      _
    $region5: #{model_builder_forward.7} parent=1 // pred_fallthru
      _
    // Predicated region
    $region6: #{model_builder_forward.7} parent=1 // pred_check
      _
    $region7: #{model_builder_forward.7} parent=1 // pred_check_branch
      %16 = sbr.rel (0) target = $region9
    $region8: #{model_builder_forward.7} parent=1 // pred_region
      _
    $region9: #{model_builder_forward.7} parent=1 // pred_fallthru
      _
    // Predicated region
    $region10: #{model_builder_forward.7} parent=1 // pred_check
      _
    $region11: #{model_builder_forward.7} parent=1 // pred_check_branch
      %18 = sbr.rel (0) target = $region13
    $region12: #{model_builder_forward.7} parent=1 // pred_region
      _
    $region13: #{model_builder_forward.7} parent=1 // pred_fallthru
      _
    // Predicated region
    $region14: #{model_builder_forward.7} parent=1 // pred_check
      _
    $region15: #{model_builder_forward.7} parent=1 // pred_check_branch
      %20 = sbr.rel (0) target = $region17
    $region16: #{model_builder_forward.7} parent=1 // pred_region
      _
    $region17: #{model_builder_forward.7} parent=1 // pred_fallthru
      _
    // Predicated region
    $region18: #{model_builder_forward.7} parent=1 // pred_check
      _
    $region19: #{model_builder_forward.7} parent=1 // pred_check_branch
      %22 = sbr.rel (0) target = $region21
    $region20: #{model_builder_forward.7} parent=1 // pred_region
      _
    $region21: #{model_builder_forward.7} parent=1 // pred_fallthru
      _
    %v24 = vld [vmem:[%s0] sm:$0xff]
    %v25 = vld [vmem:[%s0 + $0x8] sm:$0xff]
    %v26 = vld [vmem:[%s0 + $0x10] sm:$0xff]
    %v27 = vld [vmem:[%s0 + $0x18] sm:$0xff]
    %v28 = vld [vmem:[%s0 + $0x20] sm:$0xff]
    %v29 = vld [vmem:[%s0 + $0x28] sm:$0xff]
    %v30 = vld [vmem:[%s0 + $0x30] sm:$0xff]
    %v31 = vld [vmem:[%s0 + $0x38] sm:$0xff]
    %v32 = vld [vmem:[%s0 + $0x40] sm:$0xf]
    %v33 = vld [vmem:[%s0 + $0x48] sm:$0xf]
    %v34 = vpack.c.bf16 %v26, %v24
    %v35 = vpack.c.bf16 %v27, %v25
    %v36 = vpack.c.bf16 %v30, %v28
    %v37 = vpack.c.bf16 %v31, %v29
    %v38 = vpack.c.bf16 %v32, %v32
    %v39 = vpack.c.bf16 %v33, %v33
    %v40 = vld [vmem:[%s1] sm:$0xff]
    %v41 = vld [vmem:[%s1 + $0x8] sm:$0xff]
    %v42 = vld [vmem:[%s1 + $0x10] sm:$0xff]
    %v43 = vld [vmem:[%s1 + $0x18] sm:$0xff]
    %v44 = vld [vmem:[%s1 + $0x20] sm:$0xff]
    %v45 = vld [vmem:[%s1 + $0x28] sm:$0xff]
    %v46 = vld [vmem:[%s1 + $0x30] sm:$0xff]
    %v47 = vld [vmem:[%s1 + $0x38] sm:$0xff]
    %v48 = vld [vmem:[%s1 + $0x40] sm:$0xff]
    %v49 = vld [vmem:[%s1 + $0x48] sm:$0xff]
    %v50 = vld [vmem:[%s1 + $0x50] sm:$0xff]
    %v51 = vld [vmem:[%s1 + $0x58] sm:$0xff]
    %v52 = vld [vmem:[%s1 + $0x60] sm:$0xff]
    %v53 = vld [vmem:[%s1 + $0x68] sm:$0xff]
    %v54 = vld [vmem:[%s1 + $0x70] sm:$0xff]
    %v55 = vld [vmem:[%s1 + $0x78] sm:$0xff]
    %v56 = vld [vmem:[%s1 + $0x80] sm:$0xff]
    %v57 = vld [vmem:[%s1 + $0x88] sm:$0xff]
    %v58 = vld [vmem:[%s0] sm:$0xfe]
    %v59 = vld [vmem:[%s0 + $0x8] sm:$0xfe]
    %v60 = vld [vmem:[%s0 + $0x40] sm:$0x1f]
    %v61 = vld [vmem:[%s0 + $0x48] sm:$0x1f]
    %v62 = vpack.c.bf16 %v26, %v58
    %v63 = vpack.c.bf16 %v27, %v59
    %v64 = vpack.c.bf16 %v60, %v60
    %v65 = vpack.c.bf16 %v61, %v61
    %s66 = scalar_lea.vmem %s1, 144
    %v67 = vld [vmem:[%s66] sm:$0xff]
    %v68 = vld [vmem:[%s66 + $0x8] sm:$0xff]
    %v69 = vld [vmem:[%s66 + $0x10] sm:$0xff]
    %v70 = vld [vmem:[%s66 + $0x18] sm:$0xff]
    %v71 = vld [vmem:[%s66 + $0x20] sm:$0xff]
    %v72 = vld [vmem:[%s66 + $0x28] sm:$0xff]
    %v73 = vld [vmem:[%s66 + $0x30] sm:$0xff]
    %v74 = vld [vmem:[%s66 + $0x38] sm:$0xff]
    %v75 = vld [vmem:[%s66 + $0x40] sm:$0xff]
    %v76 = vld [vmem:[%s66 + $0x48] sm:$0xff]
    %v77 = vld [vmem:[%s66 + $0x50] sm:$0xff]
    %v78 = vld [vmem:[%s66 + $0x58] sm:$0xff]
    %v79 = vld [vmem:[%s66 + $0x60] sm:$0xff]
    %v80 = vld [vmem:[%s66 + $0x68] sm:$0xff]
    %v81 = vld [vmem:[%s66 + $0x70] sm:$0xff]
    %v82 = vld [vmem:[%s66 + $0x78] sm:$0xff]
    %v83 = vld [vmem:[%s66 + $0x80] sm:$0xff]
    %v84 = vld [vmem:[%s66 + $0x88] sm:$0xff]
    %vm85 = vsmask.f32 7424
    %v87 = vshrl.u32 %v62, 16
    %v89 = vshll.u32 %v62, 16
    %v91 = vrot.slane %v89, 1
    %v92 = vor.u32 %v87, %v91
    %v94 = vshll.u32 %v36, 16
    %v96 = vrot.slane %v94, 1
    %v97 = vsel %vm85, %v92, %v96
    %v99 = vshrl.u32 %v63, 16
    %v101 = vshll.u32 %v63, 16
    %v103 = vrot.slane %v101, 1
    %v104 = vor.u32 %v99, %v103
    %v106 = vshll.u32 %v37, 16
    %v108 = vrot.slane %v106, 1
    %v109 = vsel %vm85, %v104, %v108
    %v110 = vshrl.u32 %v36, 16
    %v112 = vor.u32 %v110, %v96
    %v114 = vshll.u32 %v64, 16
    %v116 = vrot.slane %v114, 1
    %v117 = vsel %vm85, %v112, %v116
    %v118 = vshrl.u32 %v37, 16
    %v120 = vor.u32 %v118, %v108
    %v122 = vshll.u32 %v65, 16
    %v124 = vrot.slane %v122, 1
    %v125 = vsel %vm85, %v120, %v124
    %v126 = vshrl.u32 %v64, 16
    %v128 = vor.u32 %v126, %v116
    %v129 = vshrl.u32 %v65, 16
    %v131 = vor.u32 %v129, %v124
    %v153 = vunpack.c.l.b16 %v67
    %v154 = vunpack.c.h.b16 %v67
    %v155 = vunpack.c.l.b16 %v68
    %v156 = vunpack.c.h.b16 %v68
    %v157 = vunpack.c.l.b16 %v69
    %v158 = vunpack.c.h.b16 %v69
    %v159 = vunpack.c.l.b16 %v70
    %v160 = vunpack.c.h.b16 %v70
    %v161 = vunpack.c.l.b16 %v71
    %v162 = vunpack.c.h.b16 %v71
    %v163 = vunpack.c.l.b16 %v72
    %v164 = vunpack.c.h.b16 %v72
    %v165 = vunpack.c.l.b16 %v73
    %v166 = vunpack.c.h.b16 %v73
    %v167 = vunpack.c.l.b16 %v74
    %v168 = vunpack.c.h.b16 %v74
    %v169 = vunpack.c.l.b16 %v75
    %v170 = vunpack.c.h.b16 %v75
    %v171 = vunpack.c.l.b16 %v76
    %v172 = vunpack.c.h.b16 %v76
    %v173 = vunpack.c.l.b16 %v77
    %v174 = vunpack.c.h.b16 %v77
    %v175 = vunpack.c.l.b16 %v78
    %v176 = vunpack.c.h.b16 %v78
    %v177 = vunpack.c.l.b16 %v79
    %v178 = vunpack.c.h.b16 %v79
    %v179 = vunpack.c.l.b16 %v80
    %v180 = vunpack.c.h.b16 %v80
    %v181 = vunpack.c.l.b16 %v81
    %v182 = vunpack.c.h.b16 %v81
    %v183 = vunpack.c.l.b16 %v82
    %v184 = vunpack.c.h.b16 %v82
    %v185 = vunpack.c.l.b16 %v83
    %v186 = vunpack.c.h.b16 %v83
    %v187 = vunpack.c.l.b16 %v84
    %v188 = vunpack.c.h.b16 %v84
    %v189 = vpack.c.b16 %v155, %v153
    %v190 = vpack.c.b16 %v156, %v154
    %v191 = vpack.c.b16 %v159, %v157
    %v192 = vpack.c.b16 %v160, %v158
    %v193 = vpack.c.b16 %v163, %v161
    %v194 = vpack.c.b16 %v164, %v162
    %v195 = vpack.c.b16 %v167, %v165
    %v196 = vpack.c.b16 %v168, %v166
    %v197 = vpack.c.b16 %v171, %v169
    %v198 = vpack.c.b16 %v172, %v170
    %v199 = vpack.c.b16 %v175, %v173
    %v200 = vpack.c.b16 %v176, %v174
    %v201 = vpack.c.b16 %v179, %v177
    %v202 = vpack.c.b16 %v180, %v178
    %v203 = vpack.c.b16 %v183, %v181
    %v204 = vpack.c.b16 %v184, %v182
    %v205 = vpack.c.b16 %v187, %v185
    %v206 = vpack.c.b16 %v188, %v186
    %vm225 = vcmask 130048
    %v227 = vsel %vm225, %v109, 0
    %v230 = vsel %vm225, %v125, 0
    %v233 = vsel %vm225, %v131, 0
    %235 = vmatpush.bf16.msra.mxu0 %v203
    %236 = vmatpush.bf16.msra.mxu0 %v201
    %237 = vmatpush.bf16.msra.mxu0 %v199
    %238 = vmatpush.bf16.msra.mxu0 %v197
    %239 = vmatpush.bf16.msra.mxu0 %v195
    %240 = vmatpush.bf16.msra.mxu0 %v193
    %241 = vmatpush.bf16.msra.mxu0 %v191
    %242 = vmatpush.bf16.msra.mxu0 %v189
    %243 = vmatmul.bf16.gmra.mxu0 %v97
    %v244 = vpop.f32.mrf.mxu0
    %v245 = vadd.f32 0.0, %v244
    %v246 = vpop.f32.mrf.mxu0
    %v247 = vadd.f32 0.0, %v246
    %248 = vmatmul.bf16.gmra.mxu0 %v117
    %v249 = vpop.f32.mrf.mxu0
    %v250 = vadd.f32 0.0, %v249
    %v251 = vpop.f32.mrf.mxu0
    %v252 = vadd.f32 0.0, %v251
    %253 = vmatmul.bf16.gmra.mxu0 %v128
    %v254 = vpop.f32.mrf.mxu0
    %v255 = vadd.f32 0.0, %v254
    %v256 = vpop.f32.mrf.mxu0
    %257 = vdwg.mxu0
    %258 = vmatpush.bf16.msra.mxu0 0
    %259 = vmatpush.bf16.msra.mxu0 0
    %260 = vmatpush.bf16.msra.mxu0 0
    %261 = vmatpush.bf16.msra.mxu0 0
    %262 = vmatpush.bf16.msra.mxu0 0
    %263 = vmatpush.bf16.msra.mxu0 0
    %264 = vmatpush.bf16.msra.mxu0 0
    %265 = vmatpush.bf16.msra.mxu0 %v205
    %266 = vmatmul.bf16.gmra.mxu0 %v227
    %v267 = vpop.f32.mrf.mxu0
    %v268 = vadd.f32 %v245, %v267
    %v269 = vpop.f32.mrf.mxu0
    %v270 = vadd.f32 %v247, %v269
    %271 = vmatmul.bf16.gmra.mxu0 %v230
    %v272 = vpop.f32.mrf.mxu0
    %v273 = vadd.f32 %v250, %v272
    %v274 = vpop.f32.mrf.mxu0
    %v275 = vadd.f32 %v252, %v274
    %276 = vmatmul.bf16.gmra.mxu0 %v233
    %v277 = vpop.f32.mrf.mxu0
    %v278 = vadd.f32 %v255, %v277
    %v279 = vpop.f32.mrf.mxu0
    %280 = vdwg.mxu0
    %281 = vmatpush.bf16.msra.mxu0 %v204
    %282 = vmatpush.bf16.msra.mxu0 %v202
    %283 = vmatpush.bf16.msra.mxu0 %v200
    %284 = vmatpush.bf16.msra.mxu0 %v198
    %285 = vmatpush.bf16.msra.mxu0 %v196
    %286 = vmatpush.bf16.msra.mxu0 %v194
    %287 = vmatpush.bf16.msra.mxu0 %v192
    %288 = vmatpush.bf16.msra.mxu0 %v190
    %289 = vmatmul.bf16.gmra.mxu0 %v97
    %v290 = vpop.f32.mrf.mxu0
    %v291 = vadd.f32 0.0, %v290
    %v292 = vpop.f32.mrf.mxu0
    %v293 = vadd.f32 0.0, %v292
    %294 = vmatmul.bf16.gmra.mxu0 %v117
    %v295 = vpop.f32.mrf.mxu0
    %v296 = vadd.f32 0.0, %v295
    %v297 = vpop.f32.mrf.mxu0
    %v298 = vadd.f32 0.0, %v297
    %299 = vmatmul.bf16.gmra.mxu0 %v128
    %v300 = vpop.f32.mrf.mxu0
    %v301 = vadd.f32 0.0, %v300
    %v302 = vpop.f32.mrf.mxu0
    %303 = vdwg.mxu0
    %304 = vmatpush.bf16.msra.mxu0 0
    %305 = vmatpush.bf16.msra.mxu0 0
    %306 = vmatpush.bf16.msra.mxu0 0
    %307 = vmatpush.bf16.msra.mxu0 0
    %308 = vmatpush.bf16.msra.mxu0 0
    %309 = vmatpush.bf16.msra.mxu0 0
    %310 = vmatpush.bf16.msra.mxu0 0
    %311 = vmatpush.bf16.msra.mxu0 %v206
    %312 = vmatmul.bf16.gmra.mxu0 %v227
    %v313 = vpop.f32.mrf.mxu0
    %v314 = vadd.f32 %v291, %v313
    %v315 = vpop.f32.mrf.mxu0
    %v316 = vadd.f32 %v293, %v315
    %317 = vmatmul.bf16.gmra.mxu0 %v230
    %v318 = vpop.f32.mrf.mxu0
    %v319 = vadd.f32 %v296, %v318
    %v320 = vpop.f32.mrf.mxu0
    %v321 = vadd.f32 %v298, %v320
    %322 = vmatmul.bf16.gmra.mxu0 %v233
    %v323 = vpop.f32.mrf.mxu0
    %v324 = vadd.f32 %v301, %v323
    %v325 = vpop.f32.mrf.mxu0
    %326 = vdwg.mxu0
    %v345 = vunpack.c.l.b16 %v40
    %v346 = vunpack.c.h.b16 %v40
    %v347 = vunpack.c.l.b16 %v41
    %v348 = vunpack.c.h.b16 %v41
    %v349 = vunpack.c.l.b16 %v42
    %v350 = vunpack.c.h.b16 %v42
    %v351 = vunpack.c.l.b16 %v43
    %v352 = vunpack.c.h.b16 %v43
    %v353 = vunpack.c.l.b16 %v44
    %v354 = vunpack.c.h.b16 %v44
    %v355 = vunpack.c.l.b16 %v45
    %v356 = vunpack.c.h.b16 %v45
    %v357 = vunpack.c.l.b16 %v46
    %v358 = vunpack.c.h.b16 %v46
    %v359 = vunpack.c.l.b16 %v47
    %v360 = vunpack.c.h.b16 %v47
    %v361 = vunpack.c.l.b16 %v48
    %v362 = vunpack.c.h.b16 %v48
    %v363 = vunpack.c.l.b16 %v49
    %v364 = vunpack.c.h.b16 %v49
    %v365 = vunpack.c.l.b16 %v50
    %v366 = vunpack.c.h.b16 %v50
    %v367 = vunpack.c.l.b16 %v51
    %v368 = vunpack.c.h.b16 %v51
    %v369 = vunpack.c.l.b16 %v52
    %v370 = vunpack.c.h.b16 %v52
    %v371 = vunpack.c.l.b16 %v53
    %v372 = vunpack.c.h.b16 %v53
    %v373 = vunpack.c.l.b16 %v54
    %v374 = vunpack.c.h.b16 %v54
    %v375 = vunpack.c.l.b16 %v55
    %v376 = vunpack.c.h.b16 %v55
    %v377 = vunpack.c.l.b16 %v56
    %v378 = vunpack.c.h.b16 %v56
    %v379 = vunpack.c.l.b16 %v57
    %v380 = vunpack.c.h.b16 %v57
    %v381 = vpack.c.b16 %v347, %v345
    %v382 = vpack.c.b16 %v348, %v346
    %v383 = vpack.c.b16 %v351, %v349
    %v384 = vpack.c.b16 %v352, %v350
    %v385 = vpack.c.b16 %v355, %v353
    %v386 = vpack.c.b16 %v356, %v354
    %v387 = vpack.c.b16 %v359, %v357
    %v388 = vpack.c.b16 %v360, %v358
    %v389 = vpack.c.b16 %v363, %v361
    %v390 = vpack.c.b16 %v364, %v362
    %v391 = vpack.c.b16 %v367, %v365
    %v392 = vpack.c.b16 %v368, %v366
    %v393 = vpack.c.b16 %v371, %v369
    %v394 = vpack.c.b16 %v372, %v370
    %v395 = vpack.c.b16 %v375, %v373
    %v396 = vpack.c.b16 %v376, %v374
    %v397 = vpack.c.b16 %v379, %v377
    %v398 = vpack.c.b16 %v380, %v378
    %v418 = vsel %vm225, %v35, 0
    %v420 = vsel %vm225, %v37, 0
    %v423 = vsel %vm225, %v39, 0
    %425 = vmatpush.bf16.msra.mxu0 %v395
    %426 = vmatpush.bf16.msra.mxu0 %v393
    %427 = vmatpush.bf16.msra.mxu0 %v391
    %428 = vmatpush.bf16.msra.mxu0 %v389
    %429 = vmatpush.bf16.msra.mxu0 %v387
    %430 = vmatpush.bf16.msra.mxu0 %v385
    %431 = vmatpush.bf16.msra.mxu0 %v383
    %432 = vmatpush.bf16.msra.mxu0 %v381
    %433 = vmatmul.bf16.gmra.mxu0 %v34
    %v434 = vpop.f32.mrf.mxu0
    %v435 = vadd.f32 %v268, %v434
    %v436 = vpop.f32.mrf.mxu0
    %v437 = vadd.f32 %v270, %v436
    %438 = vmatmul.bf16.gmra.mxu0 %v36
    %v439 = vpop.f32.mrf.mxu0
    %v440 = vadd.f32 %v273, %v439
    %v441 = vpop.f32.mrf.mxu0
    %v442 = vadd.f32 %v275, %v441
    %443 = vmatmul.bf16.gmra.mxu0 %v38
    %v444 = vpop.f32.mrf.mxu0
    %v445 = vadd.f32 %v278, %v444
    %v446 = vpop.f32.mrf.mxu0
    %447 = vdwg.mxu0
    %448 = vmatpush.bf16.msra.mxu0 0
    %449 = vmatpush.bf16.msra.mxu0 0
    %450 = vmatpush.bf16.msra.mxu0 0
    %451 = vmatpush.bf16.msra.mxu0 0
    %452 = vmatpush.bf16.msra.mxu0 0
    %453 = vmatpush.bf16.msra.mxu0 0
    %454 = vmatpush.bf16.msra.mxu0 0
    %455 = vmatpush.bf16.msra.mxu0 %v397
    %456 = vmatmul.bf16.gmra.mxu0 %v418
    %v457 = vpop.f32.mrf.mxu0
    %v458 = vadd.f32 %v435, %v457
    %v459 = vpop.f32.mrf.mxu0
    %v460 = vadd.f32 %v437, %v459
    %461 = vmatmul.bf16.gmra.mxu0 %v420
    %v462 = vpop.f32.mrf.mxu0
    %v463 = vadd.f32 %v440, %v462
    %v464 = vpop.f32.mrf.mxu0
    %v465 = vadd.f32 %v442, %v464
    %466 = vmatmul.bf16.gmra.mxu0 %v423
    %v467 = vpop.f32.mrf.mxu0
    %v468 = vadd.f32 %v445, %v467
    %v469 = vpop.f32.mrf.mxu0
    %470 = vdwg.mxu0
    %471 = vmatpush.bf16.msra.mxu0 %v396
    %472 = vmatpush.bf16.msra.mxu0 %v394
    %473 = vmatpush.bf16.msra.mxu0 %v392
    %474 = vmatpush.bf16.msra.mxu0 %v390
    %475 = vmatpush.bf16.msra.mxu0 %v388
    %476 = vmatpush.bf16.msra.mxu0 %v386
    %477 = vmatpush.bf16.msra.mxu0 %v384
    %478 = vmatpush.bf16.msra.mxu0 %v382
    %479 = vmatmul.bf16.gmra.mxu0 %v34
    %v480 = vpop.f32.mrf.mxu0
    %v481 = vadd.f32 %v314, %v480
    %v482 = vpop.f32.mrf.mxu0
    %v483 = vadd.f32 %v316, %v482
    %484 = vmatmul.bf16.gmra.mxu0 %v36
    %v485 = vpop.f32.mrf.mxu0
    %v486 = vadd.f32 %v319, %v485
    %v487 = vpop.f32.mrf.mxu0
    %v488 = vadd.f32 %v321, %v487
    %489 = vmatmul.bf16.gmra.mxu0 %v38
    %v490 = vpop.f32.mrf.mxu0
    %v491 = vadd.f32 %v324, %v490
    %v492 = vpop.f32.mrf.mxu0
    %493 = vdwg.mxu0
    %494 = vmatpush.bf16.msra.mxu0 0
    %495 = vmatpush.bf16.msra.mxu0 0
    %496 = vmatpush.bf16.msra.mxu0 0
    %497 = vmatpush.bf16.msra.mxu0 0
    %498 = vmatpush.bf16.msra.mxu0 0
    %499 = vmatpush.bf16.msra.mxu0 0
    %500 = vmatpush.bf16.msra.mxu0 0
    %501 = vmatpush.bf16.msra.mxu0 %v398
    %502 = vmatmul.bf16.gmra.mxu0 %v418
    %v503 = vpop.f32.mrf.mxu0
    %v504 = vadd.f32 %v481, %v503
    %v505 = vpop.f32.mrf.mxu0
    %v506 = vadd.f32 %v483, %v505
    %507 = vmatmul.bf16.gmra.mxu0 %v420
    %v508 = vpop.f32.mrf.mxu0
    %v509 = vadd.f32 %v486, %v508
    %v510 = vpop.f32.mrf.mxu0
    %v511 = vadd.f32 %v488, %v510
    %512 = vmatmul.bf16.gmra.mxu0 %v423
    %v513 = vpop.f32.mrf.mxu0
    %v514 = vadd.f32 %v491, %v513
    %v515 = vpop.f32.mrf.mxu0
    %516 = vdwg.mxu0
    %v517 = vld [vmem:[%s0] sm:$0xfc]
    %v518 = vld [vmem:[%s0 + $0x8] sm:$0xfc]
    %v519 = vld [vmem:[%s0 + $0x40] sm:$0x3f]
    %v520 = vld [vmem:[%s0 + $0x48] sm:$0x3f]
    %v521 = vpack.c.bf16 %v26, %v517
    %v522 = vpack.c.bf16 %v27, %v518
    %v523 = vpack.c.bf16 %v519, %v519
    %v524 = vpack.c.bf16 %v520, %v520
    %s525 = scalar_lea.vmem %s1, 288
    %v526 = vld [vmem:[%s525] sm:$0xff]
    %v527 = vld [vmem:[%s525 + $0x8] sm:$0xff]
    %v528 = vld [vmem:[%s525 + $0x10] sm:$0xff]
    %v529 = vld [vmem:[%s525 + $0x18] sm:$0xff]
    %v530 = vld [vmem:[%s525 + $0x20] sm:$0xff]
    %v531 = vld [vmem:[%s525 + $0x28] sm:$0xff]
    %v532 = vld [vmem:[%s525 + $0x30] sm:$0xff]
    %v533 = vld [vmem:[%s525 + $0x38] sm:$0xff]
    %v534 = vld [vmem:[%s525 + $0x40] sm:$0xff]
    %v535 = vld [vmem:[%s525 + $0x48] sm:$0xff]
    %v536 = vld [vmem:[%s525 + $0x50] sm:$0xff]
    %v537 = vld [vmem:[%s525 + $0x58] sm:$0xff]
    %v538 = vld [vmem:[%s525 + $0x60] sm:$0xff]
    %v539 = vld [vmem:[%s525 + $0x68] sm:$0xff]
    %v540 = vld [vmem:[%s525 + $0x70] sm:$0xff]
    %v541 = vld [vmem:[%s525 + $0x78] sm:$0xff]
    %v542 = vld [vmem:[%s525 + $0x80] sm:$0xff]
    %v543 = vld [vmem:[%s525 + $0x88] sm:$0xff]
    %vm550 = vcmask 1046528
    %v551 = vrot.slane %v521, 1
    %v552 = vrot.slane %v36, 1
    %v553 = vsel %vm550, %v551, %v552
    %v554 = vrot.slane %v522, 1
    %v555 = vrot.slane %v37, 1
    %v556 = vsel %vm550, %v554, %v555
    %v557 = vrot.slane %v523, 1
    %v558 = vsel %vm550, %v552, %v557
    %v559 = vrot.slane %v524, 1
    %v560 = vsel %vm550, %v555, %v559
    %v582 = vunpack.c.l.b16 %v526
    %v583 = vunpack.c.h.b16 %v526
    %v584 = vunpack.c.l.b16 %v527
    %v585 = vunpack.c.h.b16 %v527
    %v586 = vunpack.c.l.b16 %v528
    %v587 = vunpack.c.h.b16 %v528
    %v588 = vunpack.c.l.b16 %v529
    %v589 = vunpack.c.h.b16 %v529
    %v590 = vunpack.c.l.b16 %v530
    %v591 = vunpack.c.h.b16 %v530
    %v592 = vunpack.c.l.b16 %v531
    %v593 = vunpack.c.h.b16 %v531
    %v594 = vunpack.c.l.b16 %v532
    %v595 = vunpack.c.h.b16 %v532
    %v596 = vunpack.c.l.b16 %v533
    %v597 = vunpack.c.h.b16 %v533
    %v598 = vunpack.c.l.b16 %v534
    %v599 = vunpack.c.h.b16 %v534
    %v600 = vunpack.c.l.b16 %v535
    %v601 = vunpack.c.h.b16 %v535
    %v602 = vunpack.c.l.b16 %v536
    %v603 = vunpack.c.h.b16 %v536
    %v604 = vunpack.c.l.b16 %v537
    %v605 = vunpack.c.h.b16 %v537
    %v606 = vunpack.c.l.b16 %v538
    %v607 = vunpack.c.h.b16 %v538
    %v608 = vunpack.c.l.b16 %v539
    %v609 = vunpack.c.h.b16 %v539
    %v610 = vunpack.c.l.b16 %v540
    %v611 = vunpack.c.h.b16 %v540
    %v612 = vunpack.c.l.b16 %v541
    %v613 = vunpack.c.h.b16 %v541
    %v614 = vunpack.c.l.b16 %v542
    %v615 = vunpack.c.h.b16 %v542
    %v616 = vunpack.c.l.b16 %v543
    %v617 = vunpack.c.h.b16 %v543
    %v618 = vpack.c.b16 %v584, %v582
    %v619 = vpack.c.b16 %v585, %v583
    %v620 = vpack.c.b16 %v588, %v586
    %v621 = vpack.c.b16 %v589, %v587
    %v622 = vpack.c.b16 %v592, %v590
    %v623 = vpack.c.b16 %v593, %v591
    %v624 = vpack.c.b16 %v596, %v594
    %v625 = vpack.c.b16 %v597, %v595
    %v626 = vpack.c.b16 %v600, %v598
    %v627 = vpack.c.b16 %v601, %v599
    %v628 = vpack.c.b16 %v604, %v602
    %v629 = vpack.c.b16 %v605, %v603
    %v630 = vpack.c.b16 %v608, %v606
    %v631 = vpack.c.b16 %v609, %v607
    %v632 = vpack.c.b16 %v612, %v610
    %v633 = vpack.c.b16 %v613, %v611
    %v634 = vpack.c.b16 %v616, %v614
    %v635 = vpack.c.b16 %v617, %v615
    %v655 = vsel %vm225, %v556, 0
    %v658 = vsel %vm225, %v560, 0
    %v661 = vsel %vm225, %v559, 0
    %663 = vmatpush.bf16.msra.mxu0 %v632
    %664 = vmatpush.bf16.msra.mxu0 %v630
    %665 = vmatpush.bf16.msra.mxu0 %v628
    %666 = vmatpush.bf16.msra.mxu0 %v626
    %667 = vmatpush.bf16.msra.mxu0 %v624
    %668 = vmatpush.bf16.msra.mxu0 %v622
    %669 = vmatpush.bf16.msra.mxu0 %v620
    %670 = vmatpush.bf16.msra.mxu0 %v618
    %671 = vmatmul.bf16.gmra.mxu0 %v553
    %v672 = vpop.f32.mrf.mxu0
    %v673 = vadd.f32 0.0, %v672
    %v674 = vpop.f32.mrf.mxu0
    %v675 = vadd.f32 0.0, %v674
    %676 = vmatmul.bf16.gmra.mxu0 %v558
    %v677 = vpop.f32.mrf.mxu0
    %v678 = vadd.f32 0.0, %v677
    %v679 = vpop.f32.mrf.mxu0
    %v680 = vadd.f32 0.0, %v679
    %681 = vmatmul.bf16.gmra.mxu0 %v557
    %v682 = vpop.f32.mrf.mxu0
    %v683 = vadd.f32 0.0, %v682
    %v684 = vpop.f32.mrf.mxu0
    %685 = vdwg.mxu0
    %686 = vmatpush.bf16.msra.mxu0 0
    %687 = vmatpush.bf16.msra.mxu0 0
    %688 = vmatpush.bf16.msra.mxu0 0
    %689 = vmatpush.bf16.msra.mxu0 0
    %690 = vmatpush.bf16.msra.mxu0 0
    %691 = vmatpush.bf16.msra.mxu0 0
    %692 = vmatpush.bf16.msra.mxu0 0
    %693 = vmatpush.bf16.msra.mxu0 %v634
    %694 = vmatmul.bf16.gmra.mxu0 %v655
    %v695 = vpop.f32.mrf.mxu0
    %v696 = vadd.f32 %v673, %v695
    %v697 = vpop.f32.mrf.mxu0
    %v698 = vadd.f32 %v675, %v697
    %699 = vmatmul.bf16.gmra.mxu0 %v658
    %v700 = vpop.f32.mrf.mxu0
    %v701 = vadd.f32 %v678, %v700
    %v702 = vpop.f32.mrf.mxu0
    %v703 = vadd.f32 %v680, %v702
    %704 = vmatmul.bf16.gmra.mxu0 %v661
    %v705 = vpop.f32.mrf.mxu0
    %v706 = vadd.f32 %v683, %v705
    %v707 = vpop.f32.mrf.mxu0
    %708 = vdwg.mxu0
    %709 = vmatpush.bf16.msra.mxu0 %v633
    %710 = vmatpush.bf16.msra.mxu0 %v631
    %711 = vmatpush.bf16.msra.mxu0 %v629
    %712 = vmatpush.bf16.msra.mxu0 %v627
    %713 = vmatpush.bf16.msra.mxu0 %v625
    %714 = vmatpush.bf16.msra.mxu0 %v623
    %715 = vmatpush.bf16.msra.mxu0 %v621
    %716 = vmatpush.bf16.msra.mxu0 %v619
    %717 = vmatmul.bf16.gmra.mxu0 %v553
    %v718 = vpop.f32.mrf.mxu0
    %v719 = vadd.f32 0.0, %v718
    %v720 = vpop.f32.mrf.mxu0
    %v721 = vadd.f32 0.0, %v720
    %722 = vmatmul.bf16.gmra.mxu0 %v558
    %v723 = vpop.f32.mrf.mxu0
    %v724 = vadd.f32 0.0, %v723
    %v725 = vpop.f32.mrf.mxu0
    %v726 = vadd.f32 0.0, %v725
    %727 = vmatmul.bf16.gmra.mxu0 %v557
    %v728 = vpop.f32.mrf.mxu0
    %v729 = vadd.f32 0.0, %v728
    %v730 = vpop.f32.mrf.mxu0
    %731 = vdwg.mxu0
    %732 = vmatpush.bf16.msra.mxu0 0
    %733 = vmatpush.bf16.msra.mxu0 0
    %734 = vmatpush.bf16.msra.mxu0 0
    %735 = vmatpush.bf16.msra.mxu0 0
    %736 = vmatpush.bf16.msra.mxu0 0
    %737 = vmatpush.bf16.msra.mxu0 0
    %738 = vmatpush.bf16.msra.mxu0 0
    %739 = vmatpush.bf16.msra.mxu0 %v635
    %740 = vmatmul.bf16.gmra.mxu0 %v655
    %v741 = vpop.f32.mrf.mxu0
    %v742 = vadd.f32 %v719, %v741
    %v743 = vpop.f32.mrf.mxu0
    %v744 = vadd.f32 %v721, %v743
    %745 = vmatmul.bf16.gmra.mxu0 %v658
    %v746 = vpop.f32.mrf.mxu0
    %v747 = vadd.f32 %v724, %v746
    %v748 = vpop.f32.mrf.mxu0
    %v749 = vadd.f32 %v726, %v748
    %750 = vmatmul.bf16.gmra.mxu0 %v661
    %v751 = vpop.f32.mrf.mxu0
    %v752 = vadd.f32 %v729, %v751
    %v753 = vpop.f32.mrf.mxu0
    %754 = vdwg.mxu0
    %v755 = vadd.f32 %v458, %v696
    %v756 = vadd.f32 %v504, %v742
    %v757 = vadd.f32 %v460, %v698
    %v758 = vadd.f32 %v506, %v744
    %v759 = vadd.f32 %v463, %v701
    %v760 = vadd.f32 %v509, %v747
    %v761 = vadd.f32 %v465, %v703
    %v762 = vadd.f32 %v511, %v749
    %v763 = vadd.f32 %v468, %v706
    %v764 = vadd.f32 %v514, %v752
    %v765 = vld [vmem:[%s2] sm:$0x3]
    %v767 = vperm.slane %v765, 0
    %v768 = vperm.slane %v765, 1
    %v771 = vadd.f32 %v755, %v767
    %v772 = vadd.f32 %v756, %v768
    %v773 = vadd.f32 %v757, %v767
    %v774 = vadd.f32 %v758, %v768
    %v775 = vadd.f32 %v759, %v767
    %v776 = vadd.f32 %v760, %v768
    %v777 = vadd.f32 %v761, %v767
    %v778 = vadd.f32 %v762, %v768
    %v779 = vadd.f32 %v763, %v767
    %v780 = vadd.f32 %v764, %v768
    %v781 = vmax.f32 %v771, 0.0
    %v782 = vmax.f32 %v772, 0.0
    %v783 = vmax.f32 %v773, 0.0
    %v784 = vmax.f32 %v774, 0.0
    %v785 = vmax.f32 %v775, 0.0
    %v786 = vmax.f32 %v776, 0.0
    %v787 = vmax.f32 %v777, 0.0
    %v788 = vmax.f32 %v778, 0.0
    %v789 = vmax.f32 %v779, 0.0
    %v790 = vmax.f32 %v780, 0.0
    %791 = vst [vmem:[#allocation2] sm:$0xff] %v781
    %792 = vst [vmem:[#allocation2 + $0x8] sm:$0xff] %v782
    %793 = vst [vmem:[#allocation2 + $0x10] sm:$0xff] %v783
    %794 = vst [vmem:[#allocation2 + $0x18] sm:$0xff] %v784
    %795 = vst [vmem:[#allocation2 + $0x20] sm:$0xff] %v785
    %796 = vst [vmem:[#allocation2 + $0x28] sm:$0xff] %v786
    %797 = vst [vmem:[#allocation2 + $0x30] sm:$0xff] %v787
    %798 = vst [vmem:[#allocation2 + $0x38] sm:$0xff] %v788
    %799 = vst [vmem:[#allocation2 + $0x40] sm:$0xf] %v789
    %800 = vst [vmem:[#allocation2 + $0x48] sm:$0xf] %v790
    %v801 = vpack.c.bf16 %v783, %v781
    %v802 = vpack.c.bf16 %v784, %v782
    %v803 = vpack.c.bf16 %v787, %v785
    %v804 = vpack.c.bf16 %v788, %v786
    %v805 = vpack.c.bf16 %v789, %v789
    %v806 = vpack.c.bf16 %v790, %v790
    %v807 = vld [vmem:[%s3] sm:$0xf]
    %v808 = vld [vmem:[%s3 + $0x4] sm:$0xf]
    %v809 = vld [vmem:[%s3 + $0x8] sm:$0xf]
    %v810 = vld [vmem:[%s3 + $0xc] sm:$0xf]
    %v811 = vld [vmem:[%s3 + $0x10] sm:$0xf]
    %v812 = vld [vmem:[%s3 + $0x14] sm:$0xf]
    %v813 = vld [vmem:[%s3 + $0x18] sm:$0xf]
    %v814 = vld [vmem:[%s3 + $0x1c] sm:$0xf]
    %v815 = vld [vmem:[%s3 + $0x20] sm:$0xf]
    %v816 = vld [vmem:[%s3 + $0x24] sm:$0xf]
    %v817 = vld [vmem:[%s3 + $0x28] sm:$0xf]
    %v818 = vld [vmem:[%s3 + $0x2c] sm:$0xf]
    %v819 = vld [vmem:[%s3 + $0x30] sm:$0xf]
    %v820 = vld [vmem:[%s3 + $0x34] sm:$0xf]
    %v821 = vld [vmem:[%s3 + $0x38] sm:$0xf]
    %v822 = vld [vmem:[%s3 + $0x3c] sm:$0xf]
    %v823 = vld [vmem:[%s3 + $0x40] sm:$0xf]
    %v824 = vld [vmem:[%s3 + $0x44] sm:$0xf]
    %v825 = vld [vmem:[%s3 + $0x48] sm:$0xf]
    %v826 = vld [vmem:[%s3 + $0x4c] sm:$0xf]
    %v827 = vld [vmem:[%s3 + $0x50] sm:$0xf]
    %v828 = vld [vmem:[%s3 + $0x54] sm:$0xf]
    %v829 = vld [vmem:[%s3 + $0x58] sm:$0xf]
    %v830 = vld [vmem:[%s3 + $0x5c] sm:$0xf]
    %v831 = vld [vmem:[%s3 + $0x60] sm:$0xf]
    %v832 = vld [vmem:[%s3 + $0x64] sm:$0xf]
    %v833 = vld [vmem:[%s3 + $0x68] sm:$0xf]
    %v834 = vld [vmem:[%s3 + $0x6c] sm:$0xf]
    %v835 = vld [vmem:[%s3 + $0x70] sm:$0xf]
    %v836 = vld [vmem:[%s3 + $0x74] sm:$0xf]
    %v837 = vld [vmem:[%s3 + $0x78] sm:$0xf]
    %v838 = vld [vmem:[%s3 + $0x7c] sm:$0xf]
    %v839 = vld [vmem:[%s4] sm:$0x1]
    %v841 = vperm.slane %v839, 0
    %v875 = vunpack.c.l.b16 %v807
    %v876 = vunpack.c.l.b16 %v808
    %v877 = vunpack.c.l.b16 %v809
    %v878 = vunpack.c.l.b16 %v810
    %v879 = vunpack.c.l.b16 %v811
    %v880 = vunpack.c.l.b16 %v812
    %v881 = vunpack.c.l.b16 %v813
    %v882 = vunpack.c.l.b16 %v814
    %v883 = vunpack.c.l.b16 %v815
    %v884 = vunpack.c.l.b16 %v816
    %v885 = vunpack.c.l.b16 %v817
    %v886 = vunpack.c.l.b16 %v818
    %v887 = vunpack.c.l.b16 %v819
    %v888 = vunpack.c.l.b16 %v820
    %v889 = vunpack.c.l.b16 %v821
    %v890 = vunpack.c.l.b16 %v822
    %v891 = vunpack.c.l.b16 %v823
    %v892 = vunpack.c.l.b16 %v824
    %v893 = vunpack.c.l.b16 %v825
    %v894 = vunpack.c.l.b16 %v826
    %v895 = vunpack.c.l.b16 %v827
    %v896 = vunpack.c.l.b16 %v828
    %v897 = vunpack.c.l.b16 %v829
    %v898 = vunpack.c.l.b16 %v830
    %v899 = vunpack.c.l.b16 %v831
    %v900 = vunpack.c.l.b16 %v832
    %v901 = vunpack.c.l.b16 %v833
    %v902 = vunpack.c.l.b16 %v834
    %v903 = vunpack.c.l.b16 %v835
    %v904 = vunpack.c.l.b16 %v836
    %v905 = vunpack.c.l.b16 %v837
    %v906 = vunpack.c.l.b16 %v838
    %v907 = vpack.c.b16 %v876, %v875
    %v908 = vpack.c.b16 %v878, %v877
    %v909 = vpack.c.b16 %v880, %v879
    %v910 = vpack.c.b16 %v882, %v881
    %v911 = vpack.c.b16 %v884, %v883
    %v912 = vpack.c.b16 %v886, %v885
    %v913 = vpack.c.b16 %v888, %v887
    %v914 = vpack.c.b16 %v890, %v889
    %v915 = vpack.c.b16 %v892, %v891
    %v916 = vpack.c.b16 %v894, %v893
    %v917 = vpack.c.b16 %v896, %v895
    %v918 = vpack.c.b16 %v898, %v897
    %v919 = vpack.c.b16 %v900, %v899
    %v920 = vpack.c.b16 %v902, %v901
    %v921 = vpack.c.b16 %v904, %v903
    %v922 = vpack.c.b16 %v906, %v905
    %939 = vmatpush.bf16.msra.mxu0 %v914
    %940 = vmatpush.bf16.msra.mxu0 %v913
    %941 = vmatpush.bf16.msra.mxu0 %v912
    %942 = vmatpush.bf16.msra.mxu0 %v911
    %943 = vmatpush.bf16.msra.mxu0 %v910
    %944 = vmatpush.bf16.msra.mxu0 %v909
    %945 = vmatpush.bf16.msra.mxu0 %v908
    %946 = vmatpush.bf16.msra.mxu0 %v907
    %947 = vmatmul.bf16.gmra.mxu0 %v801
    %v948 = vpop.f32.mrf.mxu0
    %v949 = vadd.f32 %v841, %v948
    %v950 = vpop.f32.mrf.mxu0
    %v951 = vadd.f32 %v841, %v950
    %952 = vmatmul.bf16.gmra.mxu0 %v803
    %v953 = vpop.f32.mrf.mxu0
    %v954 = vadd.f32 %v841, %v953
    %v955 = vpop.f32.mrf.mxu0
    %v956 = vadd.f32 %v841, %v955
    %957 = vmatmul.bf16.gmra.mxu0 %v805
    %v958 = vpop.f32.mrf.mxu0
    %v959 = vadd.f32 %v841, %v958
    %v960 = vpop.f32.mrf.mxu0
    %961 = vdwg.mxu0
    %962 = vmatpush.bf16.msra.mxu0 %v922
    %963 = vmatpush.bf16.msra.mxu0 %v921
    %964 = vmatpush.bf16.msra.mxu0 %v920
    %965 = vmatpush.bf16.msra.mxu0 %v919
    %966 = vmatpush.bf16.msra.mxu0 %v918
    %967 = vmatpush.bf16.msra.mxu0 %v917
    %968 = vmatpush.bf16.msra.mxu0 %v916
    %969 = vmatpush.bf16.msra.mxu0 %v915
    %970 = vmatmul.bf16.gmra.mxu0 %v802
    %v971 = vpop.f32.mrf.mxu0
    %v972 = vadd.f32 %v949, %v971
    %v973 = vpop.f32.mrf.mxu0
    %v974 = vadd.f32 %v951, %v973
    %975 = vmatmul.bf16.gmra.mxu0 %v804
    %v976 = vpop.f32.mrf.mxu0
    %v977 = vadd.f32 %v954, %v976
    %v978 = vpop.f32.mrf.mxu0
    %v979 = vadd.f32 %v956, %v978
    %980 = vmatmul.bf16.gmra.mxu0 %v806
    %v981 = vpop.f32.mrf.mxu0
    %v982 = vadd.f32 %v959, %v981
    %v983 = vpop.f32.mrf.mxu0
    %984 = vdwg.mxu0
    %vm985 = vcmask 654336
    %986 = vst.msk [vmem:[%s6] sm:$0xff] %vm985, %v972
    %987 = vst.msk [vmem:[%s6 + $0x8] sm:$0xff] %vm985, %v974
    %988 = vst.msk [vmem:[%s6 + $0x10] sm:$0xff] %vm985, %v977
    %989 = vst.msk [vmem:[%s6 + $0x18] sm:$0xff] %vm985, %v979
    %vm990 = vcmask 650240
    %991 = vst.msk [vmem:[%s6 + $0x20] sm:$0xf] %vm990, %v982
    // Predicated region
    $region22: #{model_builder_forward.7} parent=1 // pred_check
      _
    $region23: #{model_builder_forward.7} parent=1 // pred_check_branch
      %993 = sbr.rel (0) target = $region25
    $region24: #{model_builder_forward.7} parent=1 // pred_region
      %995 = vsyncadd [#allocation3], 0
      %s996 = sshll.u32 [#allocation2], 4
      %s997 = int_to_ptr.vmem [resolvable:$true] %s996
      %s998 = sshll.u32 %s5, 4
      %s999 = int_to_ptr.hbm [resolvable:$true] %s998
      %1004 = dma.vmem_to_hbm [thread:$0]  %s997, 1280, %s999, [#allocation3], 256, 256, 16
    $region25: #{model_builder_forward.7} parent=1 // pred_fallthru
      _
    // Predicated region
    $region26: #{model_builder_forward.7} parent=1 // pred_check
      _
    $region27: #{model_builder_forward.7} parent=1 // pred_check_branch
      %1006 = sbr.rel (0) target = $region29
    $region28: #{model_builder_forward.7} parent=1 // pred_region
      _
    $region29: #{model_builder_forward.7} parent=1 // pred_fallthru
      _
    // Predicated region
    $region30: #{model_builder_forward.7} parent=1 // pred_check
      _
    $region31: #{model_builder_forward.7} parent=1 // pred_check_branch
      %1008 = sbr.rel (0) target = $region33
    $region32: #{model_builder_forward.7} parent=1 // pred_region
      %1010 = dma.done [#allocation3], 1280
    $region33: #{model_builder_forward.7} parent=1 // pred_fallthru
      _
    // Predicated region
    $region34: #{model_builder_forward.7} parent=1 // pred_check
      _
    $region35: #{model_builder_forward.7} parent=1 // pred_check_branch
      %1012 = sbr.rel (0) target = $region37
    $region36: #{model_builder_forward.7} parent=1 // pred_region
      _
    $region37: #{model_builder_forward.7} parent=1 // pred_fallthru
      _
    %1013 = vsyncpa [#allocation3], 1

</llo_original>
